<compile_context>
chip_gen: v6e
topology: v6e:2x2x1
jax: 0.10.0
libtpu: 0.0.40
codegen_flags: <defaults>
</compile_context>

<pallas_src>
import functools
import math

import jax
import jax.numpy as jnp
from jax.experimental import pallas as pl
from jax.experimental.pallas import tpu as pltpu

# ----------------------------- config (small shapes) -----------------------------
B = 2            # batch
S = 8            # seq_len
D = 32           # dim
DEPTH = 2        # encoder depth (module default 6; small here)
H = 4            # head_num
DH = D // int(math.sqrt(H))   # dim_head = 32 // 2 = 16 (module convention)
DFF = D * 2      # dim_ff
EPS = 1e-5       # nn.LayerNorm default eps
BS = B * S
NEG = -1e30      # additive mask value


def _layernorm(h, gamma, beta):
    mu = jnp.mean(h, axis=-1, keepdims=True)
    var = jnp.mean((h - mu) ** 2, axis=-1, keepdims=True)
    return (h - mu) * jax.lax.rsqrt(var + EPS) * gamma + beta


def _gelu(x):
    # exact (erf-based) GELU, matching torch.nn.GELU default
    return 0.5 * x * (1.0 + jax.lax.erf(x * (1.0 / math.sqrt(2.0))))


# ----------------------------- fused transformer kernel -----------------------------
def transformer_kernel(x_ref, bias_ref, lng_ref, lnb_ref, wqkv_ref, bqkv_ref,
                       wo_ref, bo_ref, w1_ref, b1_ref, w2_ref, b2_ref,
                       o_ref, *, depth, head_num):
    h = x_ref[...]                 # (B*S, D) - resident across all layers, never spilled to HBM
    bias = bias_ref[...]           # (B*S, B*S) additive block-diagonal mask (0 / -1e30), hoisted

    for l in range(depth):         # static unroll over layers; all weights stay in VMEM
        # ---- pre-norm multi-head self-attention + residual ----
        xn = _layernorm(h, lng_ref[l, 0], lnb_ref[l, 0])
        attn = None
        for hd in range(head_num):
            # per-head weight slabs -> leading-axis indexing, no lane shuffles
            # (Wq / bq were pre-scaled by 1/sqrt(dim_head) on the host)
            qh = jnp.dot(xn, wqkv_ref[l, 0, hd], preferred_element_type=jnp.float32) + bqkv_ref[l, 0, hd]
            kh = jnp.dot(xn, wqkv_ref[l, 1, hd], preferred_element_type=jnp.float32) + bqkv_ref[l, 1, hd]
            vh = jnp.dot(xn, wqkv_ref[l, 2, hd], preferred_element_type=jnp.float32) + bqkv_ref[l, 2, hd]
            s = jnp.dot(qh, kh.T, preferred_element_type=jnp.float32) + bias    # (B*S, B*S)
            s = s - jnp.max(s, axis=-1, keepdims=True)
            e = jnp.exp(s)
            p = e * pl.reciprocal(jnp.sum(e, axis=-1, keepdims=True), approx=True)
            ho = jnp.dot(p, vh, preferred_element_type=jnp.float32)             # (B*S, DH)
            contrib = jnp.dot(ho, wo_ref[l, hd], preferred_element_type=jnp.float32)  # (B*S, D)
            attn = contrib if attn is None else attn + contrib
        h = h + attn + bo_ref[l]   # residual (+ output-projection bias, added once)

        # ---- pre-norm feed-forward (GELU) + residual ----
        xn2 = _layernorm(h, lng_ref[l, 1], lnb_ref[l, 1])
        f = jnp.dot(xn2, w1_ref[l], preferred_element_type=jnp.float32) + b1_ref[l]
        f = _gelu(f)
        h = h + jnp.dot(f, w2_ref[l], preferred_element_type=jnp.float32) + b2_ref[l]

    o_ref[...] = h                 # single HBM write for the whole network


# ----------------------------- wrapper -----------------------------
def transformer_encoder(x, packed):
    """x: (B, S, D) float32 -> (B, S, D) float32 (TransformerEncoder.forward)."""
    xf = x.reshape(BS, D)          # free reshape outside the kernel
    # additive block-diagonal bias: tokens only attend within their own batch element
    bid = jnp.arange(BS, dtype=jnp.int32) // S
    attn_bias = jnp.where(bid[:, None] == bid[None, :], 0.0, NEG).astype(jnp.float32)

    args = (xf, attn_bias) + tuple(packed)
    full = lambda a: pl.BlockSpec(a.shape, lambda i: (0,) * a.ndim)   # whole array resident in VMEM

    out = pl.pallas_call(
        functools.partial(transformer_kernel, depth=DEPTH, head_num=H),
        out_shape=jax.ShapeDtypeStruct((BS, D), jnp.float32),
        grid=(1,),                 # whole model + whole batch in one program
        in_specs=[full(a) for a in args],
        out_specs=pl.BlockSpec((BS, D), lambda i: (0, 0)),
        compiler_params=pltpu.CompilerParams(dimension_semantics=("arbitrary",)),
    )(*args)
    return out.reshape(B, S, D)


# ----------------------------- parameter init & packing -----------------------------
def init_layer_params(key):
    """Parameters in the module's natural layout (one encoder layer)."""
    ks = jax.random.split(key, 6)
    hdim = H * DH
    sc = 0.02
    return dict(
        ln1_g=jnp.ones((D,), jnp.float32), ln1_b=jnp.zeros((D,), jnp.float32),
        wq=sc * jax.random.normal(ks[0], (D, hdim), jnp.float32), bq=jnp.zeros((hdim,), jnp.float32),
        wk=sc * jax.random.normal(ks[1], (D, hdim), jnp.float32), bk=jnp.zeros((hdim,), jnp.float32),
        wv=sc * jax.random.normal(ks[2], (D, hdim), jnp.float32), bv=jnp.zeros((hdim,), jnp.float32),
        wo=sc * jax.random.normal(ks[3], (hdim, D), jnp.float32), bo=jnp.zeros((D,), jnp.float32),
        ln2_g=jnp.ones((D,), jnp.float32), ln2_b=jnp.zeros((D,), jnp.float32),
        w1=sc * jax.random.normal(ks[4], (D, DFF), jnp.float32), b1=jnp.zeros((DFF,), jnp.float32),
        w2=sc * jax.random.normal(ks[5], (DFF, D), jnp.float32), b2=jnp.zeros((D,), jnp.float32),
    )


def pack_params(layer_params):
    """Stack per-layer module weights into a few DEPTH-leading, per-head-laid-out slabs."""
    scale = 1.0 / math.sqrt(DH)
    to_heads_w = lambda w: jnp.transpose(w.reshape(D, H, DH), (1, 0, 2))  # (D, H*DH) -> (H, D, DH)
    to_heads_b = lambda b: b.reshape(H, 1, DH)                            # (H*DH,)   -> (H, 1, DH)
    lng, lnb, wqkv, bqkv, wo, bo, w1, b1, w2, b2 = ([] for _ in range(10))
    for p in layer_params:
        lng.append(jnp.stack([p["ln1_g"].reshape(1, D), p["ln2_g"].reshape(1, D)]))
        lnb.append(jnp.stack([p["ln1_b"].reshape(1, D), p["ln2_b"].reshape(1, D)]))
        wqkv.append(jnp.stack([to_heads_w(p["wq"]) * scale,   # fold 1/sqrt(dim_head) into Q proj
                               to_heads_w(p["wk"]),
                               to_heads_w(p["wv"])]))
        bqkv.append(jnp.stack([to_heads_b(p["bq"]) * scale,
                               to_heads_b(p["bk"]),
                               to_heads_b(p["bv"])]))
        wo.append(p["wo"].reshape(H, DH, D))
        bo.append(p["bo"].reshape(1, D))
        w1.append(p["w1"])
        b1.append(p["b1"].reshape(1, DFF))
        w2.append(p["w2"])
        b2.append(p["b2"].reshape(1, D))
    stk = lambda xs: jnp.stack(xs, axis=0)
    return (stk(lng), stk(lnb), stk(wqkv), stk(bqkv), stk(wo), stk(bo),
            stk(w1), stk(b1), stk(w2), stk(b2))


# TODO(synk): dropout (training mode, p>0) and non-trivial mask.Maker attention masks are omitted;
# inference with NoneMaker is assumed (dropout is an identity there).

if __name__ == "__main__":
    key = jax.random.PRNGKey(0)
    kx, *kls = jax.random.split(key, 1 + DEPTH)

    x = jax.random.normal(kx, (B, S, D), jnp.float32)
    packed = pack_params([init_layer_params(k) for k in kls])

    out = transformer_encoder(x, packed)
    out = jax.block_until_ready(out)
    assert out.shape == (B, S, D) and out.dtype == jnp.float32
    print("KERNEL_OK")
</pallas_src>

<mosaic_0001>
module attributes {stable_mosaic.version = 11 : i64} {
  func.func @transformer_kernel(%arg0: i32, %arg1: memref<16x32xf32, #tpu.memory_space<vmem>>, %arg2: memref<16x16xf32, #tpu.memory_space<vmem>>, %arg3: memref<2x2x1x32xf32, #tpu.memory_space<vmem>>, %arg4: memref<2x2x1x32xf32, #tpu.memory_space<vmem>>, %arg5: memref<2x3x4x32x16xf32, #tpu.memory_space<vmem>>, %arg6: memref<2x3x4x1x16xf32, #tpu.memory_space<vmem>>, %arg7: memref<2x4x16x32xf32, #tpu.memory_space<vmem>>, %arg8: memref<2x1x32xf32, #tpu.memory_space<vmem>>, %arg9: memref<2x32x64xf32, #tpu.memory_space<vmem>>, %arg10: memref<2x1x64xf32, #tpu.memory_space<vmem>>, %arg11: memref<2x64x32xf32, #tpu.memory_space<vmem>>, %arg12: memref<2x1x32xf32, #tpu.memory_space<vmem>>, %arg13: memref<16x32xf32, #tpu.memory_space<vmem>>) attributes {dimension_semantics = [#tpu.dimension_semantics<arbitrary>], iteration_bounds = array<i64: 1>, scalar_prefetch = 0 : i64, scratch_operands = 0 : i64, tpu.core_type = #tpu.core_type<tc>, window_params = [{pipeline_mode = #tpu.pipeline_mode<synchronous>, transform_indices = @transform_0, window_bounds = array<i64: 16, 32>}, {pipeline_mode = #tpu.pipeline_mode<synchronous>, transform_indices = @transform_1, window_bounds = array<i64: 16, 16>}, {pipeline_mode = #tpu.pipeline_mode<synchronous>, transform_indices = @transform_2, window_bounds = array<i64: 2, 2, 1, 32>}, {pipeline_mode = #tpu.pipeline_mode<synchronous>, transform_indices = @transform_3, window_bounds = array<i64: 2, 2, 1, 32>}, {pipeline_mode = #tpu.pipeline_mode<synchronous>, transform_indices = @transform_4, window_bounds = array<i64: 2, 3, 4, 32, 16>}, {pipeline_mode = #tpu.pipeline_mode<synchronous>, transform_indices = @transform_5, window_bounds = array<i64: 2, 3, 4, 1, 16>}, {pipeline_mode = #tpu.pipeline_mode<synchronous>, transform_indices = @transform_6, window_bounds = array<i64: 2, 4, 16, 32>}, {pipeline_mode = #tpu.pipeline_mode<synchronous>, transform_indices = @transform_7, window_bounds = array<i64: 2, 1, 32>}, {pipeline_mode = #tpu.pipeline_mode<synchronous>, transform_indices = @transform_8, window_bounds = array<i64: 2, 32, 64>}, {pipeline_mode = #tpu.pipeline_mode<synchronous>, transform_indices = @transform_9, window_bounds = array<i64: 2, 1, 64>}, {pipeline_mode = #tpu.pipeline_mode<synchronous>, transform_indices = @transform_10, window_bounds = array<i64: 2, 64, 32>}, {pipeline_mode = #tpu.pipeline_mode<synchronous>, transform_indices = @transform_11, window_bounds = array<i64: 2, 1, 32>}, {pipeline_mode = #tpu.pipeline_mode<synchronous>, transform_indices = @transform_12, window_bounds = array<i64: 16, 32>}]} {
    %c0 = arith.constant 0 : index
    %c0_0 = arith.constant 0 : index
    %0 = vector.load %arg1[%c0, %c0_0] : memref<16x32xf32, #tpu.memory_space<vmem>>, vector<16x32xf32>
    %c0_1 = arith.constant 0 : index
    %c0_2 = arith.constant 0 : index
    %1 = vector.load %arg2[%c0_1, %c0_2] : memref<16x16xf32, #tpu.memory_space<vmem>>, vector<16x16xf32>
    %c0_3 = arith.constant 0 : index
    %c0_4 = arith.constant 0 : index
    %c0_5 = arith.constant 0 : index
    %c0_6 = arith.constant 0 : index
    %2 = vector.load %arg3[%c0_3, %c0_4, %c0_5, %c0_6] : memref<2x2x1x32xf32, #tpu.memory_space<vmem>>, vector<1x1x1x32xf32>
    %3 = vector.shape_cast %2 : vector<1x1x1x32xf32> to vector<1x32xf32>
    %c0_7 = arith.constant 0 : index
    %c0_8 = arith.constant 0 : index
    %c0_9 = arith.constant 0 : index
    %c0_10 = arith.constant 0 : index
    %4 = vector.load %arg4[%c0_7, %c0_8, %c0_9, %c0_10] : memref<2x2x1x32xf32, #tpu.memory_space<vmem>>, vector<1x1x1x32xf32>
    %5 = vector.shape_cast %4 : vector<1x1x1x32xf32> to vector<1x32xf32>
    %cst = arith.constant dense<0.000000e+00> : vector<16xf32>
    %6 = vector.multi_reduction <add>, %0, %cst [1] : vector<16x32xf32> to vector<16xf32>
    %7 = vector.shape_cast %6 : vector<16xf32> to vector<16x1xf32>
    %cst_11 = arith.constant 3.200000e+01 : f32
    %8 = vector.broadcast %cst_11 : f32 to vector<16x1xf32>
    %9 = arith.divf %7, %8 : vector<16x1xf32>
    %10 = vector.broadcast %9 : vector<16x1xf32> to vector<16x32xf32>
    %11 = arith.subf %0, %10 : vector<16x32xf32>
    %12 = arith.mulf %11, %11 : vector<16x32xf32>
    %cst_12 = arith.constant dense<0.000000e+00> : vector<16xf32>
    %13 = vector.multi_reduction <add>, %12, %cst_12 [1] : vector<16x32xf32> to vector<16xf32>
    %14 = vector.shape_cast %13 : vector<16xf32> to vector<16x1xf32>
    %cst_13 = arith.constant 3.200000e+01 : f32
    %15 = vector.broadcast %cst_13 : f32 to vector<16x1xf32>
    %16 = arith.divf %14, %15 : vector<16x1xf32>
    %17 = vector.broadcast %9 : vector<16x1xf32> to vector<16x32xf32>
    %18 = arith.subf %0, %17 : vector<16x32xf32>
    %cst_14 = arith.constant 9.99999974E-6 : f32
    %19 = vector.broadcast %cst_14 : f32 to vector<16x1xf32>
    %20 = arith.addf %16, %19 : vector<16x1xf32>
    %21 = math.rsqrt %20 : vector<16x1xf32>
    %22 = vector.broadcast %21 : vector<16x1xf32> to vector<16x32xf32>
    %23 = arith.mulf %18, %22 : vector<16x32xf32>
    %24 = vector.broadcast %3 : vector<1x32xf32> to vector<16x32xf32>
    %25 = arith.mulf %23, %24 : vector<16x32xf32>
    %26 = vector.broadcast %5 : vector<1x32xf32> to vector<16x32xf32>
    %27 = arith.addf %25, %26 : vector<16x32xf32>
    %c0_15 = arith.constant 0 : index
    %c0_16 = arith.constant 0 : index
    %c0_17 = arith.constant 0 : index
    %c0_18 = arith.constant 0 : index
    %c0_19 = arith.constant 0 : index
    %28 = vector.load %arg5[%c0_15, %c0_16, %c0_17, %c0_18, %c0_19] : memref<2x3x4x32x16xf32, #tpu.memory_space<vmem>>, vector<1x1x1x32x16xf32>
    %29 = vector.shape_cast %28 : vector<1x1x1x32x16xf32> to vector<32x16xf32>
    %cst_20 = arith.constant dense<0.000000e+00> : vector<16x16xf32>
    %30 = tpu.matmul %27, %29, %cst_20 {dimension_numbers = #tpu.dot_dimension_numbers<[1], [0], [0], [1], [0, 0, 1, 1], [], []>} : vector<16x32xf32>, vector<32x16xf32>, vector<16x16xf32> -> vector<16x16xf32>
    %c0_21 = arith.constant 0 : index
    %c0_22 = arith.constant 0 : index
    %c0_23 = arith.constant 0 : index
    %c0_24 = arith.constant 0 : index
    %c0_25 = arith.constant 0 : index
    %31 = vector.load %arg6[%c0_21, %c0_22, %c0_23, %c0_24, %c0_25] : memref<2x3x4x1x16xf32, #tpu.memory_space<vmem>>, vector<1x1x1x1x16xf32>
    %32 = vector.shape_cast %31 : vector<1x1x1x1x16xf32> to vector<1x16xf32>
    %33 = vector.broadcast %32 : vector<1x16xf32> to vector<16x16xf32>
    %34 = arith.addf %30, %33 : vector<16x16xf32>
    %c0_26 = arith.constant 0 : index
    %c1 = arith.constant 1 : index
    %c0_27 = arith.constant 0 : index
    %c0_28 = arith.constant 0 : index
    %c0_29 = arith.constant 0 : index
    %35 = vector.load %arg5[%c0_26, %c1, %c0_27, %c0_28, %c0_29] : memref<2x3x4x32x16xf32, #tpu.memory_space<vmem>>, vector<1x1x1x32x16xf32>
    %36 = vector.shape_cast %35 : vector<1x1x1x32x16xf32> to vector<32x16xf32>
    %cst_30 = arith.constant dense<0.000000e+00> : vector<16x16xf32>
    %37 = tpu.matmul %27, %36, %cst_30 {dimension_numbers = #tpu.dot_dimension_numbers<[1], [0], [0], [1], [0, 0, 1, 1], [], []>} : vector<16x32xf32>, vector<32x16xf32>, vector<16x16xf32> -> vector<16x16xf32>
    %c0_31 = arith.constant 0 : index
    %c1_32 = arith.constant 1 : index
    %c0_33 = arith.constant 0 : index
    %c0_34 = arith.constant 0 : index
    %c0_35 = arith.constant 0 : index
    %38 = vector.load %arg6[%c0_31, %c1_32, %c0_33, %c0_34, %c0_35] : memref<2x3x4x1x16xf32, #tpu.memory_space<vmem>>, vector<1x1x1x1x16xf32>
    %39 = vector.shape_cast %38 : vector<1x1x1x1x16xf32> to vector<1x16xf32>
    %40 = vector.broadcast %39 : vector<1x16xf32> to vector<16x16xf32>
    %41 = arith.addf %37, %40 : vector<16x16xf32>
    %c0_36 = arith.constant 0 : index
    %c2 = arith.constant 2 : index
    %c0_37 = arith.constant 0 : index
    %c0_38 = arith.constant 0 : index
    %c0_39 = arith.constant 0 : index
    %42 = vector.load %arg5[%c0_36, %c2, %c0_37, %c0_38, %c0_39] : memref<2x3x4x32x16xf32, #tpu.memory_space<vmem>>, vector<1x1x1x32x16xf32>
    %43 = vector.shape_cast %42 : vector<1x1x1x32x16xf32> to vector<32x16xf32>
    %cst_40 = arith.constant dense<0.000000e+00> : vector<16x16xf32>
    %44 = tpu.matmul %27, %43, %cst_40 {dimension_numbers = #tpu.dot_dimension_numbers<[1], [0], [0], [1], [0, 0, 1, 1], [], []>} : vector<16x32xf32>, vector<32x16xf32>, vector<16x16xf32> -> vector<16x16xf32>
    %c0_41 = arith.constant 0 : index
    %c2_42 = arith.constant 2 : index
    %c0_43 = arith.constant 0 : index
    %c0_44 = arith.constant 0 : index
    %c0_45 = arith.constant 0 : index
    %45 = vector.load %arg6[%c0_41, %c2_42, %c0_43, %c0_44, %c0_45] : memref<2x3x4x1x16xf32, #tpu.memory_space<vmem>>, vector<1x1x1x1x16xf32>
    %46 = vector.shape_cast %45 : vector<1x1x1x1x16xf32> to vector<1x16xf32>
    %47 = vector.broadcast %46 : vector<1x16xf32> to vector<16x16xf32>
    %48 = arith.addf %44, %47 : vector<16x16xf32>
    %49 = tpu.transpose %41, [1, 0] : vector<16x16xf32> -> vector<16x16xf32>
    %cst_46 = arith.constant dense<0.000000e+00> : vector<16x16xf32>
    %50 = tpu.matmul %34, %49, %cst_46 {dimension_numbers = #tpu.dot_dimension_numbers<[1], [0], [0], [1], [0, 0, 1, 1], [], []>} : vector<16x16xf32>, vector<16x16xf32>, vector<16x16xf32> -> vector<16x16xf32>
    %51 = arith.addf %50, %1 : vector<16x16xf32>
    %cst_47 = arith.constant dense<0xFF800000> : vector<16xf32>
    %52 = vector.multi_reduction <maximumf>, %51, %cst_47 [1] : vector<16x16xf32> to vector<16xf32>
    %53 = vector.shape_cast %52 : vector<16xf32> to vector<16x1xf32>
    %54 = vector.broadcast %53 : vector<16x1xf32> to vector<16x16xf32>
    %55 = arith.subf %51, %54 : vector<16x16xf32>
    %56 = math.exp %55 : vector<16x16xf32>
    %cst_48 = arith.constant dense<0.000000e+00> : vector<16xf32>
    %57 = vector.multi_reduction <add>, %56, %cst_48 [1] : vector<16x16xf32> to vector<16xf32>
    %58 = vector.shape_cast %57 : vector<16xf32> to vector<16x1xf32>
    %59 = tpu.reciprocal %58 {approx = true} : vector<16x1xf32> -> vector<16x1xf32>
    %60 = vector.broadcast %59 : vector<16x1xf32> to vector<16x16xf32>
    %61 = arith.mulf %56, %60 : vector<16x16xf32>
    %cst_49 = arith.constant dense<0.000000e+00> : vector<16x16xf32>
    %62 = tpu.matmul %61, %48, %cst_49 {dimension_numbers = #tpu.dot_dimension_numbers<[1], [0], [0], [1], [0, 0, 1, 1], [], []>} : vector<16x16xf32>, vector<16x16xf32>, vector<16x16xf32> -> vector<16x16xf32>
    %c0_50 = arith.constant 0 : index
    %c0_51 = arith.constant 0 : index
    %c0_52 = arith.constant 0 : index
    %c0_53 = arith.constant 0 : index
    %63 = vector.load %arg7[%c0_50, %c0_51, %c0_52, %c0_53] : memref<2x4x16x32xf32, #tpu.memory_space<vmem>>, vector<1x1x16x32xf32>
    %64 = vector.shape_cast %63 : vector<1x1x16x32xf32> to vector<16x32xf32>
    %cst_54 = arith.constant dense<0.000000e+00> : vector<16x32xf32>
    %65 = tpu.matmul %62, %64, %cst_54 {dimension_numbers = #tpu.dot_dimension_numbers<[1], [0], [0], [1], [0, 0, 1, 1], [], []>} : vector<16x16xf32>, vector<16x32xf32>, vector<16x32xf32> -> vector<16x32xf32>
    %c0_55 = arith.constant 0 : index
    %c0_56 = arith.constant 0 : index
    %c1_57 = arith.constant 1 : index
    %c0_58 = arith.constant 0 : index
    %c0_59 = arith.constant 0 : index
    %66 = vector.load %arg5[%c0_55, %c0_56, %c1_57, %c0_58, %c0_59] : memref<2x3x4x32x16xf32, #tpu.memory_space<vmem>>, vector<1x1x1x32x16xf32>
    %67 = vector.shape_cast %66 : vector<1x1x1x32x16xf32> to vector<32x16xf32>
    %cst_60 = arith.constant dense<0.000000e+00> : vector<16x16xf32>
    %68 = tpu.matmul %27, %67, %cst_60 {dimension_numbers = #tpu.dot_dimension_numbers<[1], [0], [0], [1], [0, 0, 1, 1], [], []>} : vector<16x32xf32>, vector<32x16xf32>, vector<16x16xf32> -> vector<16x16xf32>
    %c0_61 = arith.constant 0 : index
    %c0_62 = arith.constant 0 : index
    %c1_63 = arith.constant 1 : index
    %c0_64 = arith.constant 0 : index
    %c0_65 = arith.constant 0 : index
    %69 = vector.load %arg6[%c0_61, %c0_62, %c1_63, %c0_64, %c0_65] : memref<2x3x4x1x16xf32, #tpu.memory_space<vmem>>, vector<1x1x1x1x16xf32>
    %70 = vector.shape_cast %69 : vector<1x1x1x1x16xf32> to vector<1x16xf32>
    %71 = vector.broadcast %70 : vector<1x16xf32> to vector<16x16xf32>
    %72 = arith.addf %68, %71 : vector<16x16xf32>
    %c0_66 = arith.constant 0 : index
    %c1_67 = arith.constant 1 : index
    %c1_68 = arith.constant 1 : index
    %c0_69 = arith.constant 0 : index
    %c0_70 = arith.constant 0 : index
    %73 = vector.load %arg5[%c0_66, %c1_67, %c1_68, %c0_69, %c0_70] : memref<2x3x4x32x16xf32, #tpu.memory_space<vmem>>, vector<1x1x1x32x16xf32>
    %74 = vector.shape_cast %73 : vector<1x1x1x32x16xf32> to vector<32x16xf32>
    %cst_71 = arith.constant dense<0.000000e+00> : vector<16x16xf32>
    %75 = tpu.matmul %27, %74, %cst_71 {dimension_numbers = #tpu.dot_dimension_numbers<[1], [0], [0], [1], [0, 0, 1, 1], [], []>} : vector<16x32xf32>, vector<32x16xf32>, vector<16x16xf32> -> vector<16x16xf32>
    %c0_72 = arith.constant 0 : index
    %c1_73 = arith.constant 1 : index
    %c1_74 = arith.constant 1 : index
    %c0_75 = arith.constant 0 : index
    %c0_76 = arith.constant 0 : index
    %76 = vector.load %arg6[%c0_72, %c1_73, %c1_74, %c0_75, %c0_76] : memref<2x3x4x1x16xf32, #tpu.memory_space<vmem>>, vector<1x1x1x1x16xf32>
    %77 = vector.shape_cast %76 : vector<1x1x1x1x16xf32> to vector<1x16xf32>
    %78 = vector.broadcast %77 : vector<1x16xf32> to vector<16x16xf32>
    %79 = arith.addf %75, %78 : vector<16x16xf32>
    %c0_77 = arith.constant 0 : index
    %c2_78 = arith.constant 2 : index
    %c1_79 = arith.constant 1 : index
    %c0_80 = arith.constant 0 : index
    %c0_81 = arith.constant 0 : index
    %80 = vector.load %arg5[%c0_77, %c2_78, %c1_79, %c0_80, %c0_81] : memref<2x3x4x32x16xf32, #tpu.memory_space<vmem>>, vector<1x1x1x32x16xf32>
    %81 = vector.shape_cast %80 : vector<1x1x1x32x16xf32> to vector<32x16xf32>
    %cst_82 = arith.constant dense<0.000000e+00> : vector<16x16xf32>
    %82 = tpu.matmul %27, %81, %cst_82 {dimension_numbers = #tpu.dot_dimension_numbers<[1], [0], [0], [1], [0, 0, 1, 1], [], []>} : vector<16x32xf32>, vector<32x16xf32>, vector<16x16xf32> -> vector<16x16xf32>
    %c0_83 = arith.constant 0 : index
    %c2_84 = arith.constant 2 : index
    %c1_85 = arith.constant 1 : index
    %c0_86 = arith.constant 0 : index
    %c0_87 = arith.constant 0 : index
    %83 = vector.load %arg6[%c0_83, %c2_84, %c1_85, %c0_86, %c0_87] : memref<2x3x4x1x16xf32, #tpu.memory_space<vmem>>, vector<1x1x1x1x16xf32>
    %84 = vector.shape_cast %83 : vector<1x1x1x1x16xf32> to vector<1x16xf32>
    %85 = vector.broadcast %84 : vector<1x16xf32> to vector<16x16xf32>
    %86 = arith.addf %82, %85 : vector<16x16xf32>
    %87 = tpu.transpose %79, [1, 0] : vector<16x16xf32> -> vector<16x16xf32>
    %cst_88 = arith.constant dense<0.000000e+00> : vector<16x16xf32>
    %88 = tpu.matmul %72, %87, %cst_88 {dimension_numbers = #tpu.dot_dimension_numbers<[1], [0], [0], [1], [0, 0, 1, 1], [], []>} : vector<16x16xf32>, vector<16x16xf32>, vector<16x16xf32> -> vector<16x16xf32>
    %89 = arith.addf %88, %1 : vector<16x16xf32>
    %cst_89 = arith.constant dense<0xFF800000> : vector<16xf32>
    %90 = vector.multi_reduction <maximumf>, %89, %cst_89 [1] : vector<16x16xf32> to vector<16xf32>
    %91 = vector.shape_cast %90 : vector<16xf32> to vector<16x1xf32>
    %92 = vector.broadcast %91 : vector<16x1xf32> to vector<16x16xf32>
    %93 = arith.subf %89, %92 : vector<16x16xf32>
    %94 = math.exp %93 : vector<16x16xf32>
    %cst_90 = arith.constant dense<0.000000e+00> : vector<16xf32>
    %95 = vector.multi_reduction <add>, %94, %cst_90 [1] : vector<16x16xf32> to vector<16xf32>
    %96 = vector.shape_cast %95 : vector<16xf32> to vector<16x1xf32>
    %97 = tpu.reciprocal %96 {approx = true} : vector<16x1xf32> -> vector<16x1xf32>
    %98 = vector.broadcast %97 : vector<16x1xf32> to vector<16x16xf32>
    %99 = arith.mulf %94, %98 : vector<16x16xf32>
    %cst_91 = arith.constant dense<0.000000e+00> : vector<16x16xf32>
    %100 = tpu.matmul %99, %86, %cst_91 {dimension_numbers = #tpu.dot_dimension_numbers<[1], [0], [0], [1], [0, 0, 1, 1], [], []>} : vector<16x16xf32>, vector<16x16xf32>, vector<16x16xf32> -> vector<16x16xf32>
    %c0_92 = arith.constant 0 : index
    %c1_93 = arith.constant 1 : index
    %c0_94 = arith.constant 0 : index
    %c0_95 = arith.constant 0 : index
    %101 = vector.load %arg7[%c0_92, %c1_93, %c0_94, %c0_95] : memref<2x4x16x32xf32, #tpu.memory_space<vmem>>, vector<1x1x16x32xf32>
    %102 = vector.shape_cast %101 : vector<1x1x16x32xf32> to vector<16x32xf32>
    %cst_96 = arith.constant dense<0.000000e+00> : vector<16x32xf32>
    %103 = tpu.matmul %100, %102, %cst_96 {dimension_numbers = #tpu.dot_dimension_numbers<[1], [0], [0], [1], [0, 0, 1, 1], [], []>} : vector<16x16xf32>, vector<16x32xf32>, vector<16x32xf32> -> vector<16x32xf32>
    %104 = arith.addf %65, %103 : vector<16x32xf32>
    %c0_97 = arith.constant 0 : index
    %c0_98 = arith.constant 0 : index
    %c2_99 = arith.constant 2 : index
    %c0_100 = arith.constant 0 : index
    %c0_101 = arith.constant 0 : index
    %105 = vector.load %arg5[%c0_97, %c0_98, %c2_99, %c0_100, %c0_101] : memref<2x3x4x32x16xf32, #tpu.memory_space<vmem>>, vector<1x1x1x32x16xf32>
    %106 = vector.shape_cast %105 : vector<1x1x1x32x16xf32> to vector<32x16xf32>
    %cst_102 = arith.constant dense<0.000000e+00> : vector<16x16xf32>
    %107 = tpu.matmul %27, %106, %cst_102 {dimension_numbers = #tpu.dot_dimension_numbers<[1], [0], [0], [1], [0, 0, 1, 1], [], []>} : vector<16x32xf32>, vector<32x16xf32>, vector<16x16xf32> -> vector<16x16xf32>
    %c0_103 = arith.constant 0 : index
    %c0_104 = arith.constant 0 : index
    %c2_105 = arith.constant 2 : index
    %c0_106 = arith.constant 0 : index
    %c0_107 = arith.constant 0 : index
    %108 = vector.load %arg6[%c0_103, %c0_104, %c2_105, %c0_106, %c0_107] : memref<2x3x4x1x16xf32, #tpu.memory_space<vmem>>, vector<1x1x1x1x16xf32>
    %109 = vector.shape_cast %108 : vector<1x1x1x1x16xf32> to vector<1x16xf32>
    %110 = vector.broadcast %109 : vector<1x16xf32> to vector<16x16xf32>
    %111 = arith.addf %107, %110 : vector<16x16xf32>
    %c0_108 = arith.constant 0 : index
    %c1_109 = arith.constant 1 : index
    %c2_110 = arith.constant 2 : index
    %c0_111 = arith.constant 0 : index
    %c0_112 = arith.constant 0 : index
    %112 = vector.load %arg5[%c0_108, %c1_109, %c2_110, %c0_111, %c0_112] : memref<2x3x4x32x16xf32, #tpu.memory_space<vmem>>, vector<1x1x1x32x16xf32>
    %113 = vector.shape_cast %112 : vector<1x1x1x32x16xf32> to vector<32x16xf32>
    %cst_113 = arith.constant dense<0.000000e+00> : vector<16x16xf32>
    %114 = tpu.matmul %27, %113, %cst_113 {dimension_numbers = #tpu.dot_dimension_numbers<[1], [0], [0], [1], [0, 0, 1, 1], [], []>} : vector<16x32xf32>, vector<32x16xf32>, vector<16x16xf32> -> vector<16x16xf32>
    %c0_114 = arith.constant 0 : index
    %c1_115 = arith.constant 1 : index
    %c2_116 = arith.constant 2 : index
    %c0_117 = arith.constant 0 : index
    %c0_118 = arith.constant 0 : index
    %115 = vector.load %arg6[%c0_114, %c1_115, %c2_116, %c0_117, %c0_118] : memref<2x3x4x1x16xf32, #tpu.memory_space<vmem>>, vector<1x1x1x1x16xf32>
    %116 = vector.shape_cast %115 : vector<1x1x1x1x16xf32> to vector<1x16xf32>
    %117 = vector.broadcast %116 : vector<1x16xf32> to vector<16x16xf32>
    %118 = arith.addf %114, %117 : vector<16x16xf32>
    %c0_119 = arith.constant 0 : index
    %c2_120 = arith.constant 2 : index
    %c2_121 = arith.constant 2 : index
    %c0_122 = arith.constant 0 : index
    %c0_123 = arith.constant 0 : index
    %119 = vector.load %arg5[%c0_119, %c2_120, %c2_121, %c0_122, %c0_123] : memref<2x3x4x32x16xf32, #tpu.memory_space<vmem>>, vector<1x1x1x32x16xf32>
    %120 = vector.shape_cast %119 : vector<1x1x1x32x16xf32> to vector<32x16xf32>
    %cst_124 = arith.constant dense<0.000000e+00> : vector<16x16xf32>
    %121 = tpu.matmul %27, %120, %cst_124 {dimension_numbers = #tpu.dot_dimension_numbers<[1], [0], [0], [1], [0, 0, 1, 1], [], []>} : vector<16x32xf32>, vector<32x16xf32>, vector<16x16xf32> -> vector<16x16xf32>
    %c0_125 = arith.constant 0 : index
    %c2_126 = arith.constant 2 : index
    %c2_127 = arith.constant 2 : index
    %c0_128 = arith.constant 0 : index
    %c0_129 = arith.constant 0 : index
    %122 = vector.load %arg6[%c0_125, %c2_126, %c2_127, %c0_128, %c0_129] : memref<2x3x4x1x16xf32, #tpu.memory_space<vmem>>, vector<1x1x1x1x16xf32>
    %123 = vector.shape_cast %122 : vector<1x1x1x1x16xf32> to vector<1x16xf32>
    %124 = vector.broadcast %123 : vector<1x16xf32> to vector<16x16xf32>
    %125 = arith.addf %121, %124 : vector<16x16xf32>
    %126 = tpu.transpose %118, [1, 0] : vector<16x16xf32> -> vector<16x16xf32>
    %cst_130 = arith.constant dense<0.000000e+00> : vector<16x16xf32>
    %127 = tpu.matmul %111, %126, %cst_130 {dimension_numbers = #tpu.dot_dimension_numbers<[1], [0], [0], [1], [0, 0, 1, 1], [], []>} : vector<16x16xf32>, vector<16x16xf32>, vector<16x16xf32> -> vector<16x16xf32>
    %128 = arith.addf %127, %1 : vector<16x16xf32>
    %cst_131 = arith.constant dense<0xFF800000> : vector<16xf32>
    %129 = vector.multi_reduction <maximumf>, %128, %cst_131 [1] : vector<16x16xf32> to vector<16xf32>
    %130 = vector.shape_cast %129 : vector<16xf32> to vector<16x1xf32>
    %131 = vector.broadcast %130 : vector<16x1xf32> to vector<16x16xf32>
    %132 = arith.subf %128, %131 : vector<16x16xf32>
    %133 = math.exp %132 : vector<16x16xf32>
    %cst_132 = arith.constant dense<0.000000e+00> : vector<16xf32>
    %134 = vector.multi_reduction <add>, %133, %cst_132 [1] : vector<16x16xf32> to vector<16xf32>
    %135 = vector.shape_cast %134 : vector<16xf32> to vector<16x1xf32>
    %136 = tpu.reciprocal %135 {approx = true} : vector<16x1xf32> -> vector<16x1xf32>
    %137 = vector.broadcast %136 : vector<16x1xf32> to vector<16x16xf32>
    %138 = arith.mulf %133, %137 : vector<16x16xf32>
    %cst_133 = arith.constant dense<0.000000e+00> : vector<16x16xf32>
    %139 = tpu.matmul %138, %125, %cst_133 {dimension_numbers = #tpu.dot_dimension_numbers<[1], [0], [0], [1], [0, 0, 1, 1], [], []>} : vector<16x16xf32>, vector<16x16xf32>, vector<16x16xf32> -> vector<16x16xf32>
    %c0_134 = arith.constant 0 : index
    %c2_135 = arith.constant 2 : index
    %c0_136 = arith.constant 0 : index
    %c0_137 = arith.constant 0 : index
    %140 = vector.load %arg7[%c0_134, %c2_135, %c0_136, %c0_137] : memref<2x4x16x32xf32, #tpu.memory_space<vmem>>, vector<1x1x16x32xf32>
    %141 = vector.shape_cast %140 : vector<1x1x16x32xf32> to vector<16x32xf32>
    %cst_138 = arith.constant dense<0.000000e+00> : vector<16x32xf32>
    %142 = tpu.matmul %139, %141, %cst_138 {dimension_numbers = #tpu.dot_dimension_numbers<[1], [0], [0], [1], [0, 0, 1, 1], [], []>} : vector<16x16xf32>, vector<16x32xf32>, vector<16x32xf32> -> vector<16x32xf32>
    %143 = arith.addf %104, %142 : vector<16x32xf32>
    %c0_139 = arith.constant 0 : index
    %c0_140 = arith.constant 0 : index
    %c3 = arith.constant 3 : index
    %c0_141 = arith.constant 0 : index
    %c0_142 = arith.constant 0 : index
    %144 = vector.load %arg5[%c0_139, %c0_140, %c3, %c0_141, %c0_142] : memref<2x3x4x32x16xf32, #tpu.memory_space<vmem>>, vector<1x1x1x32x16xf32>
    %145 = vector.shape_cast %144 : vector<1x1x1x32x16xf32> to vector<32x16xf32>
    %cst_143 = arith.constant dense<0.000000e+00> : vector<16x16xf32>
    %146 = tpu.matmul %27, %145, %cst_143 {dimension_numbers = #tpu.dot_dimension_numbers<[1], [0], [0], [1], [0, 0, 1, 1], [], []>} : vector<16x32xf32>, vector<32x16xf32>, vector<16x16xf32> -> vector<16x16xf32>
    %c0_144 = arith.constant 0 : index
    %c0_145 = arith.constant 0 : index
    %c3_146 = arith.constant 3 : index
    %c0_147 = arith.constant 0 : index
    %c0_148 = arith.constant 0 : index
    %147 = vector.load %arg6[%c0_144, %c0_145, %c3_146, %c0_147, %c0_148] : memref<2x3x4x1x16xf32, #tpu.memory_space<vmem>>, vector<1x1x1x1x16xf32>
    %148 = vector.shape_cast %147 : vector<1x1x1x1x16xf32> to vector<1x16xf32>
    %149 = vector.broadcast %148 : vector<1x16xf32> to vector<16x16xf32>
    %150 = arith.addf %146, %149 : vector<16x16xf32>
    %c0_149 = arith.constant 0 : index
    %c1_150 = arith.constant 1 : index
    %c3_151 = arith.constant 3 : index
    %c0_152 = arith.constant 0 : index
    %c0_153 = arith.constant 0 : index
    %151 = vector.load %arg5[%c0_149, %c1_150, %c3_151, %c0_152, %c0_153] : memref<2x3x4x32x16xf32, #tpu.memory_space<vmem>>, vector<1x1x1x32x16xf32>
    %152 = vector.shape_cast %151 : vector<1x1x1x32x16xf32> to vector<32x16xf32>
    %cst_154 = arith.constant dense<0.000000e+00> : vector<16x16xf32>
    %153 = tpu.matmul %27, %152, %cst_154 {dimension_numbers = #tpu.dot_dimension_numbers<[1], [0], [0], [1], [0, 0, 1, 1], [], []>} : vector<16x32xf32>, vector<32x16xf32>, vector<16x16xf32> -> vector<16x16xf32>
    %c0_155 = arith.constant 0 : index
    %c1_156 = arith.constant 1 : index
    %c3_157 = arith.constant 3 : index
    %c0_158 = arith.constant 0 : index
    %c0_159 = arith.constant 0 : index
    %154 = vector.load %arg6[%c0_155, %c1_156, %c3_157, %c0_158, %c0_159] : memref<2x3x4x1x16xf32, #tpu.memory_space<vmem>>, vector<1x1x1x1x16xf32>
    %155 = vector.shape_cast %154 : vector<1x1x1x1x16xf32> to vector<1x16xf32>
    %156 = vector.broadcast %155 : vector<1x16xf32> to vector<16x16xf32>
    %157 = arith.addf %153, %156 : vector<16x16xf32>
    %c0_160 = arith.constant 0 : index
    %c2_161 = arith.constant 2 : index
    %c3_162 = arith.constant 3 : index
    %c0_163 = arith.constant 0 : index
    %c0_164 = arith.constant 0 : index
    %158 = vector.load %arg5[%c0_160, %c2_161, %c3_162, %c0_163, %c0_164] : memref<2x3x4x32x16xf32, #tpu.memory_space<vmem>>, vector<1x1x1x32x16xf32>
    %159 = vector.shape_cast %158 : vector<1x1x1x32x16xf32> to vector<32x16xf32>
    %cst_165 = arith.constant dense<0.000000e+00> : vector<16x16xf32>
    %160 = tpu.matmul %27, %159, %cst_165 {dimension_numbers = #tpu.dot_dimension_numbers<[1], [0], [0], [1], [0, 0, 1, 1], [], []>} : vector<16x32xf32>, vector<32x16xf32>, vector<16x16xf32> -> vector<16x16xf32>
    %c0_166 = arith.constant 0 : index
    %c2_167 = arith.constant 2 : index
    %c3_168 = arith.constant 3 : index
    %c0_169 = arith.constant 0 : index
    %c0_170 = arith.constant 0 : index
    %161 = vector.load %arg6[%c0_166, %c2_167, %c3_168, %c0_169, %c0_170] : memref<2x3x4x1x16xf32, #tpu.memory_space<vmem>>, vector<1x1x1x1x16xf32>
    %162 = vector.shape_cast %161 : vector<1x1x1x1x16xf32> to vector<1x16xf32>
    %163 = vector.broadcast %162 : vector<1x16xf32> to vector<16x16xf32>
    %164 = arith.addf %160, %163 : vector<16x16xf32>
    %165 = tpu.transpose %157, [1, 0] : vector<16x16xf32> -> vector<16x16xf32>
    %cst_171 = arith.constant dense<0.000000e+00> : vector<16x16xf32>
    %166 = tpu.matmul %150, %165, %cst_171 {dimension_numbers = #tpu.dot_dimension_numbers<[1], [0], [0], [1], [0, 0, 1, 1], [], []>} : vector<16x16xf32>, vector<16x16xf32>, vector<16x16xf32> -> vector<16x16xf32>
    %167 = arith.addf %166, %1 : vector<16x16xf32>
    %cst_172 = arith.constant dense<0xFF800000> : vector<16xf32>
    %168 = vector.multi_reduction <maximumf>, %167, %cst_172 [1] : vector<16x16xf32> to vector<16xf32>
    %169 = vector.shape_cast %168 : vector<16xf32> to vector<16x1xf32>
    %170 = vector.broadcast %169 : vector<16x1xf32> to vector<16x16xf32>
    %171 = arith.subf %167, %170 : vector<16x16xf32>
    %172 = math.exp %171 : vector<16x16xf32>
    %cst_173 = arith.constant dense<0.000000e+00> : vector<16xf32>
    %173 = vector.multi_reduction <add>, %172, %cst_173 [1] : vector<16x16xf32> to vector<16xf32>
    %174 = vector.shape_cast %173 : vector<16xf32> to vector<16x1xf32>
    %175 = tpu.reciprocal %174 {approx = true} : vector<16x1xf32> -> vector<16x1xf32>
    %176 = vector.broadcast %175 : vector<16x1xf32> to vector<16x16xf32>
    %177 = arith.mulf %172, %176 : vector<16x16xf32>
    %cst_174 = arith.constant dense<0.000000e+00> : vector<16x16xf32>
    %178 = tpu.matmul %177, %164, %cst_174 {dimension_numbers = #tpu.dot_dimension_numbers<[1], [0], [0], [1], [0, 0, 1, 1], [], []>} : vector<16x16xf32>, vector<16x16xf32>, vector<16x16xf32> -> vector<16x16xf32>
    %c0_175 = arith.constant 0 : index
    %c3_176 = arith.constant 3 : index
    %c0_177 = arith.constant 0 : index
    %c0_178 = arith.constant 0 : index
    %179 = vector.load %arg7[%c0_175, %c3_176, %c0_177, %c0_178] : memref<2x4x16x32xf32, #tpu.memory_space<vmem>>, vector<1x1x16x32xf32>
    %180 = vector.shape_cast %179 : vector<1x1x16x32xf32> to vector<16x32xf32>
    %cst_179 = arith.constant dense<0.000000e+00> : vector<16x32xf32>
    %181 = tpu.matmul %178, %180, %cst_179 {dimension_numbers = #tpu.dot_dimension_numbers<[1], [0], [0], [1], [0, 0, 1, 1], [], []>} : vector<16x16xf32>, vector<16x32xf32>, vector<16x32xf32> -> vector<16x32xf32>
    %182 = arith.addf %143, %181 : vector<16x32xf32>
    %183 = arith.addf %0, %182 : vector<16x32xf32>
    %c0_180 = arith.constant 0 : index
    %c0_181 = arith.constant 0 : index
    %c0_182 = arith.constant 0 : index
    %184 = vector.load %arg8[%c0_180, %c0_181, %c0_182] : memref<2x1x32xf32, #tpu.memory_space<vmem>>, vector<1x1x32xf32>
    %185 = vector.shape_cast %184 : vector<1x1x32xf32> to vector<1x32xf32>
    %186 = vector.broadcast %185 : vector<1x32xf32> to vector<16x32xf32>
    %187 = arith.addf %183, %186 : vector<16x32xf32>
    %c0_183 = arith.constant 0 : index
    %c1_184 = arith.constant 1 : index
    %c0_185 = arith.constant 0 : index
    %c0_186 = arith.constant 0 : index
    %188 = vector.load %arg3[%c0_183, %c1_184, %c0_185, %c0_186] : memref<2x2x1x32xf32, #tpu.memory_space<vmem>>, vector<1x1x1x32xf32>
    %189 = vector.shape_cast %188 : vector<1x1x1x32xf32> to vector<1x32xf32>
    %c0_187 = arith.constant 0 : index
    %c1_188 = arith.constant 1 : index
    %c0_189 = arith.constant 0 : index
    %c0_190 = arith.constant 0 : index
    %190 = vector.load %arg4[%c0_187, %c1_188, %c0_189, %c0_190] : memref<2x2x1x32xf32, #tpu.memory_space<vmem>>, vector<1x1x1x32xf32>
    %191 = vector.shape_cast %190 : vector<1x1x1x32xf32> to vector<1x32xf32>
    %cst_191 = arith.constant dense<0.000000e+00> : vector<16xf32>
    %192 = vector.multi_reduction <add>, %187, %cst_191 [1] : vector<16x32xf32> to vector<16xf32>
    %193 = vector.shape_cast %192 : vector<16xf32> to vector<16x1xf32>
    %cst_192 = arith.constant 3.200000e+01 : f32
    %194 = vector.broadcast %cst_192 : f32 to vector<16x1xf32>
    %195 = arith.divf %193, %194 : vector<16x1xf32>
    %196 = vector.broadcast %195 : vector<16x1xf32> to vector<16x32xf32>
    %197 = arith.subf %187, %196 : vector<16x32xf32>
    %198 = arith.mulf %197, %197 : vector<16x32xf32>
    %cst_193 = arith.constant dense<0.000000e+00> : vector<16xf32>
    %199 = vector.multi_reduction <add>, %198, %cst_193 [1] : vector<16x32xf32> to vector<16xf32>
    %200 = vector.shape_cast %199 : vector<16xf32> to vector<16x1xf32>
    %cst_194 = arith.constant 3.200000e+01 : f32
    %201 = vector.broadcast %cst_194 : f32 to vector<16x1xf32>
    %202 = arith.divf %200, %201 : vector<16x1xf32>
    %203 = vector.broadcast %195 : vector<16x1xf32> to vector<16x32xf32>
    %204 = arith.subf %187, %203 : vector<16x32xf32>
    %cst_195 = arith.constant 9.99999974E-6 : f32
    %205 = vector.broadcast %cst_195 : f32 to vector<16x1xf32>
    %206 = arith.addf %202, %205 : vector<16x1xf32>
    %207 = math.rsqrt %206 : vector<16x1xf32>
    %208 = vector.broadcast %207 : vector<16x1xf32> to vector<16x32xf32>
    %209 = arith.mulf %204, %208 : vector<16x32xf32>
    %210 = vector.broadcast %189 : vector<1x32xf32> to vector<16x32xf32>
    %211 = arith.mulf %209, %210 : vector<16x32xf32>
    %212 = vector.broadcast %191 : vector<1x32xf32> to vector<16x32xf32>
    %213 = arith.addf %211, %212 : vector<16x32xf32>
    %c0_196 = arith.constant 0 : index
    %c0_197 = arith.constant 0 : index
    %c0_198 = arith.constant 0 : index
    %214 = vector.load %arg9[%c0_196, %c0_197, %c0_198] : memref<2x32x64xf32, #tpu.memory_space<vmem>>, vector<1x32x64xf32>
    %215 = vector.shape_cast %214 : vector<1x32x64xf32> to vector<32x64xf32>
    %cst_199 = arith.constant dense<0.000000e+00> : vector<16x64xf32>
    %216 = tpu.matmul %213, %215, %cst_199 {dimension_numbers = #tpu.dot_dimension_numbers<[1], [0], [0], [1], [0, 0, 1, 1], [], []>} : vector<16x32xf32>, vector<32x64xf32>, vector<16x64xf32> -> vector<16x64xf32>
    %c0_200 = arith.constant 0 : index
    %c0_201 = arith.constant 0 : index
    %c0_202 = arith.constant 0 : index
    %217 = vector.load %arg10[%c0_200, %c0_201, %c0_202] : memref<2x1x64xf32, #tpu.memory_space<vmem>>, vector<1x1x64xf32>
    %218 = vector.shape_cast %217 : vector<1x1x64xf32> to vector<1x64xf32>
    %219 = vector.broadcast %218 : vector<1x64xf32> to vector<16x64xf32>
    %220 = arith.addf %216, %219 : vector<16x64xf32>
    %cst_203 = arith.constant 5.000000e-01 : f32
    %221 = vector.broadcast %cst_203 : f32 to vector<16x64xf32>
    %222 = arith.mulf %221, %220 : vector<16x64xf32>
    %cst_204 = arith.constant 0.707106769 : f32
    %223 = vector.broadcast %cst_204 : f32 to vector<16x64xf32>
    %224 = arith.mulf %220, %223 : vector<16x64xf32>
    %225 = math.erf %224 : vector<16x64xf32>
    %cst_205 = arith.constant 1.000000e+00 : f32
    %226 = vector.broadcast %cst_205 : f32 to vector<16x64xf32>
    %227 = arith.addf %226, %225 : vector<16x64xf32>
    %228 = arith.mulf %222, %227 : vector<16x64xf32>
    %c0_206 = arith.constant 0 : index
    %c0_207 = arith.constant 0 : index
    %c0_208 = arith.constant 0 : index
    %229 = vector.load %arg11[%c0_206, %c0_207, %c0_208] : memref<2x64x32xf32, #tpu.memory_space<vmem>>, vector<1x64x32xf32>
    %230 = vector.shape_cast %229 : vector<1x64x32xf32> to vector<64x32xf32>
    %cst_209 = arith.constant dense<0.000000e+00> : vector<16x32xf32>
    %231 = tpu.matmul %228, %230, %cst_209 {dimension_numbers = #tpu.dot_dimension_numbers<[1], [0], [0], [1], [0, 0, 1, 1], [], []>} : vector<16x64xf32>, vector<64x32xf32>, vector<16x32xf32> -> vector<16x32xf32>
    %232 = arith.addf %187, %231 : vector<16x32xf32>
    %c0_210 = arith.constant 0 : index
    %c0_211 = arith.constant 0 : index
    %c0_212 = arith.constant 0 : index
    %233 = vector.load %arg12[%c0_210, %c0_211, %c0_212] : memref<2x1x32xf32, #tpu.memory_space<vmem>>, vector<1x1x32xf32>
    %234 = vector.shape_cast %233 : vector<1x1x32xf32> to vector<1x32xf32>
    %235 = vector.broadcast %234 : vector<1x32xf32> to vector<16x32xf32>
    %236 = arith.addf %232, %235 : vector<16x32xf32>
    %c1_213 = arith.constant 1 : index
    %c0_214 = arith.constant 0 : index
    %c0_215 = arith.constant 0 : index
    %c0_216 = arith.constant 0 : index
    %237 = vector.load %arg3[%c1_213, %c0_214, %c0_215, %c0_216] : memref<2x2x1x32xf32, #tpu.memory_space<vmem>>, vector<1x1x1x32xf32>
    %238 = vector.shape_cast %237 : vector<1x1x1x32xf32> to vector<1x32xf32>
    %c1_217 = arith.constant 1 : index
    %c0_218 = arith.constant 0 : index
    %c0_219 = arith.constant 0 : index
    %c0_220 = arith.constant 0 : index
    %239 = vector.load %arg4[%c1_217, %c0_218, %c0_219, %c0_220] : memref<2x2x1x32xf32, #tpu.memory_space<vmem>>, vector<1x1x1x32xf32>
    %240 = vector.shape_cast %239 : vector<1x1x1x32xf32> to vector<1x32xf32>
    %cst_221 = arith.constant dense<0.000000e+00> : vector<16xf32>
    %241 = vector.multi_reduction <add>, %236, %cst_221 [1] : vector<16x32xf32> to vector<16xf32>
    %242 = vector.shape_cast %241 : vector<16xf32> to vector<16x1xf32>
    %cst_222 = arith.constant 3.200000e+01 : f32
    %243 = vector.broadcast %cst_222 : f32 to vector<16x1xf32>
    %244 = arith.divf %242, %243 : vector<16x1xf32>
    %245 = vector.broadcast %244 : vector<16x1xf32> to vector<16x32xf32>
    %246 = arith.subf %236, %245 : vector<16x32xf32>
    %247 = arith.mulf %246, %246 : vector<16x32xf32>
    %cst_223 = arith.constant dense<0.000000e+00> : vector<16xf32>
    %248 = vector.multi_reduction <add>, %247, %cst_223 [1] : vector<16x32xf32> to vector<16xf32>
    %249 = vector.shape_cast %248 : vector<16xf32> to vector<16x1xf32>
    %cst_224 = arith.constant 3.200000e+01 : f32
    %250 = vector.broadcast %cst_224 : f32 to vector<16x1xf32>
    %251 = arith.divf %249, %250 : vector<16x1xf32>
    %252 = vector.broadcast %244 : vector<16x1xf32> to vector<16x32xf32>
    %253 = arith.subf %236, %252 : vector<16x32xf32>
    %cst_225 = arith.constant 9.99999974E-6 : f32
    %254 = vector.broadcast %cst_225 : f32 to vector<16x1xf32>
    %255 = arith.addf %251, %254 : vector<16x1xf32>
    %256 = math.rsqrt %255 : vector<16x1xf32>
    %257 = vector.broadcast %256 : vector<16x1xf32> to vector<16x32xf32>
    %258 = arith.mulf %253, %257 : vector<16x32xf32>
    %259 = vector.broadcast %238 : vector<1x32xf32> to vector<16x32xf32>
    %260 = arith.mulf %258, %259 : vector<16x32xf32>
    %261 = vector.broadcast %240 : vector<1x32xf32> to vector<16x32xf32>
    %262 = arith.addf %260, %261 : vector<16x32xf32>
    %c1_226 = arith.constant 1 : index
    %c0_227 = arith.constant 0 : index
    %c0_228 = arith.constant 0 : index
    %c0_229 = arith.constant 0 : index
    %c0_230 = arith.constant 0 : index
    %263 = vector.load %arg5[%c1_226, %c0_227, %c0_228, %c0_229, %c0_230] : memref<2x3x4x32x16xf32, #tpu.memory_space<vmem>>, vector<1x1x1x32x16xf32>
    %264 = vector.shape_cast %263 : vector<1x1x1x32x16xf32> to vector<32x16xf32>
    %cst_231 = arith.constant dense<0.000000e+00> : vector<16x16xf32>
    %265 = tpu.matmul %262, %264, %cst_231 {dimension_numbers = #tpu.dot_dimension_numbers<[1], [0], [0], [1], [0, 0, 1, 1], [], []>} : vector<16x32xf32>, vector<32x16xf32>, vector<16x16xf32> -> vector<16x16xf32>
    %c1_232 = arith.constant 1 : index
    %c0_233 = arith.constant 0 : index
    %c0_234 = arith.constant 0 : index
    %c0_235 = arith.constant 0 : index
    %c0_236 = arith.constant 0 : index
    %266 = vector.load %arg6[%c1_232, %c0_233, %c0_234, %c0_235, %c0_236] : memref<2x3x4x1x16xf32, #tpu.memory_space<vmem>>, vector<1x1x1x1x16xf32>
    %267 = vector.shape_cast %266 : vector<1x1x1x1x16xf32> to vector<1x16xf32>
    %268 = vector.broadcast %267 : vector<1x16xf32> to vector<16x16xf32>
    %269 = arith.addf %265, %268 : vector<16x16xf32>
    %c1_237 = arith.constant 1 : index
    %c1_238 = arith.constant 1 : index
    %c0_239 = arith.constant 0 : index
    %c0_240 = arith.constant 0 : index
    %c0_241 = arith.constant 0 : index
    %270 = vector.load %arg5[%c1_237, %c1_238, %c0_239, %c0_240, %c0_241] : memref<2x3x4x32x16xf32, #tpu.memory_space<vmem>>, vector<1x1x1x32x16xf32>
    %271 = vector.shape_cast %270 : vector<1x1x1x32x16xf32> to vector<32x16xf32>
    %cst_242 = arith.constant dense<0.000000e+00> : vector<16x16xf32>
    %272 = tpu.matmul %262, %271, %cst_242 {dimension_numbers = #tpu.dot_dimension_numbers<[1], [0], [0], [1], [0, 0, 1, 1], [], []>} : vector<16x32xf32>, vector<32x16xf32>, vector<16x16xf32> -> vector<16x16xf32>
    %c1_243 = arith.constant 1 : index
    %c1_244 = arith.constant 1 : index
    %c0_245 = arith.constant 0 : index
    %c0_246 = arith.constant 0 : index
    %c0_247 = arith.constant 0 : index
    %273 = vector.load %arg6[%c1_243, %c1_244, %c0_245, %c0_246, %c0_247] : memref<2x3x4x1x16xf32, #tpu.memory_space<vmem>>, vector<1x1x1x1x16xf32>
    %274 = vector.shape_cast %273 : vector<1x1x1x1x16xf32> to vector<1x16xf32>
    %275 = vector.broadcast %274 : vector<1x16xf32> to vector<16x16xf32>
    %276 = arith.addf %272, %275 : vector<16x16xf32>
    %c1_248 = arith.constant 1 : index
    %c2_249 = arith.constant 2 : index
    %c0_250 = arith.constant 0 : index
    %c0_251 = arith.constant 0 : index
    %c0_252 = arith.constant 0 : index
    %277 = vector.load %arg5[%c1_248, %c2_249, %c0_250, %c0_251, %c0_252] : memref<2x3x4x32x16xf32, #tpu.memory_space<vmem>>, vector<1x1x1x32x16xf32>
    %278 = vector.shape_cast %277 : vector<1x1x1x32x16xf32> to vector<32x16xf32>
    %cst_253 = arith.constant dense<0.000000e+00> : vector<16x16xf32>
    %279 = tpu.matmul %262, %278, %cst_253 {dimension_numbers = #tpu.dot_dimension_numbers<[1], [0], [0], [1], [0, 0, 1, 1], [], []>} : vector<16x32xf32>, vector<32x16xf32>, vector<16x16xf32> -> vector<16x16xf32>
    %c1_254 = arith.constant 1 : index
    %c2_255 = arith.constant 2 : index
    %c0_256 = arith.constant 0 : index
    %c0_257 = arith.constant 0 : index
    %c0_258 = arith.constant 0 : index
    %280 = vector.load %arg6[%c1_254, %c2_255, %c0_256, %c0_257, %c0_258] : memref<2x3x4x1x16xf32, #tpu.memory_space<vmem>>, vector<1x1x1x1x16xf32>
    %281 = vector.shape_cast %280 : vector<1x1x1x1x16xf32> to vector<1x16xf32>
    %282 = vector.broadcast %281 : vector<1x16xf32> to vector<16x16xf32>
    %283 = arith.addf %279, %282 : vector<16x16xf32>
    %284 = tpu.transpose %276, [1, 0] : vector<16x16xf32> -> vector<16x16xf32>
    %cst_259 = arith.constant dense<0.000000e+00> : vector<16x16xf32>
    %285 = tpu.matmul %269, %284, %cst_259 {dimension_numbers = #tpu.dot_dimension_numbers<[1], [0], [0], [1], [0, 0, 1, 1], [], []>} : vector<16x16xf32>, vector<16x16xf32>, vector<16x16xf32> -> vector<16x16xf32>
    %286 = arith.addf %285, %1 : vector<16x16xf32>
    %cst_260 = arith.constant dense<0xFF800000> : vector<16xf32>
    %287 = vector.multi_reduction <maximumf>, %286, %cst_260 [1] : vector<16x16xf32> to vector<16xf32>
    %288 = vector.shape_cast %287 : vector<16xf32> to vector<16x1xf32>
    %289 = vector.broadcast %288 : vector<16x1xf32> to vector<16x16xf32>
    %290 = arith.subf %286, %289 : vector<16x16xf32>
    %291 = math.exp %290 : vector<16x16xf32>
    %cst_261 = arith.constant dense<0.000000e+00> : vector<16xf32>
    %292 = vector.multi_reduction <add>, %291, %cst_261 [1] : vector<16x16xf32> to vector<16xf32>
    %293 = vector.shape_cast %292 : vector<16xf32> to vector<16x1xf32>
    %294 = tpu.reciprocal %293 {approx = true} : vector<16x1xf32> -> vector<16x1xf32>
    %295 = vector.broadcast %294 : vector<16x1xf32> to vector<16x16xf32>
    %296 = arith.mulf %291, %295 : vector<16x16xf32>
    %cst_262 = arith.constant dense<0.000000e+00> : vector<16x16xf32>
    %297 = tpu.matmul %296, %283, %cst_262 {dimension_numbers = #tpu.dot_dimension_numbers<[1], [0], [0], [1], [0, 0, 1, 1], [], []>} : vector<16x16xf32>, vector<16x16xf32>, vector<16x16xf32> -> vector<16x16xf32>
    %c1_263 = arith.constant 1 : index
    %c0_264 = arith.constant 0 : index
    %c0_265 = arith.constant 0 : index
    %c0_266 = arith.constant 0 : index
    %298 = vector.load %arg7[%c1_263, %c0_264, %c0_265, %c0_266] : memref<2x4x16x32xf32, #tpu.memory_space<vmem>>, vector<1x1x16x32xf32>
    %299 = vector.shape_cast %298 : vector<1x1x16x32xf32> to vector<16x32xf32>
    %cst_267 = arith.constant dense<0.000000e+00> : vector<16x32xf32>
    %300 = tpu.matmul %297, %299, %cst_267 {dimension_numbers = #tpu.dot_dimension_numbers<[1], [0], [0], [1], [0, 0, 1, 1], [], []>} : vector<16x16xf32>, vector<16x32xf32>, vector<16x32xf32> -> vector<16x32xf32>
    %c1_268 = arith.constant 1 : index
    %c0_269 = arith.constant 0 : index
    %c1_270 = arith.constant 1 : index
    %c0_271 = arith.constant 0 : index
    %c0_272 = arith.constant 0 : index
    %301 = vector.load %arg5[%c1_268, %c0_269, %c1_270, %c0_271, %c0_272] : memref<2x3x4x32x16xf32, #tpu.memory_space<vmem>>, vector<1x1x1x32x16xf32>
    %302 = vector.shape_cast %301 : vector<1x1x1x32x16xf32> to vector<32x16xf32>
    %cst_273 = arith.constant dense<0.000000e+00> : vector<16x16xf32>
    %303 = tpu.matmul %262, %302, %cst_273 {dimension_numbers = #tpu.dot_dimension_numbers<[1], [0], [0], [1], [0, 0, 1, 1], [], []>} : vector<16x32xf32>, vector<32x16xf32>, vector<16x16xf32> -> vector<16x16xf32>
    %c1_274 = arith.constant 1 : index
    %c0_275 = arith.constant 0 : index
    %c1_276 = arith.constant 1 : index
    %c0_277 = arith.constant 0 : index
    %c0_278 = arith.constant 0 : index
    %304 = vector.load %arg6[%c1_274, %c0_275, %c1_276, %c0_277, %c0_278] : memref<2x3x4x1x16xf32, #tpu.memory_space<vmem>>, vector<1x1x1x1x16xf32>
    %305 = vector.shape_cast %304 : vector<1x1x1x1x16xf32> to vector<1x16xf32>
    %306 = vector.broadcast %305 : vector<1x16xf32> to vector<16x16xf32>
    %307 = arith.addf %303, %306 : vector<16x16xf32>
    %c1_279 = arith.constant 1 : index
    %c1_280 = arith.constant 1 : index
    %c1_281 = arith.constant 1 : index
    %c0_282 = arith.constant 0 : index
    %c0_283 = arith.constant 0 : index
    %308 = vector.load %arg5[%c1_279, %c1_280, %c1_281, %c0_282, %c0_283] : memref<2x3x4x32x16xf32, #tpu.memory_space<vmem>>, vector<1x1x1x32x16xf32>
    %309 = vector.shape_cast %308 : vector<1x1x1x32x16xf32> to vector<32x16xf32>
    %cst_284 = arith.constant dense<0.000000e+00> : vector<16x16xf32>
    %310 = tpu.matmul %262, %309, %cst_284 {dimension_numbers = #tpu.dot_dimension_numbers<[1], [0], [0], [1], [0, 0, 1, 1], [], []>} : vector<16x32xf32>, vector<32x16xf32>, vector<16x16xf32> -> vector<16x16xf32>
    %c1_285 = arith.constant 1 : index
    %c1_286 = arith.constant 1 : index
    %c1_287 = arith.constant 1 : index
    %c0_288 = arith.constant 0 : index
    %c0_289 = arith.constant 0 : index
    %311 = vector.load %arg6[%c1_285, %c1_286, %c1_287, %c0_288, %c0_289] : memref<2x3x4x1x16xf32, #tpu.memory_space<vmem>>, vector<1x1x1x1x16xf32>
    %312 = vector.shape_cast %311 : vector<1x1x1x1x16xf32> to vector<1x16xf32>
    %313 = vector.broadcast %312 : vector<1x16xf32> to vector<16x16xf32>
    %314 = arith.addf %310, %313 : vector<16x16xf32>
    %c1_290 = arith.constant 1 : index
    %c2_291 = arith.constant 2 : index
    %c1_292 = arith.constant 1 : index
    %c0_293 = arith.constant 0 : index
    %c0_294 = arith.constant 0 : index
    %315 = vector.load %arg5[%c1_290, %c2_291, %c1_292, %c0_293, %c0_294] : memref<2x3x4x32x16xf32, #tpu.memory_space<vmem>>, vector<1x1x1x32x16xf32>
    %316 = vector.shape_cast %315 : vector<1x1x1x32x16xf32> to vector<32x16xf32>
    %cst_295 = arith.constant dense<0.000000e+00> : vector<16x16xf32>
    %317 = tpu.matmul %262, %316, %cst_295 {dimension_numbers = #tpu.dot_dimension_numbers<[1], [0], [0], [1], [0, 0, 1, 1], [], []>} : vector<16x32xf32>, vector<32x16xf32>, vector<16x16xf32> -> vector<16x16xf32>
    %c1_296 = arith.constant 1 : index
    %c2_297 = arith.constant 2 : index
    %c1_298 = arith.constant 1 : index
    %c0_299 = arith.constant 0 : index
    %c0_300 = arith.constant 0 : index
    %318 = vector.load %arg6[%c1_296, %c2_297, %c1_298, %c0_299, %c0_300] : memref<2x3x4x1x16xf32, #tpu.memory_space<vmem>>, vector<1x1x1x1x16xf32>
    %319 = vector.shape_cast %318 : vector<1x1x1x1x16xf32> to vector<1x16xf32>
    %320 = vector.broadcast %319 : vector<1x16xf32> to vector<16x16xf32>
    %321 = arith.addf %317, %320 : vector<16x16xf32>
    %322 = tpu.transpose %314, [1, 0] : vector<16x16xf32> -> vector<16x16xf32>
    %cst_301 = arith.constant dense<0.000000e+00> : vector<16x16xf32>
    %323 = tpu.matmul %307, %322, %cst_301 {dimension_numbers = #tpu.dot_dimension_numbers<[1], [0], [0], [1], [0, 0, 1, 1], [], []>} : vector<16x16xf32>, vector<16x16xf32>, vector<16x16xf32> -> vector<16x16xf32>
    %324 = arith.addf %323, %1 : vector<16x16xf32>
    %cst_302 = arith.constant dense<0xFF800000> : vector<16xf32>
    %325 = vector.multi_reduction <maximumf>, %324, %cst_302 [1] : vector<16x16xf32> to vector<16xf32>
    %326 = vector.shape_cast %325 : vector<16xf32> to vector<16x1xf32>
    %327 = vector.broadcast %326 : vector<16x1xf32> to vector<16x16xf32>
    %328 = arith.subf %324, %327 : vector<16x16xf32>
    %329 = math.exp %328 : vector<16x16xf32>
    %cst_303 = arith.constant dense<0.000000e+00> : vector<16xf32>
    %330 = vector.multi_reduction <add>, %329, %cst_303 [1] : vector<16x16xf32> to vector<16xf32>
    %331 = vector.shape_cast %330 : vector<16xf32> to vector<16x1xf32>
    %332 = tpu.reciprocal %331 {approx = true} : vector<16x1xf32> -> vector<16x1xf32>
    %333 = vector.broadcast %332 : vector<16x1xf32> to vector<16x16xf32>
    %334 = arith.mulf %329, %333 : vector<16x16xf32>
    %cst_304 = arith.constant dense<0.000000e+00> : vector<16x16xf32>
    %335 = tpu.matmul %334, %321, %cst_304 {dimension_numbers = #tpu.dot_dimension_numbers<[1], [0], [0], [1], [0, 0, 1, 1], [], []>} : vector<16x16xf32>, vector<16x16xf32>, vector<16x16xf32> -> vector<16x16xf32>
    %c1_305 = arith.constant 1 : index
    %c1_306 = arith.constant 1 : index
    %c0_307 = arith.constant 0 : index
    %c0_308 = arith.constant 0 : index
    %336 = vector.load %arg7[%c1_305, %c1_306, %c0_307, %c0_308] : memref<2x4x16x32xf32, #tpu.memory_space<vmem>>, vector<1x1x16x32xf32>
    %337 = vector.shape_cast %336 : vector<1x1x16x32xf32> to vector<16x32xf32>
    %cst_309 = arith.constant dense<0.000000e+00> : vector<16x32xf32>
    %338 = tpu.matmul %335, %337, %cst_309 {dimension_numbers = #tpu.dot_dimension_numbers<[1], [0], [0], [1], [0, 0, 1, 1], [], []>} : vector<16x16xf32>, vector<16x32xf32>, vector<16x32xf32> -> vector<16x32xf32>
    %339 = arith.addf %300, %338 : vector<16x32xf32>
    %c1_310 = arith.constant 1 : index
    %c0_311 = arith.constant 0 : index
    %c2_312 = arith.constant 2 : index
    %c0_313 = arith.constant 0 : index
    %c0_314 = arith.constant 0 : index
    %340 = vector.load %arg5[%c1_310, %c0_311, %c2_312, %c0_313, %c0_314] : memref<2x3x4x32x16xf32, #tpu.memory_space<vmem>>, vector<1x1x1x32x16xf32>
    %341 = vector.shape_cast %340 : vector<1x1x1x32x16xf32> to vector<32x16xf32>
    %cst_315 = arith.constant dense<0.000000e+00> : vector<16x16xf32>
    %342 = tpu.matmul %262, %341, %cst_315 {dimension_numbers = #tpu.dot_dimension_numbers<[1], [0], [0], [1], [0, 0, 1, 1], [], []>} : vector<16x32xf32>, vector<32x16xf32>, vector<16x16xf32> -> vector<16x16xf32>
    %c1_316 = arith.constant 1 : index
    %c0_317 = arith.constant 0 : index
    %c2_318 = arith.constant 2 : index
    %c0_319 = arith.constant 0 : index
    %c0_320 = arith.constant 0 : index
    %343 = vector.load %arg6[%c1_316, %c0_317, %c2_318, %c0_319, %c0_320] : memref<2x3x4x1x16xf32, #tpu.memory_space<vmem>>, vector<1x1x1x1x16xf32>
    %344 = vector.shape_cast %343 : vector<1x1x1x1x16xf32> to vector<1x16xf32>
    %345 = vector.broadcast %344 : vector<1x16xf32> to vector<16x16xf32>
    %346 = arith.addf %342, %345 : vector<16x16xf32>
    %c1_321 = arith.constant 1 : index
    %c1_322 = arith.constant 1 : index
    %c2_323 = arith.constant 2 : index
    %c0_324 = arith.constant 0 : index
    %c0_325 = arith.constant 0 : index
    %347 = vector.load %arg5[%c1_321, %c1_322, %c2_323, %c0_324, %c0_325] : memref<2x3x4x32x16xf32, #tpu.memory_space<vmem>>, vector<1x1x1x32x16xf32>
    %348 = vector.shape_cast %347 : vector<1x1x1x32x16xf32> to vector<32x16xf32>
    %cst_326 = arith.constant dense<0.000000e+00> : vector<16x16xf32>
    %349 = tpu.matmul %262, %348, %cst_326 {dimension_numbers = #tpu.dot_dimension_numbers<[1], [0], [0], [1], [0, 0, 1, 1], [], []>} : vector<16x32xf32>, vector<32x16xf32>, vector<16x16xf32> -> vector<16x16xf32>
    %c1_327 = arith.constant 1 : index
    %c1_328 = arith.constant 1 : index
    %c2_329 = arith.constant 2 : index
    %c0_330 = arith.constant 0 : index
    %c0_331 = arith.constant 0 : index
    %350 = vector.load %arg6[%c1_327, %c1_328, %c2_329, %c0_330, %c0_331] : memref<2x3x4x1x16xf32, #tpu.memory_space<vmem>>, vector<1x1x1x1x16xf32>
    %351 = vector.shape_cast %350 : vector<1x1x1x1x16xf32> to vector<1x16xf32>
    %352 = vector.broadcast %351 : vector<1x16xf32> to vector<16x16xf32>
    %353 = arith.addf %349, %352 : vector<16x16xf32>
    %c1_332 = arith.constant 1 : index
    %c2_333 = arith.constant 2 : index
    %c2_334 = arith.constant 2 : index
    %c0_335 = arith.constant 0 : index
    %c0_336 = arith.constant 0 : index
    %354 = vector.load %arg5[%c1_332, %c2_333, %c2_334, %c0_335, %c0_336] : memref<2x3x4x32x16xf32, #tpu.memory_space<vmem>>, vector<1x1x1x32x16xf32>
    %355 = vector.shape_cast %354 : vector<1x1x1x32x16xf32> to vector<32x16xf32>
    %cst_337 = arith.constant dense<0.000000e+00> : vector<16x16xf32>
    %356 = tpu.matmul %262, %355, %cst_337 {dimension_numbers = #tpu.dot_dimension_numbers<[1], [0], [0], [1], [0, 0, 1, 1], [], []>} : vector<16x32xf32>, vector<32x16xf32>, vector<16x16xf32> -> vector<16x16xf32>
    %c1_338 = arith.constant 1 : index
    %c2_339 = arith.constant 2 : index
    %c2_340 = arith.constant 2 : index
    %c0_341 = arith.constant 0 : index
    %c0_342 = arith.constant 0 : index
    %357 = vector.load %arg6[%c1_338, %c2_339, %c2_340, %c0_341, %c0_342] : memref<2x3x4x1x16xf32, #tpu.memory_space<vmem>>, vector<1x1x1x1x16xf32>
    %358 = vector.shape_cast %357 : vector<1x1x1x1x16xf32> to vector<1x16xf32>
    %359 = vector.broadcast %358 : vector<1x16xf32> to vector<16x16xf32>
    %360 = arith.addf %356, %359 : vector<16x16xf32>
    %361 = tpu.transpose %353, [1, 0] : vector<16x16xf32> -> vector<16x16xf32>
    %cst_343 = arith.constant dense<0.000000e+00> : vector<16x16xf32>
    %362 = tpu.matmul %346, %361, %cst_343 {dimension_numbers = #tpu.dot_dimension_numbers<[1], [0], [0], [1], [0, 0, 1, 1], [], []>} : vector<16x16xf32>, vector<16x16xf32>, vector<16x16xf32> -> vector<16x16xf32>
    %363 = arith.addf %362, %1 : vector<16x16xf32>
    %cst_344 = arith.constant dense<0xFF800000> : vector<16xf32>
    %364 = vector.multi_reduction <maximumf>, %363, %cst_344 [1] : vector<16x16xf32> to vector<16xf32>
    %365 = vector.shape_cast %364 : vector<16xf32> to vector<16x1xf32>
    %366 = vector.broadcast %365 : vector<16x1xf32> to vector<16x16xf32>
    %367 = arith.subf %363, %366 : vector<16x16xf32>
    %368 = math.exp %367 : vector<16x16xf32>
    %cst_345 = arith.constant dense<0.000000e+00> : vector<16xf32>
    %369 = vector.multi_reduction <add>, %368, %cst_345 [1] : vector<16x16xf32> to vector<16xf32>
    %370 = vector.shape_cast %369 : vector<16xf32> to vector<16x1xf32>
    %371 = tpu.reciprocal %370 {approx = true} : vector<16x1xf32> -> vector<16x1xf32>
    %372 = vector.broadcast %371 : vector<16x1xf32> to vector<16x16xf32>
    %373 = arith.mulf %368, %372 : vector<16x16xf32>
    %cst_346 = arith.constant dense<0.000000e+00> : vector<16x16xf32>
    %374 = tpu.matmul %373, %360, %cst_346 {dimension_numbers = #tpu.dot_dimension_numbers<[1], [0], [0], [1], [0, 0, 1, 1], [], []>} : vector<16x16xf32>, vector<16x16xf32>, vector<16x16xf32> -> vector<16x16xf32>
    %c1_347 = arith.constant 1 : index
    %c2_348 = arith.constant 2 : index
    %c0_349 = arith.constant 0 : index
    %c0_350 = arith.constant 0 : index
    %375 = vector.load %arg7[%c1_347, %c2_348, %c0_349, %c0_350] : memref<2x4x16x32xf32, #tpu.memory_space<vmem>>, vector<1x1x16x32xf32>
    %376 = vector.shape_cast %375 : vector<1x1x16x32xf32> to vector<16x32xf32>
    %cst_351 = arith.constant dense<0.000000e+00> : vector<16x32xf32>
    %377 = tpu.matmul %374, %376, %cst_351 {dimension_numbers = #tpu.dot_dimension_numbers<[1], [0], [0], [1], [0, 0, 1, 1], [], []>} : vector<16x16xf32>, vector<16x32xf32>, vector<16x32xf32> -> vector<16x32xf32>
    %378 = arith.addf %339, %377 : vector<16x32xf32>
    %c1_352 = arith.constant 1 : index
    %c0_353 = arith.constant 0 : index
    %c3_354 = arith.constant 3 : index
    %c0_355 = arith.constant 0 : index
    %c0_356 = arith.constant 0 : index
    %379 = vector.load %arg5[%c1_352, %c0_353, %c3_354, %c0_355, %c0_356] : memref<2x3x4x32x16xf32, #tpu.memory_space<vmem>>, vector<1x1x1x32x16xf32>
    %380 = vector.shape_cast %379 : vector<1x1x1x32x16xf32> to vector<32x16xf32>
    %cst_357 = arith.constant dense<0.000000e+00> : vector<16x16xf32>
    %381 = tpu.matmul %262, %380, %cst_357 {dimension_numbers = #tpu.dot_dimension_numbers<[1], [0], [0], [1], [0, 0, 1, 1], [], []>} : vector<16x32xf32>, vector<32x16xf32>, vector<16x16xf32> -> vector<16x16xf32>
    %c1_358 = arith.constant 1 : index
    %c0_359 = arith.constant 0 : index
    %c3_360 = arith.constant 3 : index
    %c0_361 = arith.constant 0 : index
    %c0_362 = arith.constant 0 : index
    %382 = vector.load %arg6[%c1_358, %c0_359, %c3_360, %c0_361, %c0_362] : memref<2x3x4x1x16xf32, #tpu.memory_space<vmem>>, vector<1x1x1x1x16xf32>
    %383 = vector.shape_cast %382 : vector<1x1x1x1x16xf32> to vector<1x16xf32>
    %384 = vector.broadcast %383 : vector<1x16xf32> to vector<16x16xf32>
    %385 = arith.addf %381, %384 : vector<16x16xf32>
    %c1_363 = arith.constant 1 : index
    %c1_364 = arith.constant 1 : index
    %c3_365 = arith.constant 3 : index
    %c0_366 = arith.constant 0 : index
    %c0_367 = arith.constant 0 : index
    %386 = vector.load %arg5[%c1_363, %c1_364, %c3_365, %c0_366, %c0_367] : memref<2x3x4x32x16xf32, #tpu.memory_space<vmem>>, vector<1x1x1x32x16xf32>
    %387 = vector.shape_cast %386 : vector<1x1x1x32x16xf32> to vector<32x16xf32>
    %cst_368 = arith.constant dense<0.000000e+00> : vector<16x16xf32>
    %388 = tpu.matmul %262, %387, %cst_368 {dimension_numbers = #tpu.dot_dimension_numbers<[1], [0], [0], [1], [0, 0, 1, 1], [], []>} : vector<16x32xf32>, vector<32x16xf32>, vector<16x16xf32> -> vector<16x16xf32>
    %c1_369 = arith.constant 1 : index
    %c1_370 = arith.constant 1 : index
    %c3_371 = arith.constant 3 : index
    %c0_372 = arith.constant 0 : index
    %c0_373 = arith.constant 0 : index
    %389 = vector.load %arg6[%c1_369, %c1_370, %c3_371, %c0_372, %c0_373] : memref<2x3x4x1x16xf32, #tpu.memory_space<vmem>>, vector<1x1x1x1x16xf32>
    %390 = vector.shape_cast %389 : vector<1x1x1x1x16xf32> to vector<1x16xf32>
    %391 = vector.broadcast %390 : vector<1x16xf32> to vector<16x16xf32>
    %392 = arith.addf %388, %391 : vector<16x16xf32>
    %c1_374 = arith.constant 1 : index
    %c2_375 = arith.constant 2 : index
    %c3_376 = arith.constant 3 : index
    %c0_377 = arith.constant 0 : index
    %c0_378 = arith.constant 0 : index
    %393 = vector.load %arg5[%c1_374, %c2_375, %c3_376, %c0_377, %c0_378] : memref<2x3x4x32x16xf32, #tpu.memory_space<vmem>>, vector<1x1x1x32x16xf32>
    %394 = vector.shape_cast %393 : vector<1x1x1x32x16xf32> to vector<32x16xf32>
    %cst_379 = arith.constant dense<0.000000e+00> : vector<16x16xf32>
    %395 = tpu.matmul %262, %394, %cst_379 {dimension_numbers = #tpu.dot_dimension_numbers<[1], [0], [0], [1], [0, 0, 1, 1], [], []>} : vector<16x32xf32>, vector<32x16xf32>, vector<16x16xf32> -> vector<16x16xf32>
    %c1_380 = arith.constant 1 : index
    %c2_381 = arith.constant 2 : index
    %c3_382 = arith.constant 3 : index
    %c0_383 = arith.constant 0 : index
    %c0_384 = arith.constant 0 : index
    %396 = vector.load %arg6[%c1_380, %c2_381, %c3_382, %c0_383, %c0_384] : memref<2x3x4x1x16xf32, #tpu.memory_space<vmem>>, vector<1x1x1x1x16xf32>
    %397 = vector.shape_cast %396 : vector<1x1x1x1x16xf32> to vector<1x16xf32>
    %398 = vector.broadcast %397 : vector<1x16xf32> to vector<16x16xf32>
    %399 = arith.addf %395, %398 : vector<16x16xf32>
    %400 = tpu.transpose %392, [1, 0] : vector<16x16xf32> -> vector<16x16xf32>
    %cst_385 = arith.constant dense<0.000000e+00> : vector<16x16xf32>
    %401 = tpu.matmul %385, %400, %cst_385 {dimension_numbers = #tpu.dot_dimension_numbers<[1], [0], [0], [1], [0, 0, 1, 1], [], []>} : vector<16x16xf32>, vector<16x16xf32>, vector<16x16xf32> -> vector<16x16xf32>
    %402 = arith.addf %401, %1 : vector<16x16xf32>
    %cst_386 = arith.constant dense<0xFF800000> : vector<16xf32>
    %403 = vector.multi_reduction <maximumf>, %402, %cst_386 [1] : vector<16x16xf32> to vector<16xf32>
    %404 = vector.shape_cast %403 : vector<16xf32> to vector<16x1xf32>
    %405 = vector.broadcast %404 : vector<16x1xf32> to vector<16x16xf32>
    %406 = arith.subf %402, %405 : vector<16x16xf32>
    %407 = math.exp %406 : vector<16x16xf32>
    %cst_387 = arith.constant dense<0.000000e+00> : vector<16xf32>
    %408 = vector.multi_reduction <add>, %407, %cst_387 [1] : vector<16x16xf32> to vector<16xf32>
    %409 = vector.shape_cast %408 : vector<16xf32> to vector<16x1xf32>
    %410 = tpu.reciprocal %409 {approx = true} : vector<16x1xf32> -> vector<16x1xf32>
    %411 = vector.broadcast %410 : vector<16x1xf32> to vector<16x16xf32>
    %412 = arith.mulf %407, %411 : vector<16x16xf32>
    %cst_388 = arith.constant dense<0.000000e+00> : vector<16x16xf32>
    %413 = tpu.matmul %412, %399, %cst_388 {dimension_numbers = #tpu.dot_dimension_numbers<[1], [0], [0], [1], [0, 0, 1, 1], [], []>} : vector<16x16xf32>, vector<16x16xf32>, vector<16x16xf32> -> vector<16x16xf32>
    %c1_389 = arith.constant 1 : index
    %c3_390 = arith.constant 3 : index
    %c0_391 = arith.constant 0 : index
    %c0_392 = arith.constant 0 : index
    %414 = vector.load %arg7[%c1_389, %c3_390, %c0_391, %c0_392] : memref<2x4x16x32xf32, #tpu.memory_space<vmem>>, vector<1x1x16x32xf32>
    %415 = vector.shape_cast %414 : vector<1x1x16x32xf32> to vector<16x32xf32>
    %cst_393 = arith.constant dense<0.000000e+00> : vector<16x32xf32>
    %416 = tpu.matmul %413, %415, %cst_393 {dimension_numbers = #tpu.dot_dimension_numbers<[1], [0], [0], [1], [0, 0, 1, 1], [], []>} : vector<16x16xf32>, vector<16x32xf32>, vector<16x32xf32> -> vector<16x32xf32>
    %417 = arith.addf %378, %416 : vector<16x32xf32>
    %418 = arith.addf %236, %417 : vector<16x32xf32>
    %c1_394 = arith.constant 1 : index
    %c0_395 = arith.constant 0 : index
    %c0_396 = arith.constant 0 : index
    %419 = vector.load %arg8[%c1_394, %c0_395, %c0_396] : memref<2x1x32xf32, #tpu.memory_space<vmem>>, vector<1x1x32xf32>
    %420 = vector.shape_cast %419 : vector<1x1x32xf32> to vector<1x32xf32>
    %421 = vector.broadcast %420 : vector<1x32xf32> to vector<16x32xf32>
    %422 = arith.addf %418, %421 : vector<16x32xf32>
    %c1_397 = arith.constant 1 : index
    %c1_398 = arith.constant 1 : index
    %c0_399 = arith.constant 0 : index
    %c0_400 = arith.constant 0 : index
    %423 = vector.load %arg3[%c1_397, %c1_398, %c0_399, %c0_400] : memref<2x2x1x32xf32, #tpu.memory_space<vmem>>, vector<1x1x1x32xf32>
    %424 = vector.shape_cast %423 : vector<1x1x1x32xf32> to vector<1x32xf32>
    %c1_401 = arith.constant 1 : index
    %c1_402 = arith.constant 1 : index
    %c0_403 = arith.constant 0 : index
    %c0_404 = arith.constant 0 : index
    %425 = vector.load %arg4[%c1_401, %c1_402, %c0_403, %c0_404] : memref<2x2x1x32xf32, #tpu.memory_space<vmem>>, vector<1x1x1x32xf32>
    %426 = vector.shape_cast %425 : vector<1x1x1x32xf32> to vector<1x32xf32>
    %cst_405 = arith.constant dense<0.000000e+00> : vector<16xf32>
    %427 = vector.multi_reduction <add>, %422, %cst_405 [1] : vector<16x32xf32> to vector<16xf32>
    %428 = vector.shape_cast %427 : vector<16xf32> to vector<16x1xf32>
    %cst_406 = arith.constant 3.200000e+01 : f32
    %429 = vector.broadcast %cst_406 : f32 to vector<16x1xf32>
    %430 = arith.divf %428, %429 : vector<16x1xf32>
    %431 = vector.broadcast %430 : vector<16x1xf32> to vector<16x32xf32>
    %432 = arith.subf %422, %431 : vector<16x32xf32>
    %433 = arith.mulf %432, %432 : vector<16x32xf32>
    %cst_407 = arith.constant dense<0.000000e+00> : vector<16xf32>
    %434 = vector.multi_reduction <add>, %433, %cst_407 [1] : vector<16x32xf32> to vector<16xf32>
    %435 = vector.shape_cast %434 : vector<16xf32> to vector<16x1xf32>
    %cst_408 = arith.constant 3.200000e+01 : f32
    %436 = vector.broadcast %cst_408 : f32 to vector<16x1xf32>
    %437 = arith.divf %435, %436 : vector<16x1xf32>
    %438 = vector.broadcast %430 : vector<16x1xf32> to vector<16x32xf32>
    %439 = arith.subf %422, %438 : vector<16x32xf32>
    %cst_409 = arith.constant 9.99999974E-6 : f32
    %440 = vector.broadcast %cst_409 : f32 to vector<16x1xf32>
    %441 = arith.addf %437, %440 : vector<16x1xf32>
    %442 = math.rsqrt %441 : vector<16x1xf32>
    %443 = vector.broadcast %442 : vector<16x1xf32> to vector<16x32xf32>
    %444 = arith.mulf %439, %443 : vector<16x32xf32>
    %445 = vector.broadcast %424 : vector<1x32xf32> to vector<16x32xf32>
    %446 = arith.mulf %444, %445 : vector<16x32xf32>
    %447 = vector.broadcast %426 : vector<1x32xf32> to vector<16x32xf32>
    %448 = arith.addf %446, %447 : vector<16x32xf32>
    %c1_410 = arith.constant 1 : index
    %c0_411 = arith.constant 0 : index
    %c0_412 = arith.constant 0 : index
    %449 = vector.load %arg9[%c1_410, %c0_411, %c0_412] : memref<2x32x64xf32, #tpu.memory_space<vmem>>, vector<1x32x64xf32>
    %450 = vector.shape_cast %449 : vector<1x32x64xf32> to vector<32x64xf32>
    %cst_413 = arith.constant dense<0.000000e+00> : vector<16x64xf32>
    %451 = tpu.matmul %448, %450, %cst_413 {dimension_numbers = #tpu.dot_dimension_numbers<[1], [0], [0], [1], [0, 0, 1, 1], [], []>} : vector<16x32xf32>, vector<32x64xf32>, vector<16x64xf32> -> vector<16x64xf32>
    %c1_414 = arith.constant 1 : index
    %c0_415 = arith.constant 0 : index
    %c0_416 = arith.constant 0 : index
    %452 = vector.load %arg10[%c1_414, %c0_415, %c0_416] : memref<2x1x64xf32, #tpu.memory_space<vmem>>, vector<1x1x64xf32>
    %453 = vector.shape_cast %452 : vector<1x1x64xf32> to vector<1x64xf32>
    %454 = vector.broadcast %453 : vector<1x64xf32> to vector<16x64xf32>
    %455 = arith.addf %451, %454 : vector<16x64xf32>
    %cst_417 = arith.constant 5.000000e-01 : f32
    %456 = vector.broadcast %cst_417 : f32 to vector<16x64xf32>
    %457 = arith.mulf %456, %455 : vector<16x64xf32>
    %cst_418 = arith.constant 0.707106769 : f32
    %458 = vector.broadcast %cst_418 : f32 to vector<16x64xf32>
    %459 = arith.mulf %455, %458 : vector<16x64xf32>
    %460 = math.erf %459 : vector<16x64xf32>
    %cst_419 = arith.constant 1.000000e+00 : f32
    %461 = vector.broadcast %cst_419 : f32 to vector<16x64xf32>
    %462 = arith.addf %461, %460 : vector<16x64xf32>
    %463 = arith.mulf %457, %462 : vector<16x64xf32>
    %c1_420 = arith.constant 1 : index
    %c0_421 = arith.constant 0 : index
    %c0_422 = arith.constant 0 : index
    %464 = vector.load %arg11[%c1_420, %c0_421, %c0_422] : memref<2x64x32xf32, #tpu.memory_space<vmem>>, vector<1x64x32xf32>
    %465 = vector.shape_cast %464 : vector<1x64x32xf32> to vector<64x32xf32>
    %cst_423 = arith.constant dense<0.000000e+00> : vector<16x32xf32>
    %466 = tpu.matmul %463, %465, %cst_423 {dimension_numbers = #tpu.dot_dimension_numbers<[1], [0], [0], [1], [0, 0, 1, 1], [], []>} : vector<16x64xf32>, vector<64x32xf32>, vector<16x32xf32> -> vector<16x32xf32>
    %467 = arith.addf %422, %466 : vector<16x32xf32>
    %c1_424 = arith.constant 1 : index
    %c0_425 = arith.constant 0 : index
    %c0_426 = arith.constant 0 : index
    %468 = vector.load %arg12[%c1_424, %c0_425, %c0_426] : memref<2x1x32xf32, #tpu.memory_space<vmem>>, vector<1x1x32xf32>
    %469 = vector.shape_cast %468 : vector<1x1x32xf32> to vector<1x32xf32>
    %470 = vector.broadcast %469 : vector<1x32xf32> to vector<16x32xf32>
    %471 = arith.addf %467, %470 : vector<16x32xf32>
    %c0_427 = arith.constant 0 : index
    %c0_428 = arith.constant 0 : index
    %472 = vector.load %arg13[%c0_427, %c0_428] : memref<16x32xf32, #tpu.memory_space<vmem>>, vector<16x32xf32>
    tpu.vector_store %arg13[%c0_427, %c0_428], %471 {strides = array<i32>} : memref<16x32xf32, #tpu.memory_space<vmem>>, vector<16x32xf32>,
    return
  }
  func.func @transform_0(%arg0: i32) -> (i32, i32) {
    %c0_i32 = arith.constant 0 : i32
    %c0_i32_0 = arith.constant 0 : i32
    %c0_i32_1 = arith.constant 0 : i32
    return %c0_i32, %c0_i32_0 : i32, i32
  }
  func.func @transform_1(%arg0: i32) -> (i32, i32) {
    %c0_i32 = arith.constant 0 : i32
    %c0_i32_0 = arith.constant 0 : i32
    %c0_i32_1 = arith.constant 0 : i32
    return %c0_i32, %c0_i32_0 : i32, i32
  }
  func.func @transform_2(%arg0: i32) -> (i32, i32, i32, i32) {
    %c0_i32 = arith.constant 0 : i32
    %c0_i32_0 = arith.constant 0 : i32
    %c0_i32_1 = arith.constant 0 : i32
    %c0_i32_2 = arith.constant 0 : i32
    %c0_i32_3 = arith.constant 0 : i32
    return %c0_i32, %c0_i32_0, %c0_i32_1, %c0_i32_2 : i32, i32, i32, i32
  }
  func.func @transform_3(%arg0: i32) -> (i32, i32, i32, i32) {
    %c0_i32 = arith.constant 0 : i32
    %c0_i32_0 = arith.constant 0 : i32
    %c0_i32_1 = arith.constant 0 : i32
    %c0_i32_2 = arith.constant 0 : i32
    %c0_i32_3 = arith.constant 0 : i32
    return %c0_i32, %c0_i32_0, %c0_i32_1, %c0_i32_2 : i32, i32, i32, i32
  }
  func.func @transform_4(%arg0: i32) -> (i32, i32, i32, i32, i32) {
    %c0_i32 = arith.constant 0 : i32
    %c0_i32_0 = arith.constant 0 : i32
    %c0_i32_1 = arith.constant 0 : i32
    %c0_i32_2 = arith.constant 0 : i32
    %c0_i32_3 = arith.constant 0 : i32
    %c0_i32_4 = arith.constant 0 : i32
    return %c0_i32, %c0_i32_0, %c0_i32_1, %c0_i32_2, %c0_i32_3 : i32, i32, i32, i32, i32
  }
  func.func @transform_5(%arg0: i32) -> (i32, i32, i32, i32, i32) {
    %c0_i32 = arith.constant 0 : i32
    %c0_i32_0 = arith.constant 0 : i32
    %c0_i32_1 = arith.constant 0 : i32
    %c0_i32_2 = arith.constant 0 : i32
    %c0_i32_3 = arith.constant 0 : i32
    %c0_i32_4 = arith.constant 0 : i32
    return %c0_i32, %c0_i32_0, %c0_i32_1, %c0_i32_2, %c0_i32_3 : i32, i32, i32, i32, i32
  }
  func.func @transform_6(%arg0: i32) -> (i32, i32, i32, i32) {
    %c0_i32 = arith.constant 0 : i32
    %c0_i32_0 = arith.constant 0 : i32
    %c0_i32_1 = arith.constant 0 : i32
    %c0_i32_2 = arith.constant 0 : i32
    %c0_i32_3 = arith.constant 0 : i32
    return %c0_i32, %c0_i32_0, %c0_i32_1, %c0_i32_2 : i32, i32, i32, i32
  }
  func.func @transform_7(%arg0: i32) -> (i32, i32, i32) {
    %c0_i32 = arith.constant 0 : i32
    %c0_i32_0 = arith.constant 0 : i32
    %c0_i32_1 = arith.constant 0 : i32
    %c0_i32_2 = arith.constant 0 : i32
    return %c0_i32, %c0_i32_0, %c0_i32_1 : i32, i32, i32
  }
  func.func @transform_8(%arg0: i32) -> (i32, i32, i32) {
    %c0_i32 = arith.constant 0 : i32
    %c0_i32_0 = arith.constant 0 : i32
    %c0_i32_1 = arith.constant 0 : i32
    %c0_i32_2 = arith.constant 0 : i32
    return %c0_i32, %c0_i32_0, %c0_i32_1 : i32, i32, i32
  }
  func.func @transform_9(%arg0: i32) -> (i32, i32, i32) {
    %c0_i32 = arith.constant 0 : i32
    %c0_i32_0 = arith.constant 0 : i32
    %c0_i32_1 = arith.constant 0 : i32
    %c0_i32_2 = arith.constant 0 : i32
    return %c0_i32, %c0_i32_0, %c0_i32_1 : i32, i32, i32
  }
  func.func @transform_10(%arg0: i32) -> (i32, i32, i32) {
    %c0_i32 = arith.constant 0 : i32
    %c0_i32_0 = arith.constant 0 : i32
    %c0_i32_1 = arith.constant 0 : i32
    %c0_i32_2 = arith.constant 0 : i32
    return %c0_i32, %c0_i32_0, %c0_i32_1 : i32, i32, i32
  }
  func.func @transform_11(%arg0: i32) -> (i32, i32, i32) {
    %c0_i32 = arith.constant 0 : i32
    %c0_i32_0 = arith.constant 0 : i32
    %c0_i32_1 = arith.constant 0 : i32
    %c0_i32_2 = arith.constant 0 : i32
    return %c0_i32, %c0_i32_0, %c0_i32_1 : i32, i32, i32
  }
  func.func @transform_12(%arg0: i32) -> (i32, i32) {
    %c0_i32 = arith.constant 0 : i32
    %c0_i32_0 = arith.constant 0 : i32
    %c0_i32_1 = arith.constant 0 : i32
    return %c0_i32, %c0_i32_0 : i32, i32
  }
}

</mosaic_0001>

<llo_original>
// kernel: tpu_custom_call.1
$region0: #{tpu_custom_call.1}
  #allocation0 [shape = 'u32[]', space=smem, size = 0x4, offset = 0x4, fixed_abs, tag = 'smem constant byte address 0x4 - core index']
  #allocation1 [shape = 'u32[144,128]{1,0:T(1,128)}', space=vmem, size = 0x12000, scoped, tag = 'internal scratch']
  %s0 = inlined_call_operand.vmem [shape: f32[16,32], index: 0, kind: input, shape index: {}]
  %s1 = inlined_call_operand.vmem [shape: f32[16,16], index: 1, kind: input, shape index: {}]
  %s2 = inlined_call_operand.vmem [shape: f32[2,2,1,32], index: 2, kind: input, shape index: {}]
  %s3 = inlined_call_operand.vmem [shape: f32[2,2,1,32], index: 3, kind: input, shape index: {}]
  %s4 = inlined_call_operand.vmem [shape: f32[2,3,4,32,16], index: 4, kind: input, shape index: {}]
  %s5 = inlined_call_operand.vmem [shape: f32[2,3,4,1,16], index: 5, kind: input, shape index: {}]
  %s6 = inlined_call_operand.vmem [shape: f32[2,4,16,32], index: 6, kind: input, shape index: {}]
  %s7 = inlined_call_operand.vmem [shape: f32[2,1,32], index: 7, kind: input, shape index: {}]
  %s8 = inlined_call_operand.vmem [shape: f32[2,32,64], index: 8, kind: input, shape index: {}]
  %s9 = inlined_call_operand.vmem [shape: f32[2,1,64], index: 9, kind: input, shape index: {}]
  %s10 = inlined_call_operand.vmem [shape: f32[2,64,32], index: 10, kind: input, shape index: {}]
  %s11 = inlined_call_operand.vmem [shape: f32[2,1,32], index: 11, kind: input, shape index: {}]
  %s12 = inlined_call_operand.hbm [shape: f32[16,32], index: 12, kind: output, shape index: {}]
  %s13 = sld [smem:[#allocation0]]
  $region58: #{tpu_custom_call.1} parent=0
    _
  %s15 = ssub.s32 1, %s13
  %s16 = scalar_select 0, %s15, %s13
  $region1: #{tpu_custom_call.1} parent=0
    #allocation2 [shape = 'u8[8192]{0}', space=vmem, size = 0x2000, scoped, tag = 'output window, operand 0, single buffered']
    #allocation3 [shape = 's32[1]{0}', space=sflag, size = 0x4, scoped, tag = 'scoped memory for tpu_custom_call.1']
    %17 = vsyncpa [#allocation3], 0
    // Predicated region
    $region2: #{tpu_custom_call.1} parent=1 // pred_check
      _
    $region3: #{tpu_custom_call.1} parent=1 // pred_check_branch
      %19 = sbr.rel (0) target = $region5
    $region4: #{tpu_custom_call.1} parent=1 // pred_region
      _
    $region5: #{tpu_custom_call.1} parent=1 // pred_fallthru
      _
    // Predicated region
    $region6: #{tpu_custom_call.1} parent=1 // pred_check
      _
    $region7: #{tpu_custom_call.1} parent=1 // pred_check_branch
      %21 = sbr.rel (0) target = $region9
    $region8: #{tpu_custom_call.1} parent=1 // pred_region
      _
    $region9: #{tpu_custom_call.1} parent=1 // pred_fallthru
      _
    // Predicated region
    $region10: #{tpu_custom_call.1} parent=1 // pred_check
      _
    $region11: #{tpu_custom_call.1} parent=1 // pred_check_branch
      %23 = sbr.rel (0) target = $region13
    $region12: #{tpu_custom_call.1} parent=1 // pred_region
      _
    $region13: #{tpu_custom_call.1} parent=1 // pred_fallthru
      _
    // Predicated region
    $region14: #{tpu_custom_call.1} parent=1 // pred_check
      _
    $region15: #{tpu_custom_call.1} parent=1 // pred_check_branch
      %25 = sbr.rel (0) target = $region17
    $region16: #{tpu_custom_call.1} parent=1 // pred_region
      _
    $region17: #{tpu_custom_call.1} parent=1 // pred_fallthru
      _
    // Predicated region
    $region18: #{tpu_custom_call.1} parent=1 // pred_check
      _
    $region19: #{tpu_custom_call.1} parent=1 // pred_check_branch
      %27 = sbr.rel (0) target = $region21
    $region20: #{tpu_custom_call.1} parent=1 // pred_region
      _
    $region21: #{tpu_custom_call.1} parent=1 // pred_fallthru
      _
    // Predicated region
    $region22: #{tpu_custom_call.1} parent=1 // pred_check
      _
    $region23: #{tpu_custom_call.1} parent=1 // pred_check_branch
      %29 = sbr.rel (0) target = $region25
    $region24: #{tpu_custom_call.1} parent=1 // pred_region
      _
    $region25: #{tpu_custom_call.1} parent=1 // pred_fallthru
      _
    // Predicated region
    $region26: #{tpu_custom_call.1} parent=1 // pred_check
      _
    $region27: #{tpu_custom_call.1} parent=1 // pred_check_branch
      %31 = sbr.rel (0) target = $region29
    $region28: #{tpu_custom_call.1} parent=1 // pred_region
      _
    $region29: #{tpu_custom_call.1} parent=1 // pred_fallthru
      _
    // Predicated region
    $region30: #{tpu_custom_call.1} parent=1 // pred_check
      _
    $region31: #{tpu_custom_call.1} parent=1 // pred_check_branch
      %33 = sbr.rel (0) target = $region33
    $region32: #{tpu_custom_call.1} parent=1 // pred_region
      _
    $region33: #{tpu_custom_call.1} parent=1 // pred_fallthru
      _
    // Predicated region
    $region34: #{tpu_custom_call.1} parent=1 // pred_check
      _
    $region35: #{tpu_custom_call.1} parent=1 // pred_check_branch
      %35 = sbr.rel (0) target = $region37
    $region36: #{tpu_custom_call.1} parent=1 // pred_region
      _
    $region37: #{tpu_custom_call.1} parent=1 // pred_fallthru
      _
    // Predicated region
    $region38: #{tpu_custom_call.1} parent=1 // pred_check
      _
    $region39: #{tpu_custom_call.1} parent=1 // pred_check_branch
      %37 = sbr.rel (0) target = $region41
    $region40: #{tpu_custom_call.1} parent=1 // pred_region
      _
    $region41: #{tpu_custom_call.1} parent=1 // pred_fallthru
      _
    // Predicated region
    $region42: #{tpu_custom_call.1} parent=1 // pred_check
      _
    $region43: #{tpu_custom_call.1} parent=1 // pred_check_branch
      %39 = sbr.rel (0) target = $region45
    $region44: #{tpu_custom_call.1} parent=1 // pred_region
      _
    $region45: #{tpu_custom_call.1} parent=1 // pred_fallthru
      _
    // Predicated region
    $region46: #{tpu_custom_call.1} parent=1 // pred_check
      _
    $region47: #{tpu_custom_call.1} parent=1 // pred_check_branch
      %41 = sbr.rel (0) target = $region49
    $region48: #{tpu_custom_call.1} parent=1 // pred_region
      _
    $region49: #{tpu_custom_call.1} parent=1 // pred_fallthru
      _
    %v42 = vld [vmem:[%s0] sm:$0xff]
    %v43 = vld [vmem:[%s0 + $0x8] sm:$0xff]
    %v44 = vld [vmem:[%s1] sm:$0xff]
    %v45 = vld [vmem:[%s1 + $0x8] sm:$0xff]
    %v46 = vld [vmem:[%s2] sm:$0x1]
    %v47 = vld [vmem:[%s3] sm:$0x1]
    %vm48 = vcmask 261120
    %v49 = vsel %vm48, %v42, 0.0
    %50 = vadd.xlane.f32.xlu0 %v49
    %v51 = vpop.xlane.xlu0 %50
    %v52 = vsel %vm48, %v43, 0.0
    %53 = vadd.xlane.f32.xlu0 %v52
    %v54 = vpop.xlane.xlu0 %53
    %v55 = vrcp.pop 32.0
    %v56 = vmul.f32 %v51, %v55
    %v57 = vmul.f32 %v54, %v55
    %v58 = vsub.f32 %v42, %v56
    %v59 = vsub.f32 %v43, %v57
    %v60 = vmul.f32 %v58, %v58
    %v61 = vmul.f32 %v59, %v59
    %v62 = vsel %vm48, %v60, 0.0
    %63 = vadd.xlane.f32.xlu0 %v62
    %v64 = vpop.xlane.xlu0 %63
    %v65 = vsel %vm48, %v61, 0.0
    %66 = vadd.xlane.f32.xlu0 %v65
    %v67 = vpop.xlane.xlu0 %66
    %v68 = vmul.f32 %v64, %v55
    %v69 = vmul.f32 %v67, %v55
    %v70 = vadd.f32 %v68, 1e-05
    %v71 = vadd.f32 %v69, 1e-05
    %v72 = vrsqrt.pop %v70
    %v73 = vrsqrt.pop %v71
    %v74 = vmul.f32 %v58, %v72
    %v75 = vmul.f32 %v59, %v73
    %v77 = vlaneseq
    %v78 = vshrl.u32 %v77, 7
    %v79 = vsub.s32 0, %v78
    %v80 = vrot.slane %v46, %v79
    %v82 = vmul.f32 %v74, %v80
    %v83 = vmul.f32 %v75, %v80
    %v85 = vlaneseq
    %v86 = vshrl.u32 %v85, 7
    %v87 = vsub.s32 0, %v86
    %v88 = vrot.slane %v47, %v87
    %v90 = vadd.f32 %v82, %v88
    %v91 = vadd.f32 %v83, %v88
    %v92 = vld [vmem:[%s4] sm:$0xff]
    %v93 = vld [vmem:[%s4 + $0x8] sm:$0xff]
    %v94 = vld [vmem:[%s4 + $0x10] sm:$0xff]
    %v95 = vld [vmem:[%s4 + $0x18] sm:$0xff]
    %v96 = vld [vmem:[%s5] sm:$0x1]
    %v98 = vlaneseq
    %v99 = vshrl.u32 %v98, 7
    %v100 = vsub.s32 0, %v99
    %v101 = vrot.slane %v96, %v100
    %v104 = vsel %vm48, %v90, 0
    %v107 = vsel %vm48, %v91, 0
    %109 = vmatprep.subr.mxu0 0.0
    %110 = vmatpush1.msra.mxu0 0.0
    %111 = vmatprep.subr.mxu0 0.0
    %112 = vmatpush1.msra.mxu0 0.0
    %113 = vmatprep.subr.mxu0 0.0
    %114 = vmatpush1.msra.mxu0 0.0
    %115 = vmatprep.subr.mxu0 0.0
    %116 = vmatpush1.msra.mxu0 0.0
    %117 = vmatprep.subr.mxu0 0.0
    %118 = vmatpush1.msra.mxu0 0.0
    %119 = vmatprep.subr.mxu0 0.0
    %120 = vmatpush1.msra.mxu0 0.0
    %121 = vmatprep.subr.mxu0 0.0
    %122 = vmatpush1.msra.mxu0 0.0
    %123 = vmatprep.subr.mxu0 0.0
    %124 = vmatpush1.msra.mxu0 0.0
    %125 = vmatprep.subr.mxu0 0.0
    %126 = vmatpush1.msra.mxu0 0.0
    %127 = vmatprep.subr.mxu0 0.0
    %128 = vmatpush1.msra.mxu0 0.0
    %129 = vmatprep.subr.mxu0 0.0
    %130 = vmatpush1.msra.mxu0 0.0
    %131 = vmatprep.subr.mxu0 0.0
    %132 = vmatpush1.msra.mxu0 0.0
    %133 = vmatprep.subr.mxu0 0.0
    %134 = vmatpush1.msra.mxu0 %v95
    %135 = vmatprep.subr.mxu0 0.0
    %136 = vmatpush1.msra.mxu0 %v94
    %137 = vmatprep.subr.mxu0 0.0
    %138 = vmatpush1.msra.mxu0 %v93
    %139 = vmatprep.subr.mxu0 0.0
    %140 = vmatpush1.msra.mxu0 %v92
    %141 = vmatprep.subr.mxu0 0.0
    %142 = vmatpush2.msra.mxu0 0.0
    %143 = vmatprep.subr.mxu0 0.0
    %144 = vmatpush2.msra.mxu0 0.0
    %145 = vmatprep.subr.mxu0 0.0
    %146 = vmatpush2.msra.mxu0 0.0
    %147 = vmatprep.subr.mxu0 0.0
    %148 = vmatpush2.msra.mxu0 0.0
    %149 = vmatprep.subr.mxu0 0.0
    %150 = vmatpush2.msra.mxu0 0.0
    %151 = vmatprep.subr.mxu0 0.0
    %152 = vmatpush2.msra.mxu0 0.0
    %153 = vmatprep.subr.mxu0 0.0
    %154 = vmatpush2.msra.mxu0 0.0
    %155 = vmatprep.subr.mxu0 0.0
    %156 = vmatpush2.msra.mxu0 0.0
    %157 = vmatprep.subr.mxu0 0.0
    %158 = vmatpush2.msra.mxu0 0.0
    %159 = vmatprep.subr.mxu0 0.0
    %160 = vmatpush2.msra.mxu0 0.0
    %161 = vmatprep.subr.mxu0 0.0
    %162 = vmatpush2.msra.mxu0 0.0
    %163 = vmatprep.subr.mxu0 0.0
    %164 = vmatpush2.msra.mxu0 0.0
    %165 = vmatprep.subr.mxu0 0.0
    %166 = vmatpush2.msra.mxu0 0.0
    %167 = vmatprep.subr.mxu0 0.0
    %168 = vmatpush2.msra.mxu0 0.0
    %169 = vmatprep.subr.mxu0 0.0
    %170 = vmatpush2.msra.mxu0 0.0
    %171 = vmatprep.subr.mxu0 0.0
    %172 = vmatpush2.msra.mxu0 0.0
    %173 = vmatprep.mubr.f32.mxu0 0.0
    %174 = vmatmul.mubr.f32.gmra.mxu0 %v104
    %v175 = vpop.f32.mrf.mxu0
    %v176 = vadd.f32 %v101, %v175
    %v177 = vpop.f32.mrf.mxu0
    %178 = vmatprep.mubr.f32.mxu0 0.0
    %179 = vmatmul.mubr.f32.gmra.mxu0 %v107
    %v180 = vpop.f32.mrf.mxu0
    %v181 = vadd.f32 %v101, %v180
    %v182 = vpop.f32.mrf.mxu0
    %183 = vdwg.mxu0
    %s184 = scalar_lea.vmem %s4, 128
    %v185 = vld [vmem:[%s184] sm:$0xff]
    %v186 = vld [vmem:[%s184 + $0x8] sm:$0xff]
    %v187 = vld [vmem:[%s184 + $0x10] sm:$0xff]
    %v188 = vld [vmem:[%s184 + $0x18] sm:$0xff]
    %s189 = scalar_lea.vmem %s5, 4
    %v190 = vld [vmem:[%s189] sm:$0x1]
    %v192 = vlaneseq
    %v193 = vshrl.u32 %v192, 7
    %v194 = vsub.s32 0, %v193
    %v195 = vrot.slane %v190, %v194
    %197 = vmatprep.subr.mxu0 0.0
    %198 = vmatpush1.msra.mxu0 0.0
    %199 = vmatprep.subr.mxu0 0.0
    %200 = vmatpush1.msra.mxu0 0.0
    %201 = vmatprep.subr.mxu0 0.0
    %202 = vmatpush1.msra.mxu0 0.0
    %203 = vmatprep.subr.mxu0 0.0
    %204 = vmatpush1.msra.mxu0 0.0
    %205 = vmatprep.subr.mxu0 0.0
    %206 = vmatpush1.msra.mxu0 0.0
    %207 = vmatprep.subr.mxu0 0.0
    %208 = vmatpush1.msra.mxu0 0.0
    %209 = vmatprep.subr.mxu0 0.0
    %210 = vmatpush1.msra.mxu0 0.0
    %211 = vmatprep.subr.mxu0 0.0
    %212 = vmatpush1.msra.mxu0 0.0
    %213 = vmatprep.subr.mxu0 0.0
    %214 = vmatpush1.msra.mxu0 0.0
    %215 = vmatprep.subr.mxu0 0.0
    %216 = vmatpush1.msra.mxu0 0.0
    %217 = vmatprep.subr.mxu0 0.0
    %218 = vmatpush1.msra.mxu0 0.0
    %219 = vmatprep.subr.mxu0 0.0
    %220 = vmatpush1.msra.mxu0 0.0
    %221 = vmatprep.subr.mxu0 0.0
    %222 = vmatpush1.msra.mxu0 %v188
    %223 = vmatprep.subr.mxu0 0.0
    %224 = vmatpush1.msra.mxu0 %v187
    %225 = vmatprep.subr.mxu0 0.0
    %226 = vmatpush1.msra.mxu0 %v186
    %227 = vmatprep.subr.mxu0 0.0
    %228 = vmatpush1.msra.mxu0 %v185
    %229 = vmatprep.subr.mxu0 0.0
    %230 = vmatpush2.msra.mxu0 0.0
    %231 = vmatprep.subr.mxu0 0.0
    %232 = vmatpush2.msra.mxu0 0.0
    %233 = vmatprep.subr.mxu0 0.0
    %234 = vmatpush2.msra.mxu0 0.0
    %235 = vmatprep.subr.mxu0 0.0
    %236 = vmatpush2.msra.mxu0 0.0
    %237 = vmatprep.subr.mxu0 0.0
    %238 = vmatpush2.msra.mxu0 0.0
    %239 = vmatprep.subr.mxu0 0.0
    %240 = vmatpush2.msra.mxu0 0.0
    %241 = vmatprep.subr.mxu0 0.0
    %242 = vmatpush2.msra.mxu0 0.0
    %243 = vmatprep.subr.mxu0 0.0
    %244 = vmatpush2.msra.mxu0 0.0
    %245 = vmatprep.subr.mxu0 0.0
    %246 = vmatpush2.msra.mxu0 0.0
    %247 = vmatprep.subr.mxu0 0.0
    %248 = vmatpush2.msra.mxu0 0.0
    %249 = vmatprep.subr.mxu0 0.0
    %250 = vmatpush2.msra.mxu0 0.0
    %251 = vmatprep.subr.mxu0 0.0
    %252 = vmatpush2.msra.mxu0 0.0
    %253 = vmatprep.subr.mxu0 0.0
    %254 = vmatpush2.msra.mxu0 0.0
    %255 = vmatprep.subr.mxu0 0.0
    %256 = vmatpush2.msra.mxu0 0.0
    %257 = vmatprep.subr.mxu0 0.0
    %258 = vmatpush2.msra.mxu0 0.0
    %259 = vmatprep.subr.mxu0 0.0
    %260 = vmatpush2.msra.mxu0 0.0
    %261 = vmatprep.mubr.f32.mxu0 0.0
    %262 = vmatmul.mubr.f32.gmra.mxu0 %v104
    %v263 = vpop.f32.mrf.mxu0
    %v264 = vadd.f32 %v195, %v263
    %v265 = vpop.f32.mrf.mxu0
    %266 = vmatprep.mubr.f32.mxu0 0.0
    %267 = vmatmul.mubr.f32.gmra.mxu0 %v107
    %v268 = vpop.f32.mrf.mxu0
    %v269 = vadd.f32 %v195, %v268
    %v270 = vpop.f32.mrf.mxu0
    %271 = vdwg.mxu0
    %s272 = scalar_lea.vmem %s4, 256
    %v273 = vld [vmem:[%s272] sm:$0xff]
    %v274 = vld [vmem:[%s272 + $0x8] sm:$0xff]
    %v275 = vld [vmem:[%s272 + $0x10] sm:$0xff]
    %v276 = vld [vmem:[%s272 + $0x18] sm:$0xff]
    %s277 = scalar_lea.vmem %s5, 8
    %v278 = vld [vmem:[%s277] sm:$0x1]
    %v280 = vlaneseq
    %v281 = vshrl.u32 %v280, 7
    %v282 = vsub.s32 0, %v281
    %v283 = vrot.slane %v278, %v282
    %285 = vmatprep.subr.mxu0 0.0
    %286 = vmatpush1.msra.mxu0 0.0
    %287 = vmatprep.subr.mxu0 0.0
    %288 = vmatpush1.msra.mxu0 0.0
    %289 = vmatprep.subr.mxu0 0.0
    %290 = vmatpush1.msra.mxu0 0.0
    %291 = vmatprep.subr.mxu0 0.0
    %292 = vmatpush1.msra.mxu0 0.0
    %293 = vmatprep.subr.mxu0 0.0
    %294 = vmatpush1.msra.mxu0 0.0
    %295 = vmatprep.subr.mxu0 0.0
    %296 = vmatpush1.msra.mxu0 0.0
    %297 = vmatprep.subr.mxu0 0.0
    %298 = vmatpush1.msra.mxu0 0.0
    %299 = vmatprep.subr.mxu0 0.0
    %300 = vmatpush1.msra.mxu0 0.0
    %301 = vmatprep.subr.mxu0 0.0
    %302 = vmatpush1.msra.mxu0 0.0
    %303 = vmatprep.subr.mxu0 0.0
    %304 = vmatpush1.msra.mxu0 0.0
    %305 = vmatprep.subr.mxu0 0.0
    %306 = vmatpush1.msra.mxu0 0.0
    %307 = vmatprep.subr.mxu0 0.0
    %308 = vmatpush1.msra.mxu0 0.0
    %309 = vmatprep.subr.mxu0 0.0
    %310 = vmatpush1.msra.mxu0 %v276
    %311 = vmatprep.subr.mxu0 0.0
    %312 = vmatpush1.msra.mxu0 %v275
    %313 = vmatprep.subr.mxu0 0.0
    %314 = vmatpush1.msra.mxu0 %v274
    %315 = vmatprep.subr.mxu0 0.0
    %316 = vmatpush1.msra.mxu0 %v273
    %317 = vmatprep.subr.mxu0 0.0
    %318 = vmatpush2.msra.mxu0 0.0
    %319 = vmatprep.subr.mxu0 0.0
    %320 = vmatpush2.msra.mxu0 0.0
    %321 = vmatprep.subr.mxu0 0.0
    %322 = vmatpush2.msra.mxu0 0.0
    %323 = vmatprep.subr.mxu0 0.0
    %324 = vmatpush2.msra.mxu0 0.0
    %325 = vmatprep.subr.mxu0 0.0
    %326 = vmatpush2.msra.mxu0 0.0
    %327 = vmatprep.subr.mxu0 0.0
    %328 = vmatpush2.msra.mxu0 0.0
    %329 = vmatprep.subr.mxu0 0.0
    %330 = vmatpush2.msra.mxu0 0.0
    %331 = vmatprep.subr.mxu0 0.0
    %332 = vmatpush2.msra.mxu0 0.0
    %333 = vmatprep.subr.mxu0 0.0
    %334 = vmatpush2.msra.mxu0 0.0
    %335 = vmatprep.subr.mxu0 0.0
    %336 = vmatpush2.msra.mxu0 0.0
    %337 = vmatprep.subr.mxu0 0.0
    %338 = vmatpush2.msra.mxu0 0.0
    %339 = vmatprep.subr.mxu0 0.0
    %340 = vmatpush2.msra.mxu0 0.0
    %341 = vmatprep.subr.mxu0 0.0
    %342 = vmatpush2.msra.mxu0 0.0
    %343 = vmatprep.subr.mxu0 0.0
    %344 = vmatpush2.msra.mxu0 0.0
    %345 = vmatprep.subr.mxu0 0.0
    %346 = vmatpush2.msra.mxu0 0.0
    %347 = vmatprep.subr.mxu0 0.0
    %348 = vmatpush2.msra.mxu0 0.0
    %349 = vmatprep.mubr.f32.mxu0 0.0
    %350 = vmatmul.mubr.f32.gmra.mxu0 %v104
    %v351 = vpop.f32.mrf.mxu0
    %v352 = vadd.f32 %v283, %v351
    %v353 = vpop.f32.mrf.mxu0
    %354 = vmatprep.mubr.f32.mxu0 0.0
    %355 = vmatmul.mubr.f32.gmra.mxu0 %v107
    %v356 = vpop.f32.mrf.mxu0
    %v357 = vadd.f32 %v283, %v356
    %v358 = vpop.f32.mrf.mxu0
    %359 = vdwg.mxu0
    %vm360 = vcmask 130048
    %v362 = vsel %vm360, %v176, 0
    %v365 = vsel %vm360, %v181, 0
    %v368 = vsel %vm360, %v264, 0
    %v371 = vsel %vm360, %v269, 0
    %373 = vmatprep.subr.mxu0 0.0
    %374 = vmatpush1.xpose.msra.mxu0 0.0
    %375 = vmatprep.subr.mxu0 0.0
    %376 = vmatpush1.xpose.msra.mxu0 0.0
    %377 = vmatprep.subr.mxu0 0.0
    %378 = vmatpush1.xpose.msra.mxu0 0.0
    %379 = vmatprep.subr.mxu0 0.0
    %380 = vmatpush1.xpose.msra.mxu0 0.0
    %381 = vmatprep.subr.mxu0 0.0
    %382 = vmatpush1.xpose.msra.mxu0 0.0
    %383 = vmatprep.subr.mxu0 0.0
    %384 = vmatpush1.xpose.msra.mxu0 0.0
    %385 = vmatprep.subr.mxu0 0.0
    %386 = vmatpush1.xpose.msra.mxu0 0.0
    %387 = vmatprep.subr.mxu0 0.0
    %388 = vmatpush1.xpose.msra.mxu0 0.0
    %389 = vmatprep.subr.mxu0 0.0
    %390 = vmatpush1.xpose.msra.mxu0 0.0
    %391 = vmatprep.subr.mxu0 0.0
    %392 = vmatpush1.xpose.msra.mxu0 0.0
    %393 = vmatprep.subr.mxu0 0.0
    %394 = vmatpush1.xpose.msra.mxu0 0.0
    %395 = vmatprep.subr.mxu0 0.0
    %396 = vmatpush1.xpose.msra.mxu0 0.0
    %397 = vmatprep.subr.mxu0 0.0
    %398 = vmatpush1.xpose.msra.mxu0 0.0
    %399 = vmatprep.subr.mxu0 0.0
    %400 = vmatpush1.xpose.msra.mxu0 0.0
    %401 = vmatprep.subr.mxu0 0.0
    %402 = vmatpush1.xpose.msra.mxu0 %v371
    %403 = vmatprep.subr.mxu0 0.0
    %404 = vmatpush1.xpose.msra.mxu0 %v368
    %405 = vmatprep.subr.mxu0 0.0
    %406 = vmatpush2.xpose.msra.mxu0 0.0
    %407 = vmatprep.subr.mxu0 0.0
    %408 = vmatpush2.xpose.msra.mxu0 0.0
    %409 = vmatprep.subr.mxu0 0.0
    %410 = vmatpush2.xpose.msra.mxu0 0.0
    %411 = vmatprep.subr.mxu0 0.0
    %412 = vmatpush2.xpose.msra.mxu0 0.0
    %413 = vmatprep.subr.mxu0 0.0
    %414 = vmatpush2.xpose.msra.mxu0 0.0
    %415 = vmatprep.subr.mxu0 0.0
    %416 = vmatpush2.xpose.msra.mxu0 0.0
    %417 = vmatprep.subr.mxu0 0.0
    %418 = vmatpush2.xpose.msra.mxu0 0.0
    %419 = vmatprep.subr.mxu0 0.0
    %420 = vmatpush2.xpose.msra.mxu0 0.0
    %421 = vmatprep.subr.mxu0 0.0
    %422 = vmatpush2.xpose.msra.mxu0 0.0
    %423 = vmatprep.subr.mxu0 0.0
    %424 = vmatpush2.xpose.msra.mxu0 0.0
    %425 = vmatprep.subr.mxu0 0.0
    %426 = vmatpush2.xpose.msra.mxu0 0.0
    %427 = vmatprep.subr.mxu0 0.0
    %428 = vmatpush2.xpose.msra.mxu0 0.0
    %429 = vmatprep.subr.mxu0 0.0
    %430 = vmatpush2.xpose.msra.mxu0 0.0
    %431 = vmatprep.subr.mxu0 0.0
    %432 = vmatpush2.xpose.msra.mxu0 0.0
    %433 = vmatprep.subr.mxu0 0.0
    %434 = vmatpush2.xpose.msra.mxu0 0.0
    %435 = vmatprep.subr.mxu0 0.0
    %436 = vmatpush2.xpose.msra.mxu0 0.0
    %437 = vmatprep.mubr.f32.mxu0 0.0
    %438 = vmatmul.mubr.f32.gmra.mxu0 %v362
    %v439 = vpop.f32.mrf.mxu0
    %v440 = vadd.f32 %v44, %v439
    %v441 = vpop.f32.mrf.mxu0
    %442 = vmatprep.mubr.f32.mxu0 0.0
    %443 = vmatmul.mubr.f32.gmra.mxu0 %v365
    %v444 = vpop.f32.mrf.mxu0
    %v445 = vadd.f32 %v45, %v444
    %v446 = vpop.f32.mrf.mxu0
    %447 = vdwg.mxu0
    %v448 = vsel %vm360, %v440, -inf
    %449 = vmax.xlane.f32.xlu0 %v448
    %v450 = vpop.xlane.xlu0 %449
    %v451 = vsel %vm360, %v445, -inf
    %452 = vmax.xlane.f32.xlu0 %v451
    %v453 = vpop.xlane.xlu0 %452
    %v454 = vsub.f32 %v440, %v450
    %v455 = vsub.f32 %v445, %v453
    %v456 = vmul.f32 %v454, 1.442695
    %v457 = vpow.pop %v456
    %v458 = vmul.f32 %v455, 1.442695
    %v459 = vpow.pop %v458
    %v460 = vsel %vm360, %v457, 0.0
    %461 = vadd.xlane.f32.xlu0 %v460
    %v462 = vpop.xlane.xlu0 %461
    %v463 = vsel %vm360, %v459, 0.0
    %464 = vadd.xlane.f32.xlu0 %v463
    %v465 = vpop.xlane.xlu0 %464
    %v466 = vrcp.pop %v462
    %v467 = vrcp.pop %v465
    %v468 = vmul.f32 %v457, %v466
    %v469 = vmul.f32 %v459, %v467
    %v471 = vsel %vm360, %v468, 0
    %v474 = vsel %vm360, %v469, 0
    %476 = vmatprep.subr.mxu0 0.0
    %477 = vmatpush1.msra.mxu0 0.0
    %478 = vmatprep.subr.mxu0 0.0
    %479 = vmatpush1.msra.mxu0 0.0
    %480 = vmatprep.subr.mxu0 0.0
    %481 = vmatpush1.msra.mxu0 0.0
    %482 = vmatprep.subr.mxu0 0.0
    %483 = vmatpush1.msra.mxu0 0.0
    %484 = vmatprep.subr.mxu0 0.0
    %485 = vmatpush1.msra.mxu0 0.0
    %486 = vmatprep.subr.mxu0 0.0
    %487 = vmatpush1.msra.mxu0 0.0
    %488 = vmatprep.subr.mxu0 0.0
    %489 = vmatpush1.msra.mxu0 0.0
    %490 = vmatprep.subr.mxu0 0.0
    %491 = vmatpush1.msra.mxu0 0.0
    %492 = vmatprep.subr.mxu0 0.0
    %493 = vmatpush1.msra.mxu0 0.0
    %494 = vmatprep.subr.mxu0 0.0
    %495 = vmatpush1.msra.mxu0 0.0
    %496 = vmatprep.subr.mxu0 0.0
    %497 = vmatpush1.msra.mxu0 0.0
    %498 = vmatprep.subr.mxu0 0.0
    %499 = vmatpush1.msra.mxu0 0.0
    %500 = vmatprep.subr.mxu0 0.0
    %501 = vmatpush1.msra.mxu0 0.0
    %502 = vmatprep.subr.mxu0 0.0
    %503 = vmatpush1.msra.mxu0 0.0
    %504 = vmatprep.subr.mxu0 0.0
    %505 = vmatpush1.msra.mxu0 %v357
    %506 = vmatprep.subr.mxu0 0.0
    %507 = vmatpush1.msra.mxu0 %v352
    %508 = vmatprep.subr.mxu0 0.0
    %509 = vmatpush2.msra.mxu0 0.0
    %510 = vmatprep.subr.mxu0 0.0
    %511 = vmatpush2.msra.mxu0 0.0
    %512 = vmatprep.subr.mxu0 0.0
    %513 = vmatpush2.msra.mxu0 0.0
    %514 = vmatprep.subr.mxu0 0.0
    %515 = vmatpush2.msra.mxu0 0.0
    %516 = vmatprep.subr.mxu0 0.0
    %517 = vmatpush2.msra.mxu0 0.0
    %518 = vmatprep.subr.mxu0 0.0
    %519 = vmatpush2.msra.mxu0 0.0
    %520 = vmatprep.subr.mxu0 0.0
    %521 = vmatpush2.msra.mxu0 0.0
    %522 = vmatprep.subr.mxu0 0.0
    %523 = vmatpush2.msra.mxu0 0.0
    %524 = vmatprep.subr.mxu0 0.0
    %525 = vmatpush2.msra.mxu0 0.0
    %526 = vmatprep.subr.mxu0 0.0
    %527 = vmatpush2.msra.mxu0 0.0
    %528 = vmatprep.subr.mxu0 0.0
    %529 = vmatpush2.msra.mxu0 0.0
    %530 = vmatprep.subr.mxu0 0.0
    %531 = vmatpush2.msra.mxu0 0.0
    %532 = vmatprep.subr.mxu0 0.0
    %533 = vmatpush2.msra.mxu0 0.0
    %534 = vmatprep.subr.mxu0 0.0
    %535 = vmatpush2.msra.mxu0 0.0
    %536 = vmatprep.subr.mxu0 0.0
    %537 = vmatpush2.msra.mxu0 0.0
    %538 = vmatprep.subr.mxu0 0.0
    %539 = vmatpush2.msra.mxu0 0.0
    %540 = vmatprep.mubr.f32.mxu0 0.0
    %541 = vmatmul.mubr.f32.gmra.mxu0 %v471
    %v542 = vpop.f32.mrf.mxu0
    %v543 = vadd.f32 0.0, %v542
    %v544 = vpop.f32.mrf.mxu0
    %545 = vmatprep.mubr.f32.mxu0 0.0
    %546 = vmatmul.mubr.f32.gmra.mxu0 %v474
    %v547 = vpop.f32.mrf.mxu0
    %v548 = vadd.f32 0.0, %v547
    %v549 = vpop.f32.mrf.mxu0
    %550 = vdwg.mxu0
    %v551 = vld [vmem:[%s6] sm:$0xff]
    %v552 = vld [vmem:[%s6 + $0x8] sm:$0xff]
    %s553 = scalar_lea.vmem %s4, 32
    %v554 = vld [vmem:[%s553] sm:$0xff]
    %v555 = vld [vmem:[%s553 + $0x8] sm:$0xff]
    %v556 = vld [vmem:[%s553 + $0x10] sm:$0xff]
    %v557 = vld [vmem:[%s553 + $0x18] sm:$0xff]
    %s558 = scalar_lea.vmem %s5, 1
    %v559 = vld [vmem:[%s558] sm:$0x1]
    %v561 = vlaneseq
    %v562 = vshrl.u32 %v561, 7
    %v563 = vsub.s32 0, %v562
    %v564 = vrot.slane %v559, %v563
    %566 = vmatprep.subr.mxu0 0.0
    %567 = vmatpush1.msra.mxu0 0.0
    %568 = vmatprep.subr.mxu0 0.0
    %569 = vmatpush1.msra.mxu0 0.0
    %570 = vmatprep.subr.mxu0 0.0
    %571 = vmatpush1.msra.mxu0 0.0
    %572 = vmatprep.subr.mxu0 0.0
    %573 = vmatpush1.msra.mxu0 0.0
    %574 = vmatprep.subr.mxu0 0.0
    %575 = vmatpush1.msra.mxu0 0.0
    %576 = vmatprep.subr.mxu0 0.0
    %577 = vmatpush1.msra.mxu0 0.0
    %578 = vmatprep.subr.mxu0 0.0
    %579 = vmatpush1.msra.mxu0 0.0
    %580 = vmatprep.subr.mxu0 0.0
    %581 = vmatpush1.msra.mxu0 0.0
    %582 = vmatprep.subr.mxu0 0.0
    %583 = vmatpush1.msra.mxu0 0.0
    %584 = vmatprep.subr.mxu0 0.0
    %585 = vmatpush1.msra.mxu0 0.0
    %586 = vmatprep.subr.mxu0 0.0
    %587 = vmatpush1.msra.mxu0 0.0
    %588 = vmatprep.subr.mxu0 0.0
    %589 = vmatpush1.msra.mxu0 0.0
    %590 = vmatprep.subr.mxu0 0.0
    %591 = vmatpush1.msra.mxu0 %v557
    %592 = vmatprep.subr.mxu0 0.0
    %593 = vmatpush1.msra.mxu0 %v556
    %594 = vmatprep.subr.mxu0 0.0
    %595 = vmatpush1.msra.mxu0 %v555
    %596 = vmatprep.subr.mxu0 0.0
    %597 = vmatpush1.msra.mxu0 %v554
    %598 = vmatprep.subr.mxu0 0.0
    %599 = vmatpush2.msra.mxu0 0.0
    %600 = vmatprep.subr.mxu0 0.0
    %601 = vmatpush2.msra.mxu0 0.0
    %602 = vmatprep.subr.mxu0 0.0
    %603 = vmatpush2.msra.mxu0 0.0
    %604 = vmatprep.subr.mxu0 0.0
    %605 = vmatpush2.msra.mxu0 0.0
    %606 = vmatprep.subr.mxu0 0.0
    %607 = vmatpush2.msra.mxu0 0.0
    %608 = vmatprep.subr.mxu0 0.0
    %609 = vmatpush2.msra.mxu0 0.0
    %610 = vmatprep.subr.mxu0 0.0
    %611 = vmatpush2.msra.mxu0 0.0
    %612 = vmatprep.subr.mxu0 0.0
    %613 = vmatpush2.msra.mxu0 0.0
    %614 = vmatprep.subr.mxu0 0.0
    %615 = vmatpush2.msra.mxu0 0.0
    %616 = vmatprep.subr.mxu0 0.0
    %617 = vmatpush2.msra.mxu0 0.0
    %618 = vmatprep.subr.mxu0 0.0
    %619 = vmatpush2.msra.mxu0 0.0
    %620 = vmatprep.subr.mxu0 0.0
    %621 = vmatpush2.msra.mxu0 0.0
    %622 = vmatprep.subr.mxu0 0.0
    %623 = vmatpush2.msra.mxu0 0.0
    %624 = vmatprep.subr.mxu0 0.0
    %625 = vmatpush2.msra.mxu0 0.0
    %626 = vmatprep.subr.mxu0 0.0
    %627 = vmatpush2.msra.mxu0 0.0
    %628 = vmatprep.subr.mxu0 0.0
    %629 = vmatpush2.msra.mxu0 0.0
    %630 = vmatprep.mubr.f32.mxu0 0.0
    %631 = vmatmul.mubr.f32.gmra.mxu0 %v104
    %v632 = vpop.f32.mrf.mxu0
    %v633 = vadd.f32 %v564, %v632
    %v634 = vpop.f32.mrf.mxu0
    %635 = vmatprep.mubr.f32.mxu0 0.0
    %636 = vmatmul.mubr.f32.gmra.mxu0 %v107
    %v637 = vpop.f32.mrf.mxu0
    %v638 = vadd.f32 %v564, %v637
    %v639 = vpop.f32.mrf.mxu0
    %640 = vdwg.mxu0
    %s641 = scalar_lea.vmem %s4, 160
    %v642 = vld [vmem:[%s641] sm:$0xff]
    %v643 = vld [vmem:[%s641 + $0x8] sm:$0xff]
    %v644 = vld [vmem:[%s641 + $0x10] sm:$0xff]
    %v645 = vld [vmem:[%s641 + $0x18] sm:$0xff]
    %s646 = scalar_lea.vmem %s5, 5
    %v647 = vld [vmem:[%s646] sm:$0x1]
    %v649 = vlaneseq
    %v650 = vshrl.u32 %v649, 7
    %v651 = vsub.s32 0, %v650
    %v652 = vrot.slane %v647, %v651
    %654 = vmatprep.subr.mxu0 0.0
    %655 = vmatpush1.msra.mxu0 0.0
    %656 = vmatprep.subr.mxu0 0.0
    %657 = vmatpush1.msra.mxu0 0.0
    %658 = vmatprep.subr.mxu0 0.0
    %659 = vmatpush1.msra.mxu0 0.0
    %660 = vmatprep.subr.mxu0 0.0
    %661 = vmatpush1.msra.mxu0 0.0
    %662 = vmatprep.subr.mxu0 0.0
    %663 = vmatpush1.msra.mxu0 0.0
    %664 = vmatprep.subr.mxu0 0.0
    %665 = vmatpush1.msra.mxu0 0.0
    %666 = vmatprep.subr.mxu0 0.0
    %667 = vmatpush1.msra.mxu0 0.0
    %668 = vmatprep.subr.mxu0 0.0
    %669 = vmatpush1.msra.mxu0 0.0
    %670 = vmatprep.subr.mxu0 0.0
    %671 = vmatpush1.msra.mxu0 0.0
    %672 = vmatprep.subr.mxu0 0.0
    %673 = vmatpush1.msra.mxu0 0.0
    %674 = vmatprep.subr.mxu0 0.0
    %675 = vmatpush1.msra.mxu0 0.0
    %676 = vmatprep.subr.mxu0 0.0
    %677 = vmatpush1.msra.mxu0 0.0
    %678 = vmatprep.subr.mxu0 0.0
    %679 = vmatpush1.msra.mxu0 %v645
    %680 = vmatprep.subr.mxu0 0.0
    %681 = vmatpush1.msra.mxu0 %v644
    %682 = vmatprep.subr.mxu0 0.0
    %683 = vmatpush1.msra.mxu0 %v643
    %684 = vmatprep.subr.mxu0 0.0
    %685 = vmatpush1.msra.mxu0 %v642
    %686 = vmatprep.subr.mxu0 0.0
    %687 = vmatpush2.msra.mxu0 0.0
    %688 = vmatprep.subr.mxu0 0.0
    %689 = vmatpush2.msra.mxu0 0.0
    %690 = vmatprep.subr.mxu0 0.0
    %691 = vmatpush2.msra.mxu0 0.0
    %692 = vmatprep.subr.mxu0 0.0
    %693 = vmatpush2.msra.mxu0 0.0
    %694 = vmatprep.subr.mxu0 0.0
    %695 = vmatpush2.msra.mxu0 0.0
    %696 = vmatprep.subr.mxu0 0.0
    %697 = vmatpush2.msra.mxu0 0.0
    %698 = vmatprep.subr.mxu0 0.0
    %699 = vmatpush2.msra.mxu0 0.0
    %700 = vmatprep.subr.mxu0 0.0
    %701 = vmatpush2.msra.mxu0 0.0
    %702 = vmatprep.subr.mxu0 0.0
    %703 = vmatpush2.msra.mxu0 0.0
    %704 = vmatprep.subr.mxu0 0.0
    %705 = vmatpush2.msra.mxu0 0.0
    %706 = vmatprep.subr.mxu0 0.0
    %707 = vmatpush2.msra.mxu0 0.0
    %708 = vmatprep.subr.mxu0 0.0
    %709 = vmatpush2.msra.mxu0 0.0
    %710 = vmatprep.subr.mxu0 0.0
    %711 = vmatpush2.msra.mxu0 0.0
    %712 = vmatprep.subr.mxu0 0.0
    %713 = vmatpush2.msra.mxu0 0.0
    %714 = vmatprep.subr.mxu0 0.0
    %715 = vmatpush2.msra.mxu0 0.0
    %716 = vmatprep.subr.mxu0 0.0
    %717 = vmatpush2.msra.mxu0 0.0
    %718 = vmatprep.mubr.f32.mxu0 0.0
    %719 = vmatmul.mubr.f32.gmra.mxu0 %v104
    %v720 = vpop.f32.mrf.mxu0
    %v721 = vadd.f32 %v652, %v720
    %v722 = vpop.f32.mrf.mxu0
    %723 = vmatprep.mubr.f32.mxu0 0.0
    %724 = vmatmul.mubr.f32.gmra.mxu0 %v107
    %v725 = vpop.f32.mrf.mxu0
    %v726 = vadd.f32 %v652, %v725
    %v727 = vpop.f32.mrf.mxu0
    %728 = vdwg.mxu0
    %s729 = scalar_lea.vmem %s4, 288
    %v730 = vld [vmem:[%s729] sm:$0xff]
    %v731 = vld [vmem:[%s729 + $0x8] sm:$0xff]
    %v732 = vld [vmem:[%s729 + $0x10] sm:$0xff]
    %v733 = vld [vmem:[%s729 + $0x18] sm:$0xff]
    %s734 = scalar_lea.vmem %s5, 9
    %v735 = vld [vmem:[%s734] sm:$0x1]
    %v737 = vlaneseq
    %v738 = vshrl.u32 %v737, 7
    %v739 = vsub.s32 0, %v738
    %v740 = vrot.slane %v735, %v739
    %742 = vmatprep.subr.mxu0 0.0
    %743 = vmatpush1.msra.mxu0 0.0
    %744 = vmatprep.subr.mxu0 0.0
    %745 = vmatpush1.msra.mxu0 0.0
    %746 = vmatprep.subr.mxu0 0.0
    %747 = vmatpush1.msra.mxu0 0.0
    %748 = vmatprep.subr.mxu0 0.0
    %749 = vmatpush1.msra.mxu0 0.0
    %750 = vmatprep.subr.mxu0 0.0
    %751 = vmatpush1.msra.mxu0 0.0
    %752 = vmatprep.subr.mxu0 0.0
    %753 = vmatpush1.msra.mxu0 0.0
    %754 = vmatprep.subr.mxu0 0.0
    %755 = vmatpush1.msra.mxu0 0.0
    %756 = vmatprep.subr.mxu0 0.0
    %757 = vmatpush1.msra.mxu0 0.0
    %758 = vmatprep.subr.mxu0 0.0
    %759 = vmatpush1.msra.mxu0 0.0
    %760 = vmatprep.subr.mxu0 0.0
    %761 = vmatpush1.msra.mxu0 0.0
    %762 = vmatprep.subr.mxu0 0.0
    %763 = vmatpush1.msra.mxu0 0.0
    %764 = vmatprep.subr.mxu0 0.0
    %765 = vmatpush1.msra.mxu0 0.0
    %766 = vmatprep.subr.mxu0 0.0
    %767 = vmatpush1.msra.mxu0 %v733
    %768 = vmatprep.subr.mxu0 0.0
    %769 = vmatpush1.msra.mxu0 %v732
    %770 = vmatprep.subr.mxu0 0.0
    %771 = vmatpush1.msra.mxu0 %v731
    %772 = vmatprep.subr.mxu0 0.0
    %773 = vmatpush1.msra.mxu0 %v730
    %774 = vmatprep.subr.mxu0 0.0
    %775 = vmatpush2.msra.mxu0 0.0
    %776 = vmatprep.subr.mxu0 0.0
    %777 = vmatpush2.msra.mxu0 0.0
    %778 = vmatprep.subr.mxu0 0.0
    %779 = vmatpush2.msra.mxu0 0.0
    %780 = vmatprep.subr.mxu0 0.0
    %781 = vmatpush2.msra.mxu0 0.0
    %782 = vmatprep.subr.mxu0 0.0
    %783 = vmatpush2.msra.mxu0 0.0
    %784 = vmatprep.subr.mxu0 0.0
    %785 = vmatpush2.msra.mxu0 0.0
    %786 = vmatprep.subr.mxu0 0.0
    %787 = vmatpush2.msra.mxu0 0.0
    %788 = vmatprep.subr.mxu0 0.0
    %789 = vmatpush2.msra.mxu0 0.0
    %790 = vmatprep.subr.mxu0 0.0
    %791 = vmatpush2.msra.mxu0 0.0
    %792 = vmatprep.subr.mxu0 0.0
    %793 = vmatpush2.msra.mxu0 0.0
    %794 = vmatprep.subr.mxu0 0.0
    %795 = vmatpush2.msra.mxu0 0.0
    %796 = vmatprep.subr.mxu0 0.0
    %797 = vmatpush2.msra.mxu0 0.0
    %798 = vmatprep.subr.mxu0 0.0
    %799 = vmatpush2.msra.mxu0 0.0
    %800 = vmatprep.subr.mxu0 0.0
    %801 = vmatpush2.msra.mxu0 0.0
    %802 = vmatprep.subr.mxu0 0.0
    %803 = vmatpush2.msra.mxu0 0.0
    %804 = vmatprep.subr.mxu0 0.0
    %805 = vmatpush2.msra.mxu0 0.0
    %806 = vmatprep.mubr.f32.mxu0 0.0
    %807 = vmatmul.mubr.f32.gmra.mxu0 %v104
    %v808 = vpop.f32.mrf.mxu0
    %v809 = vadd.f32 %v740, %v808
    %v810 = vpop.f32.mrf.mxu0
    %811 = vmatprep.mubr.f32.mxu0 0.0
    %812 = vmatmul.mubr.f32.gmra.mxu0 %v107
    %v813 = vpop.f32.mrf.mxu0
    %v814 = vadd.f32 %v740, %v813
    %v815 = vpop.f32.mrf.mxu0
    %816 = vdwg.mxu0
    %v818 = vsel %vm360, %v633, 0
    %v821 = vsel %vm360, %v638, 0
    %v824 = vsel %vm360, %v721, 0
    %v827 = vsel %vm360, %v726, 0
    %829 = vmatprep.subr.mxu0 0.0
    %830 = vmatpush1.xpose.msra.mxu0 0.0
    %831 = vmatprep.subr.mxu0 0.0
    %832 = vmatpush1.xpose.msra.mxu0 0.0
    %833 = vmatprep.subr.mxu0 0.0
    %834 = vmatpush1.xpose.msra.mxu0 0.0
    %835 = vmatprep.subr.mxu0 0.0
    %836 = vmatpush1.xpose.msra.mxu0 0.0
    %837 = vmatprep.subr.mxu0 0.0
    %838 = vmatpush1.xpose.msra.mxu0 0.0
    %839 = vmatprep.subr.mxu0 0.0
    %840 = vmatpush1.xpose.msra.mxu0 0.0
    %841 = vmatprep.subr.mxu0 0.0
    %842 = vmatpush1.xpose.msra.mxu0 0.0
    %843 = vmatprep.subr.mxu0 0.0
    %844 = vmatpush1.xpose.msra.mxu0 0.0
    %845 = vmatprep.subr.mxu0 0.0
    %846 = vmatpush1.xpose.msra.mxu0 0.0
    %847 = vmatprep.subr.mxu0 0.0
    %848 = vmatpush1.xpose.msra.mxu0 0.0
    %849 = vmatprep.subr.mxu0 0.0
    %850 = vmatpush1.xpose.msra.mxu0 0.0
    %851 = vmatprep.subr.mxu0 0.0
    %852 = vmatpush1.xpose.msra.mxu0 0.0
    %853 = vmatprep.subr.mxu0 0.0
    %854 = vmatpush1.xpose.msra.mxu0 0.0
    %855 = vmatprep.subr.mxu0 0.0
    %856 = vmatpush1.xpose.msra.mxu0 0.0
    %857 = vmatprep.subr.mxu0 0.0
    %858 = vmatpush1.xpose.msra.mxu0 %v827
    %859 = vmatprep.subr.mxu0 0.0
    %860 = vmatpush1.xpose.msra.mxu0 %v824
    %861 = vmatprep.subr.mxu0 0.0
    %862 = vmatpush2.xpose.msra.mxu0 0.0
    %863 = vmatprep.subr.mxu0 0.0
    %864 = vmatpush2.xpose.msra.mxu0 0.0
    %865 = vmatprep.subr.mxu0 0.0
    %866 = vmatpush2.xpose.msra.mxu0 0.0
    %867 = vmatprep.subr.mxu0 0.0
    %868 = vmatpush2.xpose.msra.mxu0 0.0
    %869 = vmatprep.subr.mxu0 0.0
    %870 = vmatpush2.xpose.msra.mxu0 0.0
    %871 = vmatprep.subr.mxu0 0.0
    %872 = vmatpush2.xpose.msra.mxu0 0.0
    %873 = vmatprep.subr.mxu0 0.0
    %874 = vmatpush2.xpose.msra.mxu0 0.0
    %875 = vmatprep.subr.mxu0 0.0
    %876 = vmatpush2.xpose.msra.mxu0 0.0
    %877 = vmatprep.subr.mxu0 0.0
    %878 = vmatpush2.xpose.msra.mxu0 0.0
    %879 = vmatprep.subr.mxu0 0.0
    %880 = vmatpush2.xpose.msra.mxu0 0.0
    %881 = vmatprep.subr.mxu0 0.0
    %882 = vmatpush2.xpose.msra.mxu0 0.0
    %883 = vmatprep.subr.mxu0 0.0
    %884 = vmatpush2.xpose.msra.mxu0 0.0
    %885 = vmatprep.subr.mxu0 0.0
    %886 = vmatpush2.xpose.msra.mxu0 0.0
    %887 = vmatprep.subr.mxu0 0.0
    %888 = vmatpush2.xpose.msra.mxu0 0.0
    %889 = vmatprep.subr.mxu0 0.0
    %890 = vmatpush2.xpose.msra.mxu0 0.0
    %891 = vmatprep.subr.mxu0 0.0
    %892 = vmatpush2.xpose.msra.mxu0 0.0
    %893 = vmatprep.mubr.f32.mxu0 0.0
    %894 = vmatmul.mubr.f32.gmra.mxu0 %v818
    %v895 = vpop.f32.mrf.mxu0
    %v896 = vadd.f32 %v44, %v895
    %v897 = vpop.f32.mrf.mxu0
    %898 = vmatprep.mubr.f32.mxu0 0.0
    %899 = vmatmul.mubr.f32.gmra.mxu0 %v821
    %v900 = vpop.f32.mrf.mxu0
    %v901 = vadd.f32 %v45, %v900
    %v902 = vpop.f32.mrf.mxu0
    %903 = vdwg.mxu0
    %v904 = vsel %vm360, %v896, -inf
    %905 = vmax.xlane.f32.xlu0 %v904
    %v906 = vpop.xlane.xlu0 %905
    %v907 = vsel %vm360, %v901, -inf
    %908 = vmax.xlane.f32.xlu0 %v907
    %v909 = vpop.xlane.xlu0 %908
    %v910 = vsub.f32 %v896, %v906
    %v911 = vsub.f32 %v901, %v909
    %v912 = vmul.f32 %v910, 1.442695
    %v913 = vpow.pop %v912
    %v914 = vmul.f32 %v911, 1.442695
    %v915 = vpow.pop %v914
    %v916 = vsel %vm360, %v913, 0.0
    %917 = vadd.xlane.f32.xlu0 %v916
    %v918 = vpop.xlane.xlu0 %917
    %v919 = vsel %vm360, %v915, 0.0
    %920 = vadd.xlane.f32.xlu0 %v919
    %v921 = vpop.xlane.xlu0 %920
    %v922 = vrcp.pop %v918
    %v923 = vrcp.pop %v921
    %v924 = vmul.f32 %v913, %v922
    %v925 = vmul.f32 %v915, %v923
    %v927 = vsel %vm360, %v924, 0
    %v930 = vsel %vm360, %v925, 0
    %932 = vmatprep.subr.mxu0 0.0
    %933 = vmatpush1.msra.mxu0 0.0
    %934 = vmatprep.subr.mxu0 0.0
    %935 = vmatpush1.msra.mxu0 0.0
    %936 = vmatprep.subr.mxu0 0.0
    %937 = vmatpush1.msra.mxu0 0.0
    %938 = vmatprep.subr.mxu0 0.0
    %939 = vmatpush1.msra.mxu0 0.0
    %940 = vmatprep.subr.mxu0 0.0
    %941 = vmatpush1.msra.mxu0 0.0
    %942 = vmatprep.subr.mxu0 0.0
    %943 = vmatpush1.msra.mxu0 0.0
    %944 = vmatprep.subr.mxu0 0.0
    %945 = vmatpush1.msra.mxu0 0.0
    %946 = vmatprep.subr.mxu0 0.0
    %947 = vmatpush1.msra.mxu0 0.0
    %948 = vmatprep.subr.mxu0 0.0
    %949 = vmatpush1.msra.mxu0 0.0
    %950 = vmatprep.subr.mxu0 0.0
    %951 = vmatpush1.msra.mxu0 0.0
    %952 = vmatprep.subr.mxu0 0.0
    %953 = vmatpush1.msra.mxu0 0.0
    %954 = vmatprep.subr.mxu0 0.0
    %955 = vmatpush1.msra.mxu0 0.0
    %956 = vmatprep.subr.mxu0 0.0
    %957 = vmatpush1.msra.mxu0 0.0
    %958 = vmatprep.subr.mxu0 0.0
    %959 = vmatpush1.msra.mxu0 0.0
    %960 = vmatprep.subr.mxu0 0.0
    %961 = vmatpush1.msra.mxu0 %v814
    %962 = vmatprep.subr.mxu0 0.0
    %963 = vmatpush1.msra.mxu0 %v809
    %964 = vmatprep.subr.mxu0 0.0
    %965 = vmatpush2.msra.mxu0 0.0
    %966 = vmatprep.subr.mxu0 0.0
    %967 = vmatpush2.msra.mxu0 0.0
    %968 = vmatprep.subr.mxu0 0.0
    %969 = vmatpush2.msra.mxu0 0.0
    %970 = vmatprep.subr.mxu0 0.0
    %971 = vmatpush2.msra.mxu0 0.0
    %972 = vmatprep.subr.mxu0 0.0
    %973 = vmatpush2.msra.mxu0 0.0
    %974 = vmatprep.subr.mxu0 0.0
    %975 = vmatpush2.msra.mxu0 0.0
    %976 = vmatprep.subr.mxu0 0.0
    %977 = vmatpush2.msra.mxu0 0.0
    %978 = vmatprep.subr.mxu0 0.0
    %979 = vmatpush2.msra.mxu0 0.0
    %980 = vmatprep.subr.mxu0 0.0
    %981 = vmatpush2.msra.mxu0 0.0
    %982 = vmatprep.subr.mxu0 0.0
    %983 = vmatpush2.msra.mxu0 0.0
    %984 = vmatprep.subr.mxu0 0.0
    %985 = vmatpush2.msra.mxu0 0.0
    %986 = vmatprep.subr.mxu0 0.0
    %987 = vmatpush2.msra.mxu0 0.0
    %988 = vmatprep.subr.mxu0 0.0
    %989 = vmatpush2.msra.mxu0 0.0
    %990 = vmatprep.subr.mxu0 0.0
    %991 = vmatpush2.msra.mxu0 0.0
    %992 = vmatprep.subr.mxu0 0.0
    %993 = vmatpush2.msra.mxu0 0.0
    %994 = vmatprep.subr.mxu0 0.0
    %995 = vmatpush2.msra.mxu0 0.0
    %996 = vmatprep.mubr.f32.mxu0 0.0
    %997 = vmatmul.mubr.f32.gmra.mxu0 %v927
    %v998 = vpop.f32.mrf.mxu0
    %v999 = vadd.f32 0.0, %v998
    %v1000 = vpop.f32.mrf.mxu0
    %1001 = vmatprep.mubr.f32.mxu0 0.0
    %1002 = vmatmul.mubr.f32.gmra.mxu0 %v930
    %v1003 = vpop.f32.mrf.mxu0
    %v1004 = vadd.f32 0.0, %v1003
    %v1005 = vpop.f32.mrf.mxu0
    %1006 = vdwg.mxu0
    %s1007 = scalar_lea.vmem %s6, 16
    %v1008 = vld [vmem:[%s1007] sm:$0xff]
    %v1009 = vld [vmem:[%s1007 + $0x8] sm:$0xff]
    %v1011 = vsel %vm360, %v999, 0
    %v1014 = vsel %vm360, %v1004, 0
    %1016 = vmatprep.subr.mxu0 0.0
    %1017 = vmatpush1.msra.mxu0 0.0
    %1018 = vmatprep.subr.mxu0 0.0
    %1019 = vmatpush1.msra.mxu0 0.0
    %1020 = vmatprep.subr.mxu0 0.0
    %1021 = vmatpush1.msra.mxu0 0.0
    %1022 = vmatprep.subr.mxu0 0.0
    %1023 = vmatpush1.msra.mxu0 0.0
    %1024 = vmatprep.subr.mxu0 0.0
    %1025 = vmatpush1.msra.mxu0 0.0
    %1026 = vmatprep.subr.mxu0 0.0
    %1027 = vmatpush1.msra.mxu0 0.0
    %1028 = vmatprep.subr.mxu0 0.0
    %1029 = vmatpush1.msra.mxu0 0.0
    %1030 = vmatprep.subr.mxu0 0.0
    %1031 = vmatpush1.msra.mxu0 0.0
    %1032 = vmatprep.subr.mxu0 0.0
    %1033 = vmatpush1.msra.mxu0 0.0
    %1034 = vmatprep.subr.mxu0 0.0
    %1035 = vmatpush1.msra.mxu0 0.0
    %1036 = vmatprep.subr.mxu0 0.0
    %1037 = vmatpush1.msra.mxu0 0.0
    %1038 = vmatprep.subr.mxu0 0.0
    %1039 = vmatpush1.msra.mxu0 0.0
    %1040 = vmatprep.subr.mxu0 0.0
    %1041 = vmatpush1.msra.mxu0 0.0
    %1042 = vmatprep.subr.mxu0 0.0
    %1043 = vmatpush1.msra.mxu0 0.0
    %1044 = vmatprep.subr.mxu0 0.0
    %1045 = vmatpush1.msra.mxu0 %v1009
    %1046 = vmatprep.subr.mxu0 0.0
    %1047 = vmatpush1.msra.mxu0 %v1008
    %1048 = vmatprep.subr.mxu0 0.0
    %1049 = vmatpush2.msra.mxu0 0.0
    %1050 = vmatprep.subr.mxu0 0.0
    %1051 = vmatpush2.msra.mxu0 0.0
    %1052 = vmatprep.subr.mxu0 0.0
    %1053 = vmatpush2.msra.mxu0 0.0
    %1054 = vmatprep.subr.mxu0 0.0
    %1055 = vmatpush2.msra.mxu0 0.0
    %1056 = vmatprep.subr.mxu0 0.0
    %1057 = vmatpush2.msra.mxu0 0.0
    %1058 = vmatprep.subr.mxu0 0.0
    %1059 = vmatpush2.msra.mxu0 0.0
    %1060 = vmatprep.subr.mxu0 0.0
    %1061 = vmatpush2.msra.mxu0 0.0
    %1062 = vmatprep.subr.mxu0 0.0
    %1063 = vmatpush2.msra.mxu0 0.0
    %1064 = vmatprep.subr.mxu0 0.0
    %1065 = vmatpush2.msra.mxu0 0.0
    %1066 = vmatprep.subr.mxu0 0.0
    %1067 = vmatpush2.msra.mxu0 0.0
    %1068 = vmatprep.subr.mxu0 0.0
    %1069 = vmatpush2.msra.mxu0 0.0
    %1070 = vmatprep.subr.mxu0 0.0
    %1071 = vmatpush2.msra.mxu0 0.0
    %1072 = vmatprep.subr.mxu0 0.0
    %1073 = vmatpush2.msra.mxu0 0.0
    %1074 = vmatprep.subr.mxu0 0.0
    %1075 = vmatpush2.msra.mxu0 0.0
    %1076 = vmatprep.subr.mxu0 0.0
    %1077 = vmatpush2.msra.mxu0 0.0
    %1078 = vmatprep.subr.mxu0 0.0
    %1079 = vmatpush2.msra.mxu0 0.0
    %1080 = vmatprep.mubr.f32.mxu0 0.0
    %1081 = vmatmul.mubr.f32.gmra.mxu0 %v1011
    %v1082 = vpop.f32.mrf.mxu0
    %v1083 = vadd.f32 0.0, %v1082
    %v1084 = vpop.f32.mrf.mxu0
    %1085 = vmatprep.mubr.f32.mxu0 0.0
    %1086 = vmatmul.mubr.f32.gmra.mxu0 %v1014
    %v1087 = vpop.f32.mrf.mxu0
    %v1088 = vadd.f32 0.0, %v1087
    %v1089 = vpop.f32.mrf.mxu0
    %1090 = vdwg.mxu0
    %v1092 = vsel %vm360, %v543, 0
    %v1095 = vsel %vm360, %v548, 0
    %1097 = vmatprep.subr.mxu0 0.0
    %1098 = vmatpush1.msra.mxu0 0.0
    %1099 = vmatprep.subr.mxu0 0.0
    %1100 = vmatpush1.msra.mxu0 0.0
    %1101 = vmatprep.subr.mxu0 0.0
    %1102 = vmatpush1.msra.mxu0 0.0
    %1103 = vmatprep.subr.mxu0 0.0
    %1104 = vmatpush1.msra.mxu0 0.0
    %1105 = vmatprep.subr.mxu0 0.0
    %1106 = vmatpush1.msra.mxu0 0.0
    %1107 = vmatprep.subr.mxu0 0.0
    %1108 = vmatpush1.msra.mxu0 0.0
    %1109 = vmatprep.subr.mxu0 0.0
    %1110 = vmatpush1.msra.mxu0 0.0
    %1111 = vmatprep.subr.mxu0 0.0
    %1112 = vmatpush1.msra.mxu0 0.0
    %1113 = vmatprep.subr.mxu0 0.0
    %1114 = vmatpush1.msra.mxu0 0.0
    %1115 = vmatprep.subr.mxu0 0.0
    %1116 = vmatpush1.msra.mxu0 0.0
    %1117 = vmatprep.subr.mxu0 0.0
    %1118 = vmatpush1.msra.mxu0 0.0
    %1119 = vmatprep.subr.mxu0 0.0
    %1120 = vmatpush1.msra.mxu0 0.0
    %1121 = vmatprep.subr.mxu0 0.0
    %1122 = vmatpush1.msra.mxu0 0.0
    %1123 = vmatprep.subr.mxu0 0.0
    %1124 = vmatpush1.msra.mxu0 0.0
    %1125 = vmatprep.subr.mxu0 0.0
    %1126 = vmatpush1.msra.mxu0 %v552
    %1127 = vmatprep.subr.mxu0 0.0
    %1128 = vmatpush1.msra.mxu0 %v551
    %1129 = vmatprep.subr.mxu0 0.0
    %1130 = vmatpush2.msra.mxu0 0.0
    %1131 = vmatprep.subr.mxu0 0.0
    %1132 = vmatpush2.msra.mxu0 0.0
    %1133 = vmatprep.subr.mxu0 0.0
    %1134 = vmatpush2.msra.mxu0 0.0
    %1135 = vmatprep.subr.mxu0 0.0
    %1136 = vmatpush2.msra.mxu0 0.0
    %1137 = vmatprep.subr.mxu0 0.0
    %1138 = vmatpush2.msra.mxu0 0.0
    %1139 = vmatprep.subr.mxu0 0.0
    %1140 = vmatpush2.msra.mxu0 0.0
    %1141 = vmatprep.subr.mxu0 0.0
    %1142 = vmatpush2.msra.mxu0 0.0
    %1143 = vmatprep.subr.mxu0 0.0
    %1144 = vmatpush2.msra.mxu0 0.0
    %1145 = vmatprep.subr.mxu0 0.0
    %1146 = vmatpush2.msra.mxu0 0.0
    %1147 = vmatprep.subr.mxu0 0.0
    %1148 = vmatpush2.msra.mxu0 0.0
    %1149 = vmatprep.subr.mxu0 0.0
    %1150 = vmatpush2.msra.mxu0 0.0
    %1151 = vmatprep.subr.mxu0 0.0
    %1152 = vmatpush2.msra.mxu0 0.0
    %1153 = vmatprep.subr.mxu0 0.0
    %1154 = vmatpush2.msra.mxu0 0.0
    %1155 = vmatprep.subr.mxu0 0.0
    %1156 = vmatpush2.msra.mxu0 0.0
    %1157 = vmatprep.subr.mxu0 0.0
    %1158 = vmatpush2.msra.mxu0 0.0
    %1159 = vmatprep.subr.mxu0 0.0
    %1160 = vmatpush2.msra.mxu0 0.0
    %1161 = vmatprep.mubr.f32.mxu0 0.0
    %1162 = vmatmul.mubr.f32.gmra.mxu0 %v1092
    %v1163 = vpop.f32.mrf.mxu0
    %v1164 = vadd.f32 %v1083, %v1163
    %v1165 = vpop.f32.mrf.mxu0
    %1166 = vmatprep.mubr.f32.mxu0 0.0
    %1167 = vmatmul.mubr.f32.gmra.mxu0 %v1095
    %v1168 = vpop.f32.mrf.mxu0
    %v1169 = vadd.f32 %v1088, %v1168
    %v1170 = vpop.f32.mrf.mxu0
    %1171 = vdwg.mxu0
    %s1172 = scalar_lea.vmem %s4, 64
    %v1173 = vld [vmem:[%s1172] sm:$0xff]
    %v1174 = vld [vmem:[%s1172 + $0x8] sm:$0xff]
    %v1175 = vld [vmem:[%s1172 + $0x10] sm:$0xff]
    %v1176 = vld [vmem:[%s1172 + $0x18] sm:$0xff]
    %s1177 = scalar_lea.vmem %s5, 2
    %v1178 = vld [vmem:[%s1177] sm:$0x1]
    %v1180 = vlaneseq
    %v1181 = vshrl.u32 %v1180, 7
    %v1182 = vsub.s32 0, %v1181
    %v1183 = vrot.slane %v1178, %v1182
    %1185 = vmatprep.subr.mxu0 0.0
    %1186 = vmatpush1.msra.mxu0 0.0
    %1187 = vmatprep.subr.mxu0 0.0
    %1188 = vmatpush1.msra.mxu0 0.0
    %1189 = vmatprep.subr.mxu0 0.0
    %1190 = vmatpush1.msra.mxu0 0.0
    %1191 = vmatprep.subr.mxu0 0.0
    %1192 = vmatpush1.msra.mxu0 0.0
    %1193 = vmatprep.subr.mxu0 0.0
    %1194 = vmatpush1.msra.mxu0 0.0
    %1195 = vmatprep.subr.mxu0 0.0
    %1196 = vmatpush1.msra.mxu0 0.0
    %1197 = vmatprep.subr.mxu0 0.0
    %1198 = vmatpush1.msra.mxu0 0.0
    %1199 = vmatprep.subr.mxu0 0.0
    %1200 = vmatpush1.msra.mxu0 0.0
    %1201 = vmatprep.subr.mxu0 0.0
    %1202 = vmatpush1.msra.mxu0 0.0
    %1203 = vmatprep.subr.mxu0 0.0
    %1204 = vmatpush1.msra.mxu0 0.0
    %1205 = vmatprep.subr.mxu0 0.0
    %1206 = vmatpush1.msra.mxu0 0.0
    %1207 = vmatprep.subr.mxu0 0.0
    %1208 = vmatpush1.msra.mxu0 0.0
    %1209 = vmatprep.subr.mxu0 0.0
    %1210 = vmatpush1.msra.mxu0 %v1176
    %1211 = vmatprep.subr.mxu0 0.0
    %1212 = vmatpush1.msra.mxu0 %v1175
    %1213 = vmatprep.subr.mxu0 0.0
    %1214 = vmatpush1.msra.mxu0 %v1174
    %1215 = vmatprep.subr.mxu0 0.0
    %1216 = vmatpush1.msra.mxu0 %v1173
    %1217 = vmatprep.subr.mxu0 0.0
    %1218 = vmatpush2.msra.mxu0 0.0
    %1219 = vmatprep.subr.mxu0 0.0
    %1220 = vmatpush2.msra.mxu0 0.0
    %1221 = vmatprep.subr.mxu0 0.0
    %1222 = vmatpush2.msra.mxu0 0.0
    %1223 = vmatprep.subr.mxu0 0.0
    %1224 = vmatpush2.msra.mxu0 0.0
    %1225 = vmatprep.subr.mxu0 0.0
    %1226 = vmatpush2.msra.mxu0 0.0
    %1227 = vmatprep.subr.mxu0 0.0
    %1228 = vmatpush2.msra.mxu0 0.0
    %1229 = vmatprep.subr.mxu0 0.0
    %1230 = vmatpush2.msra.mxu0 0.0
    %1231 = vmatprep.subr.mxu0 0.0
    %1232 = vmatpush2.msra.mxu0 0.0
    %1233 = vmatprep.subr.mxu0 0.0
    %1234 = vmatpush2.msra.mxu0 0.0
    %1235 = vmatprep.subr.mxu0 0.0
    %1236 = vmatpush2.msra.mxu0 0.0
    %1237 = vmatprep.subr.mxu0 0.0
    %1238 = vmatpush2.msra.mxu0 0.0
    %1239 = vmatprep.subr.mxu0 0.0
    %1240 = vmatpush2.msra.mxu0 0.0
    %1241 = vmatprep.subr.mxu0 0.0
    %1242 = vmatpush2.msra.mxu0 0.0
    %1243 = vmatprep.subr.mxu0 0.0
    %1244 = vmatpush2.msra.mxu0 0.0
    %1245 = vmatprep.subr.mxu0 0.0
    %1246 = vmatpush2.msra.mxu0 0.0
    %1247 = vmatprep.subr.mxu0 0.0
    %1248 = vmatpush2.msra.mxu0 0.0
    %1249 = vmatprep.mubr.f32.mxu0 0.0
    %1250 = vmatmul.mubr.f32.gmra.mxu0 %v104
    %v1251 = vpop.f32.mrf.mxu0
    %v1252 = vadd.f32 %v1183, %v1251
    %v1253 = vpop.f32.mrf.mxu0
    %1254 = vmatprep.mubr.f32.mxu0 0.0
    %1255 = vmatmul.mubr.f32.gmra.mxu0 %v107
    %v1256 = vpop.f32.mrf.mxu0
    %v1257 = vadd.f32 %v1183, %v1256
    %v1258 = vpop.f32.mrf.mxu0
    %1259 = vdwg.mxu0
    %s1260 = scalar_lea.vmem %s4, 192
    %v1261 = vld [vmem:[%s1260] sm:$0xff]
    %v1262 = vld [vmem:[%s1260 + $0x8] sm:$0xff]
    %v1263 = vld [vmem:[%s1260 + $0x10] sm:$0xff]
    %v1264 = vld [vmem:[%s1260 + $0x18] sm:$0xff]
    %s1265 = scalar_lea.vmem %s5, 6
    %v1266 = vld [vmem:[%s1265] sm:$0x1]
    %v1268 = vlaneseq
    %v1269 = vshrl.u32 %v1268, 7
    %v1270 = vsub.s32 0, %v1269
    %v1271 = vrot.slane %v1266, %v1270
    %1273 = vmatprep.subr.mxu0 0.0
    %1274 = vmatpush1.msra.mxu0 0.0
    %1275 = vmatprep.subr.mxu0 0.0
    %1276 = vmatpush1.msra.mxu0 0.0
    %1277 = vmatprep.subr.mxu0 0.0
    %1278 = vmatpush1.msra.mxu0 0.0
    %1279 = vmatprep.subr.mxu0 0.0
    %1280 = vmatpush1.msra.mxu0 0.0
    %1281 = vmatprep.subr.mxu0 0.0
    %1282 = vmatpush1.msra.mxu0 0.0
    %1283 = vmatprep.subr.mxu0 0.0
    %1284 = vmatpush1.msra.mxu0 0.0
    %1285 = vmatprep.subr.mxu0 0.0
    %1286 = vmatpush1.msra.mxu0 0.0
    %1287 = vmatprep.subr.mxu0 0.0
    %1288 = vmatpush1.msra.mxu0 0.0
    %1289 = vmatprep.subr.mxu0 0.0
    %1290 = vmatpush1.msra.mxu0 0.0
    %1291 = vmatprep.subr.mxu0 0.0
    %1292 = vmatpush1.msra.mxu0 0.0
    %1293 = vmatprep.subr.mxu0 0.0
    %1294 = vmatpush1.msra.mxu0 0.0
    %1295 = vmatprep.subr.mxu0 0.0
    %1296 = vmatpush1.msra.mxu0 0.0
    %1297 = vmatprep.subr.mxu0 0.0
    %1298 = vmatpush1.msra.mxu0 %v1264
    %1299 = vmatprep.subr.mxu0 0.0
    %1300 = vmatpush1.msra.mxu0 %v1263
    %1301 = vmatprep.subr.mxu0 0.0
    %1302 = vmatpush1.msra.mxu0 %v1262
    %1303 = vmatprep.subr.mxu0 0.0
    %1304 = vmatpush1.msra.mxu0 %v1261
    %1305 = vmatprep.subr.mxu0 0.0
    %1306 = vmatpush2.msra.mxu0 0.0
    %1307 = vmatprep.subr.mxu0 0.0
    %1308 = vmatpush2.msra.mxu0 0.0
    %1309 = vmatprep.subr.mxu0 0.0
    %1310 = vmatpush2.msra.mxu0 0.0
    %1311 = vmatprep.subr.mxu0 0.0
    %1312 = vmatpush2.msra.mxu0 0.0
    %1313 = vmatprep.subr.mxu0 0.0
    %1314 = vmatpush2.msra.mxu0 0.0
    %1315 = vmatprep.subr.mxu0 0.0
    %1316 = vmatpush2.msra.mxu0 0.0
    %1317 = vmatprep.subr.mxu0 0.0
    %1318 = vmatpush2.msra.mxu0 0.0
    %1319 = vmatprep.subr.mxu0 0.0
    %1320 = vmatpush2.msra.mxu0 0.0
    %1321 = vmatprep.subr.mxu0 0.0
    %1322 = vmatpush2.msra.mxu0 0.0
    %1323 = vmatprep.subr.mxu0 0.0
    %1324 = vmatpush2.msra.mxu0 0.0
    %1325 = vmatprep.subr.mxu0 0.0
    %1326 = vmatpush2.msra.mxu0 0.0
    %1327 = vmatprep.subr.mxu0 0.0
    %1328 = vmatpush2.msra.mxu0 0.0
    %1329 = vmatprep.subr.mxu0 0.0
    %1330 = vmatpush2.msra.mxu0 0.0
    %1331 = vmatprep.subr.mxu0 0.0
    %1332 = vmatpush2.msra.mxu0 0.0
    %1333 = vmatprep.subr.mxu0 0.0
    %1334 = vmatpush2.msra.mxu0 0.0
    %1335 = vmatprep.subr.mxu0 0.0
    %1336 = vmatpush2.msra.mxu0 0.0
    %1337 = vmatprep.mubr.f32.mxu0 0.0
    %1338 = vmatmul.mubr.f32.gmra.mxu0 %v104
    %v1339 = vpop.f32.mrf.mxu0
    %v1340 = vadd.f32 %v1271, %v1339
    %v1341 = vpop.f32.mrf.mxu0
    %1342 = vmatprep.mubr.f32.mxu0 0.0
    %1343 = vmatmul.mubr.f32.gmra.mxu0 %v107
    %v1344 = vpop.f32.mrf.mxu0
    %v1345 = vadd.f32 %v1271, %v1344
    %v1346 = vpop.f32.mrf.mxu0
    %1347 = vdwg.mxu0
    %s1348 = scalar_lea.vmem %s4, 320
    %v1349 = vld [vmem:[%s1348] sm:$0xff]
    %v1350 = vld [vmem:[%s1348 + $0x8] sm:$0xff]
    %v1351 = vld [vmem:[%s1348 + $0x10] sm:$0xff]
    %v1352 = vld [vmem:[%s1348 + $0x18] sm:$0xff]
    %s1353 = scalar_lea.vmem %s5, 10
    %v1354 = vld [vmem:[%s1353] sm:$0x1]
    %v1356 = vlaneseq
    %v1357 = vshrl.u32 %v1356, 7
    %v1358 = vsub.s32 0, %v1357
    %v1359 = vrot.slane %v1354, %v1358
    %1361 = vmatprep.subr.mxu0 0.0
    %1362 = vmatpush1.msra.mxu0 0.0
    %1363 = vmatprep.subr.mxu0 0.0
    %1364 = vmatpush1.msra.mxu0 0.0
    %1365 = vmatprep.subr.mxu0 0.0
    %1366 = vmatpush1.msra.mxu0 0.0
    %1367 = vmatprep.subr.mxu0 0.0
    %1368 = vmatpush1.msra.mxu0 0.0
    %1369 = vmatprep.subr.mxu0 0.0
    %1370 = vmatpush1.msra.mxu0 0.0
    %1371 = vmatprep.subr.mxu0 0.0
    %1372 = vmatpush1.msra.mxu0 0.0
    %1373 = vmatprep.subr.mxu0 0.0
    %1374 = vmatpush1.msra.mxu0 0.0
    %1375 = vmatprep.subr.mxu0 0.0
    %1376 = vmatpush1.msra.mxu0 0.0
    %1377 = vmatprep.subr.mxu0 0.0
    %1378 = vmatpush1.msra.mxu0 0.0
    %1379 = vmatprep.subr.mxu0 0.0
    %1380 = vmatpush1.msra.mxu0 0.0
    %1381 = vmatprep.subr.mxu0 0.0
    %1382 = vmatpush1.msra.mxu0 0.0
    %1383 = vmatprep.subr.mxu0 0.0
    %1384 = vmatpush1.msra.mxu0 0.0
    %1385 = vmatprep.subr.mxu0 0.0
    %1386 = vmatpush1.msra.mxu0 %v1352
    %1387 = vmatprep.subr.mxu0 0.0
    %1388 = vmatpush1.msra.mxu0 %v1351
    %1389 = vmatprep.subr.mxu0 0.0
    %1390 = vmatpush1.msra.mxu0 %v1350
    %1391 = vmatprep.subr.mxu0 0.0
    %1392 = vmatpush1.msra.mxu0 %v1349
    %1393 = vmatprep.subr.mxu0 0.0
    %1394 = vmatpush2.msra.mxu0 0.0
    %1395 = vmatprep.subr.mxu0 0.0
    %1396 = vmatpush2.msra.mxu0 0.0
    %1397 = vmatprep.subr.mxu0 0.0
    %1398 = vmatpush2.msra.mxu0 0.0
    %1399 = vmatprep.subr.mxu0 0.0
    %1400 = vmatpush2.msra.mxu0 0.0
    %1401 = vmatprep.subr.mxu0 0.0
    %1402 = vmatpush2.msra.mxu0 0.0
    %1403 = vmatprep.subr.mxu0 0.0
    %1404 = vmatpush2.msra.mxu0 0.0
    %1405 = vmatprep.subr.mxu0 0.0
    %1406 = vmatpush2.msra.mxu0 0.0
    %1407 = vmatprep.subr.mxu0 0.0
    %1408 = vmatpush2.msra.mxu0 0.0
    %1409 = vmatprep.subr.mxu0 0.0
    %1410 = vmatpush2.msra.mxu0 0.0
    %1411 = vmatprep.subr.mxu0 0.0
    %1412 = vmatpush2.msra.mxu0 0.0
    %1413 = vmatprep.subr.mxu0 0.0
    %1414 = vmatpush2.msra.mxu0 0.0
    %1415 = vmatprep.subr.mxu0 0.0
    %1416 = vmatpush2.msra.mxu0 0.0
    %1417 = vmatprep.subr.mxu0 0.0
    %1418 = vmatpush2.msra.mxu0 0.0
    %1419 = vmatprep.subr.mxu0 0.0
    %1420 = vmatpush2.msra.mxu0 0.0
    %1421 = vmatprep.subr.mxu0 0.0
    %1422 = vmatpush2.msra.mxu0 0.0
    %1423 = vmatprep.subr.mxu0 0.0
    %1424 = vmatpush2.msra.mxu0 0.0
    %1425 = vmatprep.mubr.f32.mxu0 0.0
    %1426 = vmatmul.mubr.f32.gmra.mxu0 %v104
    %v1427 = vpop.f32.mrf.mxu0
    %v1428 = vadd.f32 %v1359, %v1427
    %v1429 = vpop.f32.mrf.mxu0
    %1430 = vmatprep.mubr.f32.mxu0 0.0
    %1431 = vmatmul.mubr.f32.gmra.mxu0 %v107
    %v1432 = vpop.f32.mrf.mxu0
    %v1433 = vadd.f32 %v1359, %v1432
    %v1434 = vpop.f32.mrf.mxu0
    %1435 = vdwg.mxu0
    %v1437 = vsel %vm360, %v1252, 0
    %v1440 = vsel %vm360, %v1257, 0
    %v1443 = vsel %vm360, %v1340, 0
    %v1446 = vsel %vm360, %v1345, 0
    %1448 = vmatprep.subr.mxu0 0.0
    %1449 = vmatpush1.xpose.msra.mxu0 0.0
    %1450 = vmatprep.subr.mxu0 0.0
    %1451 = vmatpush1.xpose.msra.mxu0 0.0
    %1452 = vmatprep.subr.mxu0 0.0
    %1453 = vmatpush1.xpose.msra.mxu0 0.0
    %1454 = vmatprep.subr.mxu0 0.0
    %1455 = vmatpush1.xpose.msra.mxu0 0.0
    %1456 = vmatprep.subr.mxu0 0.0
    %1457 = vmatpush1.xpose.msra.mxu0 0.0
    %1458 = vmatprep.subr.mxu0 0.0
    %1459 = vmatpush1.xpose.msra.mxu0 0.0
    %1460 = vmatprep.subr.mxu0 0.0
    %1461 = vmatpush1.xpose.msra.mxu0 0.0
    %1462 = vmatprep.subr.mxu0 0.0
    %1463 = vmatpush1.xpose.msra.mxu0 0.0
    %1464 = vmatprep.subr.mxu0 0.0
    %1465 = vmatpush1.xpose.msra.mxu0 0.0
    %1466 = vmatprep.subr.mxu0 0.0
    %1467 = vmatpush1.xpose.msra.mxu0 0.0
    %1468 = vmatprep.subr.mxu0 0.0
    %1469 = vmatpush1.xpose.msra.mxu0 0.0
    %1470 = vmatprep.subr.mxu0 0.0
    %1471 = vmatpush1.xpose.msra.mxu0 0.0
    %1472 = vmatprep.subr.mxu0 0.0
    %1473 = vmatpush1.xpose.msra.mxu0 0.0
    %1474 = vmatprep.subr.mxu0 0.0
    %1475 = vmatpush1.xpose.msra.mxu0 0.0
    %1476 = vmatprep.subr.mxu0 0.0
    %1477 = vmatpush1.xpose.msra.mxu0 %v1446
    %1478 = vmatprep.subr.mxu0 0.0
    %1479 = vmatpush1.xpose.msra.mxu0 %v1443
    %1480 = vmatprep.subr.mxu0 0.0
    %1481 = vmatpush2.xpose.msra.mxu0 0.0
    %1482 = vmatprep.subr.mxu0 0.0
    %1483 = vmatpush2.xpose.msra.mxu0 0.0
    %1484 = vmatprep.subr.mxu0 0.0
    %1485 = vmatpush2.xpose.msra.mxu0 0.0
    %1486 = vmatprep.subr.mxu0 0.0
    %1487 = vmatpush2.xpose.msra.mxu0 0.0
    %1488 = vmatprep.subr.mxu0 0.0
    %1489 = vmatpush2.xpose.msra.mxu0 0.0
    %1490 = vmatprep.subr.mxu0 0.0
    %1491 = vmatpush2.xpose.msra.mxu0 0.0
    %1492 = vmatprep.subr.mxu0 0.0
    %1493 = vmatpush2.xpose.msra.mxu0 0.0
    %1494 = vmatprep.subr.mxu0 0.0
    %1495 = vmatpush2.xpose.msra.mxu0 0.0
    %1496 = vmatprep.subr.mxu0 0.0
    %1497 = vmatpush2.xpose.msra.mxu0 0.0
    %1498 = vmatprep.subr.mxu0 0.0
    %1499 = vmatpush2.xpose.msra.mxu0 0.0
    %1500 = vmatprep.subr.mxu0 0.0
    %1501 = vmatpush2.xpose.msra.mxu0 0.0
    %1502 = vmatprep.subr.mxu0 0.0
    %1503 = vmatpush2.xpose.msra.mxu0 0.0
    %1504 = vmatprep.subr.mxu0 0.0
    %1505 = vmatpush2.xpose.msra.mxu0 0.0
    %1506 = vmatprep.subr.mxu0 0.0
    %1507 = vmatpush2.xpose.msra.mxu0 0.0
    %1508 = vmatprep.subr.mxu0 0.0
    %1509 = vmatpush2.xpose.msra.mxu0 0.0
    %1510 = vmatprep.subr.mxu0 0.0
    %1511 = vmatpush2.xpose.msra.mxu0 0.0
    %1512 = vmatprep.mubr.f32.mxu0 0.0
    %1513 = vmatmul.mubr.f32.gmra.mxu0 %v1437
    %v1514 = vpop.f32.mrf.mxu0
    %v1515 = vadd.f32 %v44, %v1514
    %v1516 = vpop.f32.mrf.mxu0
    %1517 = vmatprep.mubr.f32.mxu0 0.0
    %1518 = vmatmul.mubr.f32.gmra.mxu0 %v1440
    %v1519 = vpop.f32.mrf.mxu0
    %v1520 = vadd.f32 %v45, %v1519
    %v1521 = vpop.f32.mrf.mxu0
    %1522 = vdwg.mxu0
    %v1523 = vsel %vm360, %v1515, -inf
    %1524 = vmax.xlane.f32.xlu0 %v1523
    %v1525 = vpop.xlane.xlu0 %1524
    %v1526 = vsel %vm360, %v1520, -inf
    %1527 = vmax.xlane.f32.xlu0 %v1526
    %v1528 = vpop.xlane.xlu0 %1527
    %v1529 = vsub.f32 %v1515, %v1525
    %v1530 = vsub.f32 %v1520, %v1528
    %v1531 = vmul.f32 %v1529, 1.442695
    %v1532 = vpow.pop %v1531
    %v1533 = vmul.f32 %v1530, 1.442695
    %v1534 = vpow.pop %v1533
    %v1535 = vsel %vm360, %v1532, 0.0
    %1536 = vadd.xlane.f32.xlu0 %v1535
    %v1537 = vpop.xlane.xlu0 %1536
    %v1538 = vsel %vm360, %v1534, 0.0
    %1539 = vadd.xlane.f32.xlu0 %v1538
    %v1540 = vpop.xlane.xlu0 %1539
    %v1541 = vrcp.pop %v1537
    %v1542 = vrcp.pop %v1540
    %v1543 = vmul.f32 %v1532, %v1541
    %v1544 = vmul.f32 %v1534, %v1542
    %v1546 = vsel %vm360, %v1543, 0
    %v1549 = vsel %vm360, %v1544, 0
    %1551 = vmatprep.subr.mxu0 0.0
    %1552 = vmatpush1.msra.mxu0 0.0
    %1553 = vmatprep.subr.mxu0 0.0
    %1554 = vmatpush1.msra.mxu0 0.0
    %1555 = vmatprep.subr.mxu0 0.0
    %1556 = vmatpush1.msra.mxu0 0.0
    %1557 = vmatprep.subr.mxu0 0.0
    %1558 = vmatpush1.msra.mxu0 0.0
    %1559 = vmatprep.subr.mxu0 0.0
    %1560 = vmatpush1.msra.mxu0 0.0
    %1561 = vmatprep.subr.mxu0 0.0
    %1562 = vmatpush1.msra.mxu0 0.0
    %1563 = vmatprep.subr.mxu0 0.0
    %1564 = vmatpush1.msra.mxu0 0.0
    %1565 = vmatprep.subr.mxu0 0.0
    %1566 = vmatpush1.msra.mxu0 0.0
    %1567 = vmatprep.subr.mxu0 0.0
    %1568 = vmatpush1.msra.mxu0 0.0
    %1569 = vmatprep.subr.mxu0 0.0
    %1570 = vmatpush1.msra.mxu0 0.0
    %1571 = vmatprep.subr.mxu0 0.0
    %1572 = vmatpush1.msra.mxu0 0.0
    %1573 = vmatprep.subr.mxu0 0.0
    %1574 = vmatpush1.msra.mxu0 0.0
    %1575 = vmatprep.subr.mxu0 0.0
    %1576 = vmatpush1.msra.mxu0 0.0
    %1577 = vmatprep.subr.mxu0 0.0
    %1578 = vmatpush1.msra.mxu0 0.0
    %1579 = vmatprep.subr.mxu0 0.0
    %1580 = vmatpush1.msra.mxu0 %v1433
    %1581 = vmatprep.subr.mxu0 0.0
    %1582 = vmatpush1.msra.mxu0 %v1428
    %1583 = vmatprep.subr.mxu0 0.0
    %1584 = vmatpush2.msra.mxu0 0.0
    %1585 = vmatprep.subr.mxu0 0.0
    %1586 = vmatpush2.msra.mxu0 0.0
    %1587 = vmatprep.subr.mxu0 0.0
    %1588 = vmatpush2.msra.mxu0 0.0
    %1589 = vmatprep.subr.mxu0 0.0
    %1590 = vmatpush2.msra.mxu0 0.0
    %1591 = vmatprep.subr.mxu0 0.0
    %1592 = vmatpush2.msra.mxu0 0.0
    %1593 = vmatprep.subr.mxu0 0.0
    %1594 = vmatpush2.msra.mxu0 0.0
    %1595 = vmatprep.subr.mxu0 0.0
    %1596 = vmatpush2.msra.mxu0 0.0
    %1597 = vmatprep.subr.mxu0 0.0
    %1598 = vmatpush2.msra.mxu0 0.0
    %1599 = vmatprep.subr.mxu0 0.0
    %1600 = vmatpush2.msra.mxu0 0.0
    %1601 = vmatprep.subr.mxu0 0.0
    %1602 = vmatpush2.msra.mxu0 0.0
    %1603 = vmatprep.subr.mxu0 0.0
    %1604 = vmatpush2.msra.mxu0 0.0
    %1605 = vmatprep.subr.mxu0 0.0
    %1606 = vmatpush2.msra.mxu0 0.0
    %1607 = vmatprep.subr.mxu0 0.0
    %1608 = vmatpush2.msra.mxu0 0.0
    %1609 = vmatprep.subr.mxu0 0.0
    %1610 = vmatpush2.msra.mxu0 0.0
    %1611 = vmatprep.subr.mxu0 0.0
    %1612 = vmatpush2.msra.mxu0 0.0
    %1613 = vmatprep.subr.mxu0 0.0
    %1614 = vmatpush2.msra.mxu0 0.0
    %1615 = vmatprep.mubr.f32.mxu0 0.0
    %1616 = vmatmul.mubr.f32.gmra.mxu0 %v1546
    %v1617 = vpop.f32.mrf.mxu0
    %v1618 = vadd.f32 0.0, %v1617
    %v1619 = vpop.f32.mrf.mxu0
    %1620 = vmatprep.mubr.f32.mxu0 0.0
    %1621 = vmatmul.mubr.f32.gmra.mxu0 %v1549
    %v1622 = vpop.f32.mrf.mxu0
    %v1623 = vadd.f32 0.0, %v1622
    %v1624 = vpop.f32.mrf.mxu0
    %1625 = vdwg.mxu0
    %s1626 = scalar_lea.vmem %s6, 32
    %v1627 = vld [vmem:[%s1626] sm:$0xff]
    %v1628 = vld [vmem:[%s1626 + $0x8] sm:$0xff]
    %v1630 = vsel %vm360, %v1618, 0
    %v1633 = vsel %vm360, %v1623, 0
    %1635 = vmatprep.subr.mxu0 0.0
    %1636 = vmatpush1.msra.mxu0 0.0
    %1637 = vmatprep.subr.mxu0 0.0
    %1638 = vmatpush1.msra.mxu0 0.0
    %1639 = vmatprep.subr.mxu0 0.0
    %1640 = vmatpush1.msra.mxu0 0.0
    %1641 = vmatprep.subr.mxu0 0.0
    %1642 = vmatpush1.msra.mxu0 0.0
    %1643 = vmatprep.subr.mxu0 0.0
    %1644 = vmatpush1.msra.mxu0 0.0
    %1645 = vmatprep.subr.mxu0 0.0
    %1646 = vmatpush1.msra.mxu0 0.0
    %1647 = vmatprep.subr.mxu0 0.0
    %1648 = vmatpush1.msra.mxu0 0.0
    %1649 = vmatprep.subr.mxu0 0.0
    %1650 = vmatpush1.msra.mxu0 0.0
    %1651 = vmatprep.subr.mxu0 0.0
    %1652 = vmatpush1.msra.mxu0 0.0
    %1653 = vmatprep.subr.mxu0 0.0
    %1654 = vmatpush1.msra.mxu0 0.0
    %1655 = vmatprep.subr.mxu0 0.0
    %1656 = vmatpush1.msra.mxu0 0.0
    %1657 = vmatprep.subr.mxu0 0.0
    %1658 = vmatpush1.msra.mxu0 0.0
    %1659 = vmatprep.subr.mxu0 0.0
    %1660 = vmatpush1.msra.mxu0 0.0
    %1661 = vmatprep.subr.mxu0 0.0
    %1662 = vmatpush1.msra.mxu0 0.0
    %1663 = vmatprep.subr.mxu0 0.0
    %1664 = vmatpush1.msra.mxu0 %v1628
    %1665 = vmatprep.subr.mxu0 0.0
    %1666 = vmatpush1.msra.mxu0 %v1627
    %1667 = vmatprep.subr.mxu0 0.0
    %1668 = vmatpush2.msra.mxu0 0.0
    %1669 = vmatprep.subr.mxu0 0.0
    %1670 = vmatpush2.msra.mxu0 0.0
    %1671 = vmatprep.subr.mxu0 0.0
    %1672 = vmatpush2.msra.mxu0 0.0
    %1673 = vmatprep.subr.mxu0 0.0
    %1674 = vmatpush2.msra.mxu0 0.0
    %1675 = vmatprep.subr.mxu0 0.0
    %1676 = vmatpush2.msra.mxu0 0.0
    %1677 = vmatprep.subr.mxu0 0.0
    %1678 = vmatpush2.msra.mxu0 0.0
    %1679 = vmatprep.subr.mxu0 0.0
    %1680 = vmatpush2.msra.mxu0 0.0
    %1681 = vmatprep.subr.mxu0 0.0
    %1682 = vmatpush2.msra.mxu0 0.0
    %1683 = vmatprep.subr.mxu0 0.0
    %1684 = vmatpush2.msra.mxu0 0.0
    %1685 = vmatprep.subr.mxu0 0.0
    %1686 = vmatpush2.msra.mxu0 0.0
    %1687 = vmatprep.subr.mxu0 0.0
    %1688 = vmatpush2.msra.mxu0 0.0
    %1689 = vmatprep.subr.mxu0 0.0
    %1690 = vmatpush2.msra.mxu0 0.0
    %1691 = vmatprep.subr.mxu0 0.0
    %1692 = vmatpush2.msra.mxu0 0.0
    %1693 = vmatprep.subr.mxu0 0.0
    %1694 = vmatpush2.msra.mxu0 0.0
    %1695 = vmatprep.subr.mxu0 0.0
    %1696 = vmatpush2.msra.mxu0 0.0
    %1697 = vmatprep.subr.mxu0 0.0
    %1698 = vmatpush2.msra.mxu0 0.0
    %1699 = vmatprep.mubr.f32.mxu0 0.0
    %1700 = vmatmul.mubr.f32.gmra.mxu0 %v1630
    %v1701 = vpop.f32.mrf.mxu0
    %v1702 = vadd.f32 0.0, %v1701
    %v1703 = vpop.f32.mrf.mxu0
    %1704 = vmatprep.mubr.f32.mxu0 0.0
    %1705 = vmatmul.mubr.f32.gmra.mxu0 %v1633
    %v1706 = vpop.f32.mrf.mxu0
    %v1707 = vadd.f32 0.0, %v1706
    %v1708 = vpop.f32.mrf.mxu0
    %1709 = vdwg.mxu0
    %v1710 = vadd.f32 %v1164, %v1702
    %v1711 = vadd.f32 %v1169, %v1707
    %s1712 = scalar_lea.vmem %s4, 96
    %v1713 = vld [vmem:[%s1712] sm:$0xff]
    %v1714 = vld [vmem:[%s1712 + $0x8] sm:$0xff]
    %v1715 = vld [vmem:[%s1712 + $0x10] sm:$0xff]
    %v1716 = vld [vmem:[%s1712 + $0x18] sm:$0xff]
    %s1717 = scalar_lea.vmem %s5, 3
    %v1718 = vld [vmem:[%s1717] sm:$0x1]
    %v1720 = vlaneseq
    %v1721 = vshrl.u32 %v1720, 7
    %v1722 = vsub.s32 0, %v1721
    %v1723 = vrot.slane %v1718, %v1722
    %1725 = vmatprep.subr.mxu0 0.0
    %1726 = vmatpush1.msra.mxu0 0.0
    %1727 = vmatprep.subr.mxu0 0.0
    %1728 = vmatpush1.msra.mxu0 0.0
    %1729 = vmatprep.subr.mxu0 0.0
    %1730 = vmatpush1.msra.mxu0 0.0
    %1731 = vmatprep.subr.mxu0 0.0
    %1732 = vmatpush1.msra.mxu0 0.0
    %1733 = vmatprep.subr.mxu0 0.0
    %1734 = vmatpush1.msra.mxu0 0.0
    %1735 = vmatprep.subr.mxu0 0.0
    %1736 = vmatpush1.msra.mxu0 0.0
    %1737 = vmatprep.subr.mxu0 0.0
    %1738 = vmatpush1.msra.mxu0 0.0
    %1739 = vmatprep.subr.mxu0 0.0
    %1740 = vmatpush1.msra.mxu0 0.0
    %1741 = vmatprep.subr.mxu0 0.0
    %1742 = vmatpush1.msra.mxu0 0.0
    %1743 = vmatprep.subr.mxu0 0.0
    %1744 = vmatpush1.msra.mxu0 0.0
    %1745 = vmatprep.subr.mxu0 0.0
    %1746 = vmatpush1.msra.mxu0 0.0
    %1747 = vmatprep.subr.mxu0 0.0
    %1748 = vmatpush1.msra.mxu0 0.0
    %1749 = vmatprep.subr.mxu0 0.0
    %1750 = vmatpush1.msra.mxu0 %v1716
    %1751 = vmatprep.subr.mxu0 0.0
    %1752 = vmatpush1.msra.mxu0 %v1715
    %1753 = vmatprep.subr.mxu0 0.0
    %1754 = vmatpush1.msra.mxu0 %v1714
    %1755 = vmatprep.subr.mxu0 0.0
    %1756 = vmatpush1.msra.mxu0 %v1713
    %1757 = vmatprep.subr.mxu0 0.0
    %1758 = vmatpush2.msra.mxu0 0.0
    %1759 = vmatprep.subr.mxu0 0.0
    %1760 = vmatpush2.msra.mxu0 0.0
    %1761 = vmatprep.subr.mxu0 0.0
    %1762 = vmatpush2.msra.mxu0 0.0
    %1763 = vmatprep.subr.mxu0 0.0
    %1764 = vmatpush2.msra.mxu0 0.0
    %1765 = vmatprep.subr.mxu0 0.0
    %1766 = vmatpush2.msra.mxu0 0.0
    %1767 = vmatprep.subr.mxu0 0.0
    %1768 = vmatpush2.msra.mxu0 0.0
    %1769 = vmatprep.subr.mxu0 0.0
    %1770 = vmatpush2.msra.mxu0 0.0
    %1771 = vmatprep.subr.mxu0 0.0
    %1772 = vmatpush2.msra.mxu0 0.0
    %1773 = vmatprep.subr.mxu0 0.0
    %1774 = vmatpush2.msra.mxu0 0.0
    %1775 = vmatprep.subr.mxu0 0.0
    %1776 = vmatpush2.msra.mxu0 0.0
    %1777 = vmatprep.subr.mxu0 0.0
    %1778 = vmatpush2.msra.mxu0 0.0
    %1779 = vmatprep.subr.mxu0 0.0
    %1780 = vmatpush2.msra.mxu0 0.0
    %1781 = vmatprep.subr.mxu0 0.0
    %1782 = vmatpush2.msra.mxu0 0.0
    %1783 = vmatprep.subr.mxu0 0.0
    %1784 = vmatpush2.msra.mxu0 0.0
    %1785 = vmatprep.subr.mxu0 0.0
    %1786 = vmatpush2.msra.mxu0 0.0
    %1787 = vmatprep.subr.mxu0 0.0
    %1788 = vmatpush2.msra.mxu0 0.0
    %1789 = vmatprep.mubr.f32.mxu0 0.0
    %1790 = vmatmul.mubr.f32.gmra.mxu0 %v104
    %v1791 = vpop.f32.mrf.mxu0
    %v1792 = vadd.f32 %v1723, %v1791
    %v1793 = vpop.f32.mrf.mxu0
    %1794 = vmatprep.mubr.f32.mxu0 0.0
    %1795 = vmatmul.mubr.f32.gmra.mxu0 %v107
    %v1796 = vpop.f32.mrf.mxu0
    %v1797 = vadd.f32 %v1723, %v1796
    %v1798 = vpop.f32.mrf.mxu0
    %1799 = vdwg.mxu0
    %s1800 = scalar_lea.vmem %s4, 224
    %v1801 = vld [vmem:[%s1800] sm:$0xff]
    %v1802 = vld [vmem:[%s1800 + $0x8] sm:$0xff]
    %v1803 = vld [vmem:[%s1800 + $0x10] sm:$0xff]
    %v1804 = vld [vmem:[%s1800 + $0x18] sm:$0xff]
    %s1805 = scalar_lea.vmem %s5, 7
    %v1806 = vld [vmem:[%s1805] sm:$0x1]
    %v1808 = vlaneseq
    %v1809 = vshrl.u32 %v1808, 7
    %v1810 = vsub.s32 0, %v1809
    %v1811 = vrot.slane %v1806, %v1810
    %1813 = vmatprep.subr.mxu0 0.0
    %1814 = vmatpush1.msra.mxu0 0.0
    %1815 = vmatprep.subr.mxu0 0.0
    %1816 = vmatpush1.msra.mxu0 0.0
    %1817 = vmatprep.subr.mxu0 0.0
    %1818 = vmatpush1.msra.mxu0 0.0
    %1819 = vmatprep.subr.mxu0 0.0
    %1820 = vmatpush1.msra.mxu0 0.0
    %1821 = vmatprep.subr.mxu0 0.0
    %1822 = vmatpush1.msra.mxu0 0.0
    %1823 = vmatprep.subr.mxu0 0.0
    %1824 = vmatpush1.msra.mxu0 0.0
    %1825 = vmatprep.subr.mxu0 0.0
    %1826 = vmatpush1.msra.mxu0 0.0
    %1827 = vmatprep.subr.mxu0 0.0
    %1828 = vmatpush1.msra.mxu0 0.0
    %1829 = vmatprep.subr.mxu0 0.0
    %1830 = vmatpush1.msra.mxu0 0.0
    %1831 = vmatprep.subr.mxu0 0.0
    %1832 = vmatpush1.msra.mxu0 0.0
    %1833 = vmatprep.subr.mxu0 0.0
    %1834 = vmatpush1.msra.mxu0 0.0
    %1835 = vmatprep.subr.mxu0 0.0
    %1836 = vmatpush1.msra.mxu0 0.0
    %1837 = vmatprep.subr.mxu0 0.0
    %1838 = vmatpush1.msra.mxu0 %v1804
    %1839 = vmatprep.subr.mxu0 0.0
    %1840 = vmatpush1.msra.mxu0 %v1803
    %1841 = vmatprep.subr.mxu0 0.0
    %1842 = vmatpush1.msra.mxu0 %v1802
    %1843 = vmatprep.subr.mxu0 0.0
    %1844 = vmatpush1.msra.mxu0 %v1801
    %1845 = vmatprep.subr.mxu0 0.0
    %1846 = vmatpush2.msra.mxu0 0.0
    %1847 = vmatprep.subr.mxu0 0.0
    %1848 = vmatpush2.msra.mxu0 0.0
    %1849 = vmatprep.subr.mxu0 0.0
    %1850 = vmatpush2.msra.mxu0 0.0
    %1851 = vmatprep.subr.mxu0 0.0
    %1852 = vmatpush2.msra.mxu0 0.0
    %1853 = vmatprep.subr.mxu0 0.0
    %1854 = vmatpush2.msra.mxu0 0.0
    %1855 = vmatprep.subr.mxu0 0.0
    %1856 = vmatpush2.msra.mxu0 0.0
    %1857 = vmatprep.subr.mxu0 0.0
    %1858 = vmatpush2.msra.mxu0 0.0
    %1859 = vmatprep.subr.mxu0 0.0
    %1860 = vmatpush2.msra.mxu0 0.0
    %1861 = vmatprep.subr.mxu0 0.0
    %1862 = vmatpush2.msra.mxu0 0.0
    %1863 = vmatprep.subr.mxu0 0.0
    %1864 = vmatpush2.msra.mxu0 0.0
    %1865 = vmatprep.subr.mxu0 0.0
    %1866 = vmatpush2.msra.mxu0 0.0
    %1867 = vmatprep.subr.mxu0 0.0
    %1868 = vmatpush2.msra.mxu0 0.0
    %1869 = vmatprep.subr.mxu0 0.0
    %1870 = vmatpush2.msra.mxu0 0.0
    %1871 = vmatprep.subr.mxu0 0.0
    %1872 = vmatpush2.msra.mxu0 0.0
    %1873 = vmatprep.subr.mxu0 0.0
    %1874 = vmatpush2.msra.mxu0 0.0
    %1875 = vmatprep.subr.mxu0 0.0
    %1876 = vmatpush2.msra.mxu0 0.0
    %1877 = vmatprep.mubr.f32.mxu0 0.0
    %1878 = vmatmul.mubr.f32.gmra.mxu0 %v104
    %v1879 = vpop.f32.mrf.mxu0
    %v1880 = vadd.f32 %v1811, %v1879
    %v1881 = vpop.f32.mrf.mxu0
    %1882 = vmatprep.mubr.f32.mxu0 0.0
    %1883 = vmatmul.mubr.f32.gmra.mxu0 %v107
    %v1884 = vpop.f32.mrf.mxu0
    %v1885 = vadd.f32 %v1811, %v1884
    %v1886 = vpop.f32.mrf.mxu0
    %1887 = vdwg.mxu0
    %s1888 = scalar_lea.vmem %s4, 352
    %v1889 = vld [vmem:[%s1888] sm:$0xff]
    %v1890 = vld [vmem:[%s1888 + $0x8] sm:$0xff]
    %v1891 = vld [vmem:[%s1888 + $0x10] sm:$0xff]
    %v1892 = vld [vmem:[%s1888 + $0x18] sm:$0xff]
    %s1893 = scalar_lea.vmem %s5, 11
    %v1894 = vld [vmem:[%s1893] sm:$0x1]
    %v1896 = vlaneseq
    %v1897 = vshrl.u32 %v1896, 7
    %v1898 = vsub.s32 0, %v1897
    %v1899 = vrot.slane %v1894, %v1898
    %1901 = vmatprep.subr.mxu0 0.0
    %1902 = vmatpush1.msra.mxu0 0.0
    %1903 = vmatprep.subr.mxu0 0.0
    %1904 = vmatpush1.msra.mxu0 0.0
    %1905 = vmatprep.subr.mxu0 0.0
    %1906 = vmatpush1.msra.mxu0 0.0
    %1907 = vmatprep.subr.mxu0 0.0
    %1908 = vmatpush1.msra.mxu0 0.0
    %1909 = vmatprep.subr.mxu0 0.0
    %1910 = vmatpush1.msra.mxu0 0.0
    %1911 = vmatprep.subr.mxu0 0.0
    %1912 = vmatpush1.msra.mxu0 0.0
    %1913 = vmatprep.subr.mxu0 0.0
    %1914 = vmatpush1.msra.mxu0 0.0
    %1915 = vmatprep.subr.mxu0 0.0
    %1916 = vmatpush1.msra.mxu0 0.0
    %1917 = vmatprep.subr.mxu0 0.0
    %1918 = vmatpush1.msra.mxu0 0.0
    %1919 = vmatprep.subr.mxu0 0.0
    %1920 = vmatpush1.msra.mxu0 0.0
    %1921 = vmatprep.subr.mxu0 0.0
    %1922 = vmatpush1.msra.mxu0 0.0
    %1923 = vmatprep.subr.mxu0 0.0
    %1924 = vmatpush1.msra.mxu0 0.0
    %1925 = vmatprep.subr.mxu0 0.0
    %1926 = vmatpush1.msra.mxu0 %v1892
    %1927 = vmatprep.subr.mxu0 0.0
    %1928 = vmatpush1.msra.mxu0 %v1891
    %1929 = vmatprep.subr.mxu0 0.0
    %1930 = vmatpush1.msra.mxu0 %v1890
    %1931 = vmatprep.subr.mxu0 0.0
    %1932 = vmatpush1.msra.mxu0 %v1889
    %1933 = vmatprep.subr.mxu0 0.0
    %1934 = vmatpush2.msra.mxu0 0.0
    %1935 = vmatprep.subr.mxu0 0.0
    %1936 = vmatpush2.msra.mxu0 0.0
    %1937 = vmatprep.subr.mxu0 0.0
    %1938 = vmatpush2.msra.mxu0 0.0
    %1939 = vmatprep.subr.mxu0 0.0
    %1940 = vmatpush2.msra.mxu0 0.0
    %1941 = vmatprep.subr.mxu0 0.0
    %1942 = vmatpush2.msra.mxu0 0.0
    %1943 = vmatprep.subr.mxu0 0.0
    %1944 = vmatpush2.msra.mxu0 0.0
    %1945 = vmatprep.subr.mxu0 0.0
    %1946 = vmatpush2.msra.mxu0 0.0
    %1947 = vmatprep.subr.mxu0 0.0
    %1948 = vmatpush2.msra.mxu0 0.0
    %1949 = vmatprep.subr.mxu0 0.0
    %1950 = vmatpush2.msra.mxu0 0.0
    %1951 = vmatprep.subr.mxu0 0.0
    %1952 = vmatpush2.msra.mxu0 0.0
    %1953 = vmatprep.subr.mxu0 0.0
    %1954 = vmatpush2.msra.mxu0 0.0
    %1955 = vmatprep.subr.mxu0 0.0
    %1956 = vmatpush2.msra.mxu0 0.0
    %1957 = vmatprep.subr.mxu0 0.0
    %1958 = vmatpush2.msra.mxu0 0.0
    %1959 = vmatprep.subr.mxu0 0.0
    %1960 = vmatpush2.msra.mxu0 0.0
    %1961 = vmatprep.subr.mxu0 0.0
    %1962 = vmatpush2.msra.mxu0 0.0
    %1963 = vmatprep.subr.mxu0 0.0
    %1964 = vmatpush2.msra.mxu0 0.0
    %1965 = vmatprep.mubr.f32.mxu0 0.0
    %1966 = vmatmul.mubr.f32.gmra.mxu0 %v104
    %v1967 = vpop.f32.mrf.mxu0
    %v1968 = vadd.f32 %v1899, %v1967
    %v1969 = vpop.f32.mrf.mxu0
    %1970 = vmatprep.mubr.f32.mxu0 0.0
    %1971 = vmatmul.mubr.f32.gmra.mxu0 %v107
    %v1972 = vpop.f32.mrf.mxu0
    %v1973 = vadd.f32 %v1899, %v1972
    %v1974 = vpop.f32.mrf.mxu0
    %1975 = vdwg.mxu0
    %v1977 = vsel %vm360, %v1792, 0
    %v1980 = vsel %vm360, %v1797, 0
    %v1983 = vsel %vm360, %v1880, 0
    %v1986 = vsel %vm360, %v1885, 0
    %1988 = vmatprep.subr.mxu0 0.0
    %1989 = vmatpush1.xpose.msra.mxu0 0.0
    %1990 = vmatprep.subr.mxu0 0.0
    %1991 = vmatpush1.xpose.msra.mxu0 0.0
    %1992 = vmatprep.subr.mxu0 0.0
    %1993 = vmatpush1.xpose.msra.mxu0 0.0
    %1994 = vmatprep.subr.mxu0 0.0
    %1995 = vmatpush1.xpose.msra.mxu0 0.0
    %1996 = vmatprep.subr.mxu0 0.0
    %1997 = vmatpush1.xpose.msra.mxu0 0.0
    %1998 = vmatprep.subr.mxu0 0.0
    %1999 = vmatpush1.xpose.msra.mxu0 0.0
    %2000 = vmatprep.subr.mxu0 0.0
    %2001 = vmatpush1.xpose.msra.mxu0 0.0
    %2002 = vmatprep.subr.mxu0 0.0
    %2003 = vmatpush1.xpose.msra.mxu0 0.0
    %2004 = vmatprep.subr.mxu0 0.0
    %2005 = vmatpush1.xpose.msra.mxu0 0.0
    %2006 = vmatprep.subr.mxu0 0.0
    %2007 = vmatpush1.xpose.msra.mxu0 0.0
    %2008 = vmatprep.subr.mxu0 0.0
    %2009 = vmatpush1.xpose.msra.mxu0 0.0
    %2010 = vmatprep.subr.mxu0 0.0
    %2011 = vmatpush1.xpose.msra.mxu0 0.0
    %2012 = vmatprep.subr.mxu0 0.0
    %2013 = vmatpush1.xpose.msra.mxu0 0.0
    %2014 = vmatprep.subr.mxu0 0.0
    %2015 = vmatpush1.xpose.msra.mxu0 0.0
    %2016 = vmatprep.subr.mxu0 0.0
    %2017 = vmatpush1.xpose.msra.mxu0 %v1986
    %2018 = vmatprep.subr.mxu0 0.0
    %2019 = vmatpush1.xpose.msra.mxu0 %v1983
    %2020 = vmatprep.subr.mxu0 0.0
    %2021 = vmatpush2.xpose.msra.mxu0 0.0
    %2022 = vmatprep.subr.mxu0 0.0
    %2023 = vmatpush2.xpose.msra.mxu0 0.0
    %2024 = vmatprep.subr.mxu0 0.0
    %2025 = vmatpush2.xpose.msra.mxu0 0.0
    %2026 = vmatprep.subr.mxu0 0.0
    %2027 = vmatpush2.xpose.msra.mxu0 0.0
    %2028 = vmatprep.subr.mxu0 0.0
    %2029 = vmatpush2.xpose.msra.mxu0 0.0
    %2030 = vmatprep.subr.mxu0 0.0
    %2031 = vmatpush2.xpose.msra.mxu0 0.0
    %2032 = vmatprep.subr.mxu0 0.0
    %2033 = vmatpush2.xpose.msra.mxu0 0.0
    %2034 = vmatprep.subr.mxu0 0.0
    %2035 = vmatpush2.xpose.msra.mxu0 0.0
    %2036 = vmatprep.subr.mxu0 0.0
    %2037 = vmatpush2.xpose.msra.mxu0 0.0
    %2038 = vmatprep.subr.mxu0 0.0
    %2039 = vmatpush2.xpose.msra.mxu0 0.0
    %2040 = vmatprep.subr.mxu0 0.0
    %2041 = vmatpush2.xpose.msra.mxu0 0.0
    %2042 = vmatprep.subr.mxu0 0.0
    %2043 = vmatpush2.xpose.msra.mxu0 0.0
    %2044 = vmatprep.subr.mxu0 0.0
    %2045 = vmatpush2.xpose.msra.mxu0 0.0
    %2046 = vmatprep.subr.mxu0 0.0
    %2047 = vmatpush2.xpose.msra.mxu0 0.0
    %2048 = vmatprep.subr.mxu0 0.0
    %2049 = vmatpush2.xpose.msra.mxu0 0.0
    %2050 = vmatprep.subr.mxu0 0.0
    %2051 = vmatpush2.xpose.msra.mxu0 0.0
    %2052 = vmatprep.mubr.f32.mxu0 0.0
    %2053 = vmatmul.mubr.f32.gmra.mxu0 %v1977
    %v2054 = vpop.f32.mrf.mxu0
    %v2055 = vadd.f32 %v44, %v2054
    %v2056 = vpop.f32.mrf.mxu0
    %2057 = vmatprep.mubr.f32.mxu0 0.0
    %2058 = vmatmul.mubr.f32.gmra.mxu0 %v1980
    %v2059 = vpop.f32.mrf.mxu0
    %v2060 = vadd.f32 %v45, %v2059
    %v2061 = vpop.f32.mrf.mxu0
    %2062 = vdwg.mxu0
    %v2063 = vsel %vm360, %v2055, -inf
    %2064 = vmax.xlane.f32.xlu0 %v2063
    %v2065 = vpop.xlane.xlu0 %2064
    %v2066 = vsel %vm360, %v2060, -inf
    %2067 = vmax.xlane.f32.xlu0 %v2066
    %v2068 = vpop.xlane.xlu0 %2067
    %v2069 = vsub.f32 %v2055, %v2065
    %v2070 = vsub.f32 %v2060, %v2068
    %v2071 = vmul.f32 %v2069, 1.442695
    %v2072 = vpow.pop %v2071
    %v2073 = vmul.f32 %v2070, 1.442695
    %v2074 = vpow.pop %v2073
    %v2075 = vsel %vm360, %v2072, 0.0
    %2076 = vadd.xlane.f32.xlu0 %v2075
    %v2077 = vpop.xlane.xlu0 %2076
    %v2078 = vsel %vm360, %v2074, 0.0
    %2079 = vadd.xlane.f32.xlu0 %v2078
    %v2080 = vpop.xlane.xlu0 %2079
    %v2081 = vrcp.pop %v2077
    %v2082 = vrcp.pop %v2080
    %v2083 = vmul.f32 %v2072, %v2081
    %v2084 = vmul.f32 %v2074, %v2082
    %v2086 = vsel %vm360, %v2083, 0
    %v2089 = vsel %vm360, %v2084, 0
    %2091 = vmatprep.subr.mxu0 0.0
    %2092 = vmatpush1.msra.mxu0 0.0
    %2093 = vmatprep.subr.mxu0 0.0
    %2094 = vmatpush1.msra.mxu0 0.0
    %2095 = vmatprep.subr.mxu0 0.0
    %2096 = vmatpush1.msra.mxu0 0.0
    %2097 = vmatprep.subr.mxu0 0.0
    %2098 = vmatpush1.msra.mxu0 0.0
    %2099 = vmatprep.subr.mxu0 0.0
    %2100 = vmatpush1.msra.mxu0 0.0
    %2101 = vmatprep.subr.mxu0 0.0
    %2102 = vmatpush1.msra.mxu0 0.0
    %2103 = vmatprep.subr.mxu0 0.0
    %2104 = vmatpush1.msra.mxu0 0.0
    %2105 = vmatprep.subr.mxu0 0.0
    %2106 = vmatpush1.msra.mxu0 0.0
    %2107 = vmatprep.subr.mxu0 0.0
    %2108 = vmatpush1.msra.mxu0 0.0
    %2109 = vmatprep.subr.mxu0 0.0
    %2110 = vmatpush1.msra.mxu0 0.0
    %2111 = vmatprep.subr.mxu0 0.0
    %2112 = vmatpush1.msra.mxu0 0.0
    %2113 = vmatprep.subr.mxu0 0.0
    %2114 = vmatpush1.msra.mxu0 0.0
    %2115 = vmatprep.subr.mxu0 0.0
    %2116 = vmatpush1.msra.mxu0 0.0
    %2117 = vmatprep.subr.mxu0 0.0
    %2118 = vmatpush1.msra.mxu0 0.0
    %2119 = vmatprep.subr.mxu0 0.0
    %2120 = vmatpush1.msra.mxu0 %v1973
    %2121 = vmatprep.subr.mxu0 0.0
    %2122 = vmatpush1.msra.mxu0 %v1968
    %2123 = vmatprep.subr.mxu0 0.0
    %2124 = vmatpush2.msra.mxu0 0.0
    %2125 = vmatprep.subr.mxu0 0.0
    %2126 = vmatpush2.msra.mxu0 0.0
    %2127 = vmatprep.subr.mxu0 0.0
    %2128 = vmatpush2.msra.mxu0 0.0
    %2129 = vmatprep.subr.mxu0 0.0
    %2130 = vmatpush2.msra.mxu0 0.0
    %2131 = vmatprep.subr.mxu0 0.0
    %2132 = vmatpush2.msra.mxu0 0.0
    %2133 = vmatprep.subr.mxu0 0.0
    %2134 = vmatpush2.msra.mxu0 0.0
    %2135 = vmatprep.subr.mxu0 0.0
    %2136 = vmatpush2.msra.mxu0 0.0
    %2137 = vmatprep.subr.mxu0 0.0
    %2138 = vmatpush2.msra.mxu0 0.0
    %2139 = vmatprep.subr.mxu0 0.0
    %2140 = vmatpush2.msra.mxu0 0.0
    %2141 = vmatprep.subr.mxu0 0.0
    %2142 = vmatpush2.msra.mxu0 0.0
    %2143 = vmatprep.subr.mxu0 0.0
    %2144 = vmatpush2.msra.mxu0 0.0
    %2145 = vmatprep.subr.mxu0 0.0
    %2146 = vmatpush2.msra.mxu0 0.0
    %2147 = vmatprep.subr.mxu0 0.0
    %2148 = vmatpush2.msra.mxu0 0.0
    %2149 = vmatprep.subr.mxu0 0.0
    %2150 = vmatpush2.msra.mxu0 0.0
    %2151 = vmatprep.subr.mxu0 0.0
    %2152 = vmatpush2.msra.mxu0 0.0
    %2153 = vmatprep.subr.mxu0 0.0
    %2154 = vmatpush2.msra.mxu0 0.0
    %2155 = vmatprep.mubr.f32.mxu0 0.0
    %2156 = vmatmul.mubr.f32.gmra.mxu0 %v2086
    %v2157 = vpop.f32.mrf.mxu0
    %v2158 = vadd.f32 0.0, %v2157
    %v2159 = vpop.f32.mrf.mxu0
    %2160 = vmatprep.mubr.f32.mxu0 0.0
    %2161 = vmatmul.mubr.f32.gmra.mxu0 %v2089
    %v2162 = vpop.f32.mrf.mxu0
    %v2163 = vadd.f32 0.0, %v2162
    %v2164 = vpop.f32.mrf.mxu0
    %2165 = vdwg.mxu0
    %s2166 = scalar_lea.vmem %s6, 48
    %v2167 = vld [vmem:[%s2166] sm:$0xff]
    %v2168 = vld [vmem:[%s2166 + $0x8] sm:$0xff]
    %v2170 = vsel %vm360, %v2158, 0
    %v2173 = vsel %vm360, %v2163, 0
    %2175 = vmatprep.subr.mxu0 0.0
    %2176 = vmatpush1.msra.mxu0 0.0
    %2177 = vmatprep.subr.mxu0 0.0
    %2178 = vmatpush1.msra.mxu0 0.0
    %2179 = vmatprep.subr.mxu0 0.0
    %2180 = vmatpush1.msra.mxu0 0.0
    %2181 = vmatprep.subr.mxu0 0.0
    %2182 = vmatpush1.msra.mxu0 0.0
    %2183 = vmatprep.subr.mxu0 0.0
    %2184 = vmatpush1.msra.mxu0 0.0
    %2185 = vmatprep.subr.mxu0 0.0
    %2186 = vmatpush1.msra.mxu0 0.0
    %2187 = vmatprep.subr.mxu0 0.0
    %2188 = vmatpush1.msra.mxu0 0.0
    %2189 = vmatprep.subr.mxu0 0.0
    %2190 = vmatpush1.msra.mxu0 0.0
    %2191 = vmatprep.subr.mxu0 0.0
    %2192 = vmatpush1.msra.mxu0 0.0
    %2193 = vmatprep.subr.mxu0 0.0
    %2194 = vmatpush1.msra.mxu0 0.0
    %2195 = vmatprep.subr.mxu0 0.0
    %2196 = vmatpush1.msra.mxu0 0.0
    %2197 = vmatprep.subr.mxu0 0.0
    %2198 = vmatpush1.msra.mxu0 0.0
    %2199 = vmatprep.subr.mxu0 0.0
    %2200 = vmatpush1.msra.mxu0 0.0
    %2201 = vmatprep.subr.mxu0 0.0
    %2202 = vmatpush1.msra.mxu0 0.0
    %2203 = vmatprep.subr.mxu0 0.0
    %2204 = vmatpush1.msra.mxu0 %v2168
    %2205 = vmatprep.subr.mxu0 0.0
    %2206 = vmatpush1.msra.mxu0 %v2167
    %2207 = vmatprep.subr.mxu0 0.0
    %2208 = vmatpush2.msra.mxu0 0.0
    %2209 = vmatprep.subr.mxu0 0.0
    %2210 = vmatpush2.msra.mxu0 0.0
    %2211 = vmatprep.subr.mxu0 0.0
    %2212 = vmatpush2.msra.mxu0 0.0
    %2213 = vmatprep.subr.mxu0 0.0
    %2214 = vmatpush2.msra.mxu0 0.0
    %2215 = vmatprep.subr.mxu0 0.0
    %2216 = vmatpush2.msra.mxu0 0.0
    %2217 = vmatprep.subr.mxu0 0.0
    %2218 = vmatpush2.msra.mxu0 0.0
    %2219 = vmatprep.subr.mxu0 0.0
    %2220 = vmatpush2.msra.mxu0 0.0
    %2221 = vmatprep.subr.mxu0 0.0
    %2222 = vmatpush2.msra.mxu0 0.0
    %2223 = vmatprep.subr.mxu0 0.0
    %2224 = vmatpush2.msra.mxu0 0.0
    %2225 = vmatprep.subr.mxu0 0.0
    %2226 = vmatpush2.msra.mxu0 0.0
    %2227 = vmatprep.subr.mxu0 0.0
    %2228 = vmatpush2.msra.mxu0 0.0
    %2229 = vmatprep.subr.mxu0 0.0
    %2230 = vmatpush2.msra.mxu0 0.0
    %2231 = vmatprep.subr.mxu0 0.0
    %2232 = vmatpush2.msra.mxu0 0.0
    %2233 = vmatprep.subr.mxu0 0.0
    %2234 = vmatpush2.msra.mxu0 0.0
    %2235 = vmatprep.subr.mxu0 0.0
    %2236 = vmatpush2.msra.mxu0 0.0
    %2237 = vmatprep.subr.mxu0 0.0
    %2238 = vmatpush2.msra.mxu0 0.0
    %2239 = vmatprep.mubr.f32.mxu0 0.0
    %2240 = vmatmul.mubr.f32.gmra.mxu0 %v2170
    %v2241 = vpop.f32.mrf.mxu0
    %v2242 = vadd.f32 0.0, %v2241
    %v2243 = vpop.f32.mrf.mxu0
    %2244 = vmatprep.mubr.f32.mxu0 0.0
    %2245 = vmatmul.mubr.f32.gmra.mxu0 %v2173
    %v2246 = vpop.f32.mrf.mxu0
    %v2247 = vadd.f32 0.0, %v2246
    %v2248 = vpop.f32.mrf.mxu0
    %2249 = vdwg.mxu0
    %v2250 = vadd.f32 %v1710, %v2242
    %v2251 = vadd.f32 %v1711, %v2247
    %v2252 = vadd.f32 %v42, %v2250
    %v2253 = vadd.f32 %v43, %v2251
    %v2254 = vld [vmem:[%s7] sm:$0x1]
    %v2256 = vlaneseq
    %v2257 = vshrl.u32 %v2256, 7
    %v2258 = vsub.s32 0, %v2257
    %v2259 = vrot.slane %v2254, %v2258
    %v2261 = vadd.f32 %v2252, %v2259
    %v2262 = vadd.f32 %v2253, %v2259
    %s2263 = scalar_lea.vmem %s2, 1
    %v2264 = vld [vmem:[%s2263] sm:$0x1]
    %s2265 = scalar_lea.vmem %s3, 1
    %v2266 = vld [vmem:[%s2265] sm:$0x1]
    %v2267 = vsel %vm48, %v2261, 0.0
    %2268 = vadd.xlane.f32.xlu0 %v2267
    %v2269 = vpop.xlane.xlu0 %2268
    %v2270 = vsel %vm48, %v2262, 0.0
    %2271 = vadd.xlane.f32.xlu0 %v2270
    %v2272 = vpop.xlane.xlu0 %2271
    %v2273 = vmul.f32 %v2269, %v55
    %v2274 = vmul.f32 %v2272, %v55
    %v2275 = vsub.f32 %v2261, %v2273
    %v2276 = vsub.f32 %v2262, %v2274
    %v2277 = vmul.f32 %v2275, %v2275
    %v2278 = vmul.f32 %v2276, %v2276
    %v2279 = vsel %vm48, %v2277, 0.0
    %2280 = vadd.xlane.f32.xlu0 %v2279
    %v2281 = vpop.xlane.xlu0 %2280
    %v2282 = vsel %vm48, %v2278, 0.0
    %2283 = vadd.xlane.f32.xlu0 %v2282
    %v2284 = vpop.xlane.xlu0 %2283
    %v2285 = vmul.f32 %v2281, %v55
    %v2286 = vmul.f32 %v2284, %v55
    %v2287 = vadd.f32 %v2285, 1e-05
    %v2288 = vadd.f32 %v2286, 1e-05
    %v2289 = vrsqrt.pop %v2287
    %v2290 = vrsqrt.pop %v2288
    %v2291 = vmul.f32 %v2275, %v2289
    %v2292 = vmul.f32 %v2276, %v2290
    %v2294 = vlaneseq
    %v2295 = vshrl.u32 %v2294, 7
    %v2296 = vsub.s32 0, %v2295
    %v2297 = vrot.slane %v2264, %v2296
    %v2299 = vmul.f32 %v2291, %v2297
    %v2300 = vmul.f32 %v2292, %v2297
    %v2302 = vlaneseq
    %v2303 = vshrl.u32 %v2302, 7
    %v2304 = vsub.s32 0, %v2303
    %v2305 = vrot.slane %v2266, %v2304
    %v2307 = vadd.f32 %v2299, %v2305
    %v2308 = vadd.f32 %v2300, %v2305
    %v2309 = vld [vmem:[%s8] sm:$0xff]
    %v2310 = vld [vmem:[%s8 + $0x8] sm:$0xff]
    %v2311 = vld [vmem:[%s8 + $0x10] sm:$0xff]
    %v2312 = vld [vmem:[%s8 + $0x18] sm:$0xff]
    %v2313 = vld [vmem:[%s9] sm:$0x1]
    %v2315 = vlaneseq
    %v2316 = vshrl.u32 %v2315, 7
    %v2317 = vsub.s32 0, %v2316
    %v2318 = vrot.slane %v2313, %v2317
    %v2321 = vsel %vm48, %v2307, 0
    %v2324 = vsel %vm48, %v2308, 0
    %2326 = vmatprep.subr.mxu0 0.0
    %2327 = vmatpush1.msra.mxu0 0.0
    %2328 = vmatprep.subr.mxu0 0.0
    %2329 = vmatpush1.msra.mxu0 0.0
    %2330 = vmatprep.subr.mxu0 0.0
    %2331 = vmatpush1.msra.mxu0 0.0
    %2332 = vmatprep.subr.mxu0 0.0
    %2333 = vmatpush1.msra.mxu0 0.0
    %2334 = vmatprep.subr.mxu0 0.0
    %2335 = vmatpush1.msra.mxu0 0.0
    %2336 = vmatprep.subr.mxu0 0.0
    %2337 = vmatpush1.msra.mxu0 0.0
    %2338 = vmatprep.subr.mxu0 0.0
    %2339 = vmatpush1.msra.mxu0 0.0
    %2340 = vmatprep.subr.mxu0 0.0
    %2341 = vmatpush1.msra.mxu0 0.0
    %2342 = vmatprep.subr.mxu0 0.0
    %2343 = vmatpush1.msra.mxu0 0.0
    %2344 = vmatprep.subr.mxu0 0.0
    %2345 = vmatpush1.msra.mxu0 0.0
    %2346 = vmatprep.subr.mxu0 0.0
    %2347 = vmatpush1.msra.mxu0 0.0
    %2348 = vmatprep.subr.mxu0 0.0
    %2349 = vmatpush1.msra.mxu0 0.0
    %2350 = vmatprep.subr.mxu0 0.0
    %2351 = vmatpush1.msra.mxu0 %v2312
    %2352 = vmatprep.subr.mxu0 0.0
    %2353 = vmatpush1.msra.mxu0 %v2311
    %2354 = vmatprep.subr.mxu0 0.0
    %2355 = vmatpush1.msra.mxu0 %v2310
    %2356 = vmatprep.subr.mxu0 0.0
    %2357 = vmatpush1.msra.mxu0 %v2309
    %2358 = vmatprep.subr.mxu0 0.0
    %2359 = vmatpush2.msra.mxu0 0.0
    %2360 = vmatprep.subr.mxu0 0.0
    %2361 = vmatpush2.msra.mxu0 0.0
    %2362 = vmatprep.subr.mxu0 0.0
    %2363 = vmatpush2.msra.mxu0 0.0
    %2364 = vmatprep.subr.mxu0 0.0
    %2365 = vmatpush2.msra.mxu0 0.0
    %2366 = vmatprep.subr.mxu0 0.0
    %2367 = vmatpush2.msra.mxu0 0.0
    %2368 = vmatprep.subr.mxu0 0.0
    %2369 = vmatpush2.msra.mxu0 0.0
    %2370 = vmatprep.subr.mxu0 0.0
    %2371 = vmatpush2.msra.mxu0 0.0
    %2372 = vmatprep.subr.mxu0 0.0
    %2373 = vmatpush2.msra.mxu0 0.0
    %2374 = vmatprep.subr.mxu0 0.0
    %2375 = vmatpush2.msra.mxu0 0.0
    %2376 = vmatprep.subr.mxu0 0.0
    %2377 = vmatpush2.msra.mxu0 0.0
    %2378 = vmatprep.subr.mxu0 0.0
    %2379 = vmatpush2.msra.mxu0 0.0
    %2380 = vmatprep.subr.mxu0 0.0
    %2381 = vmatpush2.msra.mxu0 0.0
    %2382 = vmatprep.subr.mxu0 0.0
    %2383 = vmatpush2.msra.mxu0 0.0
    %2384 = vmatprep.subr.mxu0 0.0
    %2385 = vmatpush2.msra.mxu0 0.0
    %2386 = vmatprep.subr.mxu0 0.0
    %2387 = vmatpush2.msra.mxu0 0.0
    %2388 = vmatprep.subr.mxu0 0.0
    %2389 = vmatpush2.msra.mxu0 0.0
    %2390 = vmatprep.mubr.f32.mxu0 0.0
    %2391 = vmatmul.mubr.f32.gmra.mxu0 %v2321
    %v2392 = vpop.f32.mrf.mxu0
    %v2393 = vadd.f32 %v2318, %v2392
    %v2394 = vpop.f32.mrf.mxu0
    %2395 = vmatprep.mubr.f32.mxu0 0.0
    %2396 = vmatmul.mubr.f32.gmra.mxu0 %v2324
    %v2397 = vpop.f32.mrf.mxu0
    %v2398 = vadd.f32 %v2318, %v2397
    %v2399 = vpop.f32.mrf.mxu0
    %2400 = vdwg.mxu0
    %v2401 = vmul.f32 %v2393, 0.5
    %v2402 = vmul.f32 %v2398, 0.5
    %v2403 = vmul.f32 %v2393, 0.70710677
    %v2404 = vmul.f32 %v2398, 0.70710677
    %v2405 = verf.f32.pop %v2403
    %v2406 = verf.f32.pop %v2404
    %v2407 = vadd.f32 %v2405, 1.0
    %v2408 = vadd.f32 %v2406, 1.0
    %v2409 = vmul.f32 %v2401, %v2407
    %v2410 = vmul.f32 %v2402, %v2408
    %v2411 = vld [vmem:[%s10] sm:$0xff]
    %v2412 = vld [vmem:[%s10 + $0x8] sm:$0xff]
    %v2413 = vld [vmem:[%s10 + $0x10] sm:$0xff]
    %v2414 = vld [vmem:[%s10 + $0x18] sm:$0xff]
    %v2415 = vld [vmem:[%s10 + $0x20] sm:$0xff]
    %v2416 = vld [vmem:[%s10 + $0x28] sm:$0xff]
    %v2417 = vld [vmem:[%s10 + $0x30] sm:$0xff]
    %v2418 = vld [vmem:[%s10 + $0x38] sm:$0xff]
    %vm2419 = vcmask 523264
    %v2421 = vsel %vm2419, %v2409, 0
    %v2424 = vsel %vm2419, %v2410, 0
    %2426 = vmatprep.subr.mxu0 0.0
    %2427 = vmatpush1.msra.mxu0 0.0
    %2428 = vmatprep.subr.mxu0 0.0
    %2429 = vmatpush1.msra.mxu0 0.0
    %2430 = vmatprep.subr.mxu0 0.0
    %2431 = vmatpush1.msra.mxu0 0.0
    %2432 = vmatprep.subr.mxu0 0.0
    %2433 = vmatpush1.msra.mxu0 0.0
    %2434 = vmatprep.subr.mxu0 0.0
    %2435 = vmatpush1.msra.mxu0 0.0
    %2436 = vmatprep.subr.mxu0 0.0
    %2437 = vmatpush1.msra.mxu0 0.0
    %2438 = vmatprep.subr.mxu0 0.0
    %2439 = vmatpush1.msra.mxu0 0.0
    %2440 = vmatprep.subr.mxu0 0.0
    %2441 = vmatpush1.msra.mxu0 0.0
    %2442 = vmatprep.subr.mxu0 0.0
    %2443 = vmatpush1.msra.mxu0 %v2418
    %2444 = vmatprep.subr.mxu0 0.0
    %2445 = vmatpush1.msra.mxu0 %v2417
    %2446 = vmatprep.subr.mxu0 0.0
    %2447 = vmatpush1.msra.mxu0 %v2416
    %2448 = vmatprep.subr.mxu0 0.0
    %2449 = vmatpush1.msra.mxu0 %v2415
    %2450 = vmatprep.subr.mxu0 0.0
    %2451 = vmatpush1.msra.mxu0 %v2414
    %2452 = vmatprep.subr.mxu0 0.0
    %2453 = vmatpush1.msra.mxu0 %v2413
    %2454 = vmatprep.subr.mxu0 0.0
    %2455 = vmatpush1.msra.mxu0 %v2412
    %2456 = vmatprep.subr.mxu0 0.0
    %2457 = vmatpush1.msra.mxu0 %v2411
    %2458 = vmatprep.subr.mxu0 0.0
    %2459 = vmatpush2.msra.mxu0 0.0
    %2460 = vmatprep.subr.mxu0 0.0
    %2461 = vmatpush2.msra.mxu0 0.0
    %2462 = vmatprep.subr.mxu0 0.0
    %2463 = vmatpush2.msra.mxu0 0.0
    %2464 = vmatprep.subr.mxu0 0.0
    %2465 = vmatpush2.msra.mxu0 0.0
    %2466 = vmatprep.subr.mxu0 0.0
    %2467 = vmatpush2.msra.mxu0 0.0
    %2468 = vmatprep.subr.mxu0 0.0
    %2469 = vmatpush2.msra.mxu0 0.0
    %2470 = vmatprep.subr.mxu0 0.0
    %2471 = vmatpush2.msra.mxu0 0.0
    %2472 = vmatprep.subr.mxu0 0.0
    %2473 = vmatpush2.msra.mxu0 0.0
    %2474 = vmatprep.subr.mxu0 0.0
    %2475 = vmatpush2.msra.mxu0 0.0
    %2476 = vmatprep.subr.mxu0 0.0
    %2477 = vmatpush2.msra.mxu0 0.0
    %2478 = vmatprep.subr.mxu0 0.0
    %2479 = vmatpush2.msra.mxu0 0.0
    %2480 = vmatprep.subr.mxu0 0.0
    %2481 = vmatpush2.msra.mxu0 0.0
    %2482 = vmatprep.subr.mxu0 0.0
    %2483 = vmatpush2.msra.mxu0 0.0
    %2484 = vmatprep.subr.mxu0 0.0
    %2485 = vmatpush2.msra.mxu0 0.0
    %2486 = vmatprep.subr.mxu0 0.0
    %2487 = vmatpush2.msra.mxu0 0.0
    %2488 = vmatprep.subr.mxu0 0.0
    %2489 = vmatpush2.msra.mxu0 0.0
    %2490 = vmatprep.mubr.f32.mxu0 0.0
    %2491 = vmatmul.mubr.f32.gmra.mxu0 %v2421
    %v2492 = vpop.f32.mrf.mxu0
    %v2493 = vadd.f32 0.0, %v2492
    %v2494 = vpop.f32.mrf.mxu0
    %2495 = vmatprep.mubr.f32.mxu0 0.0
    %2496 = vmatmul.mubr.f32.gmra.mxu0 %v2424
    %v2497 = vpop.f32.mrf.mxu0
    %v2498 = vadd.f32 0.0, %v2497
    %v2499 = vpop.f32.mrf.mxu0
    %2500 = vdwg.mxu0
    %v2501 = vadd.f32 %v2261, %v2493
    %v2502 = vadd.f32 %v2262, %v2498
    %v2503 = vld [vmem:[%s11] sm:$0x1]
    %v2505 = vlaneseq
    %v2506 = vshrl.u32 %v2505, 7
    %v2507 = vsub.s32 0, %v2506
    %v2508 = vrot.slane %v2503, %v2507
    %v2510 = vadd.f32 %v2501, %v2508
    %v2511 = vadd.f32 %v2502, %v2508
    %s2512 = scalar_lea.vmem %s2, 2
    %v2513 = vld [vmem:[%s2512] sm:$0x1]
    %s2514 = scalar_lea.vmem %s3, 2
    %v2515 = vld [vmem:[%s2514] sm:$0x1]
    %v2516 = vsel %vm48, %v2510, 0.0
    %2517 = vadd.xlane.f32.xlu0 %v2516
    %v2518 = vpop.xlane.xlu0 %2517
    %v2519 = vsel %vm48, %v2511, 0.0
    %2520 = vadd.xlane.f32.xlu0 %v2519
    %v2521 = vpop.xlane.xlu0 %2520
    %v2522 = vmul.f32 %v2518, %v55
    %v2523 = vmul.f32 %v2521, %v55
    %v2524 = vsub.f32 %v2510, %v2522
    %v2525 = vsub.f32 %v2511, %v2523
    %v2526 = vmul.f32 %v2524, %v2524
    %v2527 = vmul.f32 %v2525, %v2525
    %v2528 = vsel %vm48, %v2526, 0.0
    %2529 = vadd.xlane.f32.xlu0 %v2528
    %v2530 = vpop.xlane.xlu0 %2529
    %v2531 = vsel %vm48, %v2527, 0.0
    %2532 = vadd.xlane.f32.xlu0 %v2531
    %v2533 = vpop.xlane.xlu0 %2532
    %v2534 = vmul.f32 %v2530, %v55
    %v2535 = vmul.f32 %v2533, %v55
    %v2536 = vadd.f32 %v2534, 1e-05
    %v2537 = vadd.f32 %v2535, 1e-05
    %v2538 = vrsqrt.pop %v2536
    %v2539 = vrsqrt.pop %v2537
    %v2540 = vmul.f32 %v2524, %v2538
    %v2541 = vmul.f32 %v2525, %v2539
    %v2543 = vlaneseq
    %v2544 = vshrl.u32 %v2543, 7
    %v2545 = vsub.s32 0, %v2544
    %v2546 = vrot.slane %v2513, %v2545
    %v2548 = vmul.f32 %v2540, %v2546
    %v2549 = vmul.f32 %v2541, %v2546
    %v2551 = vlaneseq
    %v2552 = vshrl.u32 %v2551, 7
    %v2553 = vsub.s32 0, %v2552
    %v2554 = vrot.slane %v2515, %v2553
    %v2556 = vadd.f32 %v2548, %v2554
    %v2557 = vadd.f32 %v2549, %v2554
    %s2558 = scalar_lea.vmem %s4, 384
    %v2559 = vld [vmem:[%s2558] sm:$0xff]
    %v2560 = vld [vmem:[%s2558 + $0x8] sm:$0xff]
    %v2561 = vld [vmem:[%s2558 + $0x10] sm:$0xff]
    %v2562 = vld [vmem:[%s2558 + $0x18] sm:$0xff]
    %s2563 = scalar_lea.vmem %s5, 12
    %v2564 = vld [vmem:[%s2563] sm:$0x1]
    %v2566 = vlaneseq
    %v2567 = vshrl.u32 %v2566, 7
    %v2568 = vsub.s32 0, %v2567
    %v2569 = vrot.slane %v2564, %v2568
    %v2572 = vsel %vm48, %v2556, 0
    %v2575 = vsel %vm48, %v2557, 0
    %2577 = vmatprep.subr.mxu0 0.0
    %2578 = vmatpush1.msra.mxu0 0.0
    %2579 = vmatprep.subr.mxu0 0.0
    %2580 = vmatpush1.msra.mxu0 0.0
    %2581 = vmatprep.subr.mxu0 0.0
    %2582 = vmatpush1.msra.mxu0 0.0
    %2583 = vmatprep.subr.mxu0 0.0
    %2584 = vmatpush1.msra.mxu0 0.0
    %2585 = vmatprep.subr.mxu0 0.0
    %2586 = vmatpush1.msra.mxu0 0.0
    %2587 = vmatprep.subr.mxu0 0.0
    %2588 = vmatpush1.msra.mxu0 0.0
    %2589 = vmatprep.subr.mxu0 0.0
    %2590 = vmatpush1.msra.mxu0 0.0
    %2591 = vmatprep.subr.mxu0 0.0
    %2592 = vmatpush1.msra.mxu0 0.0
    %2593 = vmatprep.subr.mxu0 0.0
    %2594 = vmatpush1.msra.mxu0 0.0
    %2595 = vmatprep.subr.mxu0 0.0
    %2596 = vmatpush1.msra.mxu0 0.0
    %2597 = vmatprep.subr.mxu0 0.0
    %2598 = vmatpush1.msra.mxu0 0.0
    %2599 = vmatprep.subr.mxu0 0.0
    %2600 = vmatpush1.msra.mxu0 0.0
    %2601 = vmatprep.subr.mxu0 0.0
    %2602 = vmatpush1.msra.mxu0 %v2562
    %2603 = vmatprep.subr.mxu0 0.0
    %2604 = vmatpush1.msra.mxu0 %v2561
    %2605 = vmatprep.subr.mxu0 0.0
    %2606 = vmatpush1.msra.mxu0 %v2560
    %2607 = vmatprep.subr.mxu0 0.0
    %2608 = vmatpush1.msra.mxu0 %v2559
    %2609 = vmatprep.subr.mxu0 0.0
    %2610 = vmatpush2.msra.mxu0 0.0
    %2611 = vmatprep.subr.mxu0 0.0
    %2612 = vmatpush2.msra.mxu0 0.0
    %2613 = vmatprep.subr.mxu0 0.0
    %2614 = vmatpush2.msra.mxu0 0.0
    %2615 = vmatprep.subr.mxu0 0.0
    %2616 = vmatpush2.msra.mxu0 0.0
    %2617 = vmatprep.subr.mxu0 0.0
    %2618 = vmatpush2.msra.mxu0 0.0
    %2619 = vmatprep.subr.mxu0 0.0
    %2620 = vmatpush2.msra.mxu0 0.0
    %2621 = vmatprep.subr.mxu0 0.0
    %2622 = vmatpush2.msra.mxu0 0.0
    %2623 = vmatprep.subr.mxu0 0.0
    %2624 = vmatpush2.msra.mxu0 0.0
    %2625 = vmatprep.subr.mxu0 0.0
    %2626 = vmatpush2.msra.mxu0 0.0
    %2627 = vmatprep.subr.mxu0 0.0
    %2628 = vmatpush2.msra.mxu0 0.0
    %2629 = vmatprep.subr.mxu0 0.0
    %2630 = vmatpush2.msra.mxu0 0.0
    %2631 = vmatprep.subr.mxu0 0.0
    %2632 = vmatpush2.msra.mxu0 0.0
    %2633 = vmatprep.subr.mxu0 0.0
    %2634 = vmatpush2.msra.mxu0 0.0
    %2635 = vmatprep.subr.mxu0 0.0
    %2636 = vmatpush2.msra.mxu0 0.0
    %2637 = vmatprep.subr.mxu0 0.0
    %2638 = vmatpush2.msra.mxu0 0.0
    %2639 = vmatprep.subr.mxu0 0.0
    %2640 = vmatpush2.msra.mxu0 0.0
    %2641 = vmatprep.mubr.f32.mxu0 0.0
    %2642 = vmatmul.mubr.f32.gmra.mxu0 %v2572
    %v2643 = vpop.f32.mrf.mxu0
    %v2644 = vadd.f32 %v2569, %v2643
    %v2645 = vpop.f32.mrf.mxu0
    %2646 = vmatprep.mubr.f32.mxu0 0.0
    %2647 = vmatmul.mubr.f32.gmra.mxu0 %v2575
    %v2648 = vpop.f32.mrf.mxu0
    %v2649 = vadd.f32 %v2569, %v2648
    %v2650 = vpop.f32.mrf.mxu0
    %2651 = vdwg.mxu0
    %s2652 = scalar_lea.vmem %s4, 512
    %v2653 = vld [vmem:[%s2652] sm:$0xff]
    %v2654 = vld [vmem:[%s2652 + $0x8] sm:$0xff]
    %v2655 = vld [vmem:[%s2652 + $0x10] sm:$0xff]
    %v2656 = vld [vmem:[%s2652 + $0x18] sm:$0xff]
    %s2657 = scalar_lea.vmem %s5, 16
    %v2658 = vld [vmem:[%s2657] sm:$0x1]
    %v2660 = vlaneseq
    %v2661 = vshrl.u32 %v2660, 7
    %v2662 = vsub.s32 0, %v2661
    %v2663 = vrot.slane %v2658, %v2662
    %2665 = vmatprep.subr.mxu0 0.0
    %2666 = vmatpush1.msra.mxu0 0.0
    %2667 = vmatprep.subr.mxu0 0.0
    %2668 = vmatpush1.msra.mxu0 0.0
    %2669 = vmatprep.subr.mxu0 0.0
    %2670 = vmatpush1.msra.mxu0 0.0
    %2671 = vmatprep.subr.mxu0 0.0
    %2672 = vmatpush1.msra.mxu0 0.0
    %2673 = vmatprep.subr.mxu0 0.0
    %2674 = vmatpush1.msra.mxu0 0.0
    %2675 = vmatprep.subr.mxu0 0.0
    %2676 = vmatpush1.msra.mxu0 0.0
    %2677 = vmatprep.subr.mxu0 0.0
    %2678 = vmatpush1.msra.mxu0 0.0
    %2679 = vmatprep.subr.mxu0 0.0
    %2680 = vmatpush1.msra.mxu0 0.0
    %2681 = vmatprep.subr.mxu0 0.0
    %2682 = vmatpush1.msra.mxu0 0.0
    %2683 = vmatprep.subr.mxu0 0.0
    %2684 = vmatpush1.msra.mxu0 0.0
    %2685 = vmatprep.subr.mxu0 0.0
    %2686 = vmatpush1.msra.mxu0 0.0
    %2687 = vmatprep.subr.mxu0 0.0
    %2688 = vmatpush1.msra.mxu0 0.0
    %2689 = vmatprep.subr.mxu0 0.0
    %2690 = vmatpush1.msra.mxu0 %v2656
    %2691 = vmatprep.subr.mxu0 0.0
    %2692 = vmatpush1.msra.mxu0 %v2655
    %2693 = vmatprep.subr.mxu0 0.0
    %2694 = vmatpush1.msra.mxu0 %v2654
    %2695 = vmatprep.subr.mxu0 0.0
    %2696 = vmatpush1.msra.mxu0 %v2653
    %2697 = vmatprep.subr.mxu0 0.0
    %2698 = vmatpush2.msra.mxu0 0.0
    %2699 = vmatprep.subr.mxu0 0.0
    %2700 = vmatpush2.msra.mxu0 0.0
    %2701 = vmatprep.subr.mxu0 0.0
    %2702 = vmatpush2.msra.mxu0 0.0
    %2703 = vmatprep.subr.mxu0 0.0
    %2704 = vmatpush2.msra.mxu0 0.0
    %2705 = vmatprep.subr.mxu0 0.0
    %2706 = vmatpush2.msra.mxu0 0.0
    %2707 = vmatprep.subr.mxu0 0.0
    %2708 = vmatpush2.msra.mxu0 0.0
    %2709 = vmatprep.subr.mxu0 0.0
    %2710 = vmatpush2.msra.mxu0 0.0
    %2711 = vmatprep.subr.mxu0 0.0
    %2712 = vmatpush2.msra.mxu0 0.0
    %2713 = vmatprep.subr.mxu0 0.0
    %2714 = vmatpush2.msra.mxu0 0.0
    %2715 = vmatprep.subr.mxu0 0.0
    %2716 = vmatpush2.msra.mxu0 0.0
    %2717 = vmatprep.subr.mxu0 0.0
    %2718 = vmatpush2.msra.mxu0 0.0
    %2719 = vmatprep.subr.mxu0 0.0
    %2720 = vmatpush2.msra.mxu0 0.0
    %2721 = vmatprep.subr.mxu0 0.0
    %2722 = vmatpush2.msra.mxu0 0.0
    %2723 = vmatprep.subr.mxu0 0.0
    %2724 = vmatpush2.msra.mxu0 0.0
    %2725 = vmatprep.subr.mxu0 0.0
    %2726 = vmatpush2.msra.mxu0 0.0
    %2727 = vmatprep.subr.mxu0 0.0
    %2728 = vmatpush2.msra.mxu0 0.0
    %2729 = vmatprep.mubr.f32.mxu0 0.0
    %2730 = vmatmul.mubr.f32.gmra.mxu0 %v2572
    %v2731 = vpop.f32.mrf.mxu0
    %v2732 = vadd.f32 %v2663, %v2731
    %v2733 = vpop.f32.mrf.mxu0
    %2734 = vmatprep.mubr.f32.mxu0 0.0
    %2735 = vmatmul.mubr.f32.gmra.mxu0 %v2575
    %v2736 = vpop.f32.mrf.mxu0
    %v2737 = vadd.f32 %v2663, %v2736
    %v2738 = vpop.f32.mrf.mxu0
    %2739 = vdwg.mxu0
    %s2740 = scalar_lea.vmem %s4, 640
    %v2741 = vld [vmem:[%s2740] sm:$0xff]
    %v2742 = vld [vmem:[%s2740 + $0x8] sm:$0xff]
    %v2743 = vld [vmem:[%s2740 + $0x10] sm:$0xff]
    %v2744 = vld [vmem:[%s2740 + $0x18] sm:$0xff]
    %s2745 = scalar_lea.vmem %s5, 20
    %v2746 = vld [vmem:[%s2745] sm:$0x1]
    %v2748 = vlaneseq
    %v2749 = vshrl.u32 %v2748, 7
    %v2750 = vsub.s32 0, %v2749
    %v2751 = vrot.slane %v2746, %v2750
    %2753 = vmatprep.subr.mxu0 0.0
    %2754 = vmatpush1.msra.mxu0 0.0
    %2755 = vmatprep.subr.mxu0 0.0
    %2756 = vmatpush1.msra.mxu0 0.0
    %2757 = vmatprep.subr.mxu0 0.0
    %2758 = vmatpush1.msra.mxu0 0.0
    %2759 = vmatprep.subr.mxu0 0.0
    %2760 = vmatpush1.msra.mxu0 0.0
    %2761 = vmatprep.subr.mxu0 0.0
    %2762 = vmatpush1.msra.mxu0 0.0
    %2763 = vmatprep.subr.mxu0 0.0
    %2764 = vmatpush1.msra.mxu0 0.0
    %2765 = vmatprep.subr.mxu0 0.0
    %2766 = vmatpush1.msra.mxu0 0.0
    %2767 = vmatprep.subr.mxu0 0.0
    %2768 = vmatpush1.msra.mxu0 0.0
    %2769 = vmatprep.subr.mxu0 0.0
    %2770 = vmatpush1.msra.mxu0 0.0
    %2771 = vmatprep.subr.mxu0 0.0
    %2772 = vmatpush1.msra.mxu0 0.0
    %2773 = vmatprep.subr.mxu0 0.0
    %2774 = vmatpush1.msra.mxu0 0.0
    %2775 = vmatprep.subr.mxu0 0.0
    %2776 = vmatpush1.msra.mxu0 0.0
    %2777 = vmatprep.subr.mxu0 0.0
    %2778 = vmatpush1.msra.mxu0 %v2744
    %2779 = vmatprep.subr.mxu0 0.0
    %2780 = vmatpush1.msra.mxu0 %v2743
    %2781 = vmatprep.subr.mxu0 0.0
    %2782 = vmatpush1.msra.mxu0 %v2742
    %2783 = vmatprep.subr.mxu0 0.0
    %2784 = vmatpush1.msra.mxu0 %v2741
    %2785 = vmatprep.subr.mxu0 0.0
    %2786 = vmatpush2.msra.mxu0 0.0
    %2787 = vmatprep.subr.mxu0 0.0
    %2788 = vmatpush2.msra.mxu0 0.0
    %2789 = vmatprep.subr.mxu0 0.0
    %2790 = vmatpush2.msra.mxu0 0.0
    %2791 = vmatprep.subr.mxu0 0.0
    %2792 = vmatpush2.msra.mxu0 0.0
    %2793 = vmatprep.subr.mxu0 0.0
    %2794 = vmatpush2.msra.mxu0 0.0
    %2795 = vmatprep.subr.mxu0 0.0
    %2796 = vmatpush2.msra.mxu0 0.0
    %2797 = vmatprep.subr.mxu0 0.0
    %2798 = vmatpush2.msra.mxu0 0.0
    %2799 = vmatprep.subr.mxu0 0.0
    %2800 = vmatpush2.msra.mxu0 0.0
    %2801 = vmatprep.subr.mxu0 0.0
    %2802 = vmatpush2.msra.mxu0 0.0
    %2803 = vmatprep.subr.mxu0 0.0
    %2804 = vmatpush2.msra.mxu0 0.0
    %2805 = vmatprep.subr.mxu0 0.0
    %2806 = vmatpush2.msra.mxu0 0.0
    %2807 = vmatprep.subr.mxu0 0.0
    %2808 = vmatpush2.msra.mxu0 0.0
    %2809 = vmatprep.subr.mxu0 0.0
    %2810 = vmatpush2.msra.mxu0 0.0
    %2811 = vmatprep.subr.mxu0 0.0
    %2812 = vmatpush2.msra.mxu0 0.0
    %2813 = vmatprep.subr.mxu0 0.0
    %2814 = vmatpush2.msra.mxu0 0.0
    %2815 = vmatprep.subr.mxu0 0.0
    %2816 = vmatpush2.msra.mxu0 0.0
    %2817 = vmatprep.mubr.f32.mxu0 0.0
    %2818 = vmatmul.mubr.f32.gmra.mxu0 %v2572
    %v2819 = vpop.f32.mrf.mxu0
    %v2820 = vadd.f32 %v2751, %v2819
    %v2821 = vpop.f32.mrf.mxu0
    %2822 = vmatprep.mubr.f32.mxu0 0.0
    %2823 = vmatmul.mubr.f32.gmra.mxu0 %v2575
    %v2824 = vpop.f32.mrf.mxu0
    %v2825 = vadd.f32 %v2751, %v2824
    %v2826 = vpop.f32.mrf.mxu0
    %2827 = vdwg.mxu0
    %v2829 = vsel %vm360, %v2644, 0
    %v2832 = vsel %vm360, %v2649, 0
    %v2835 = vsel %vm360, %v2732, 0
    %v2838 = vsel %vm360, %v2737, 0
    %2840 = vmatprep.subr.mxu0 0.0
    %2841 = vmatpush1.xpose.msra.mxu0 0.0
    %2842 = vmatprep.subr.mxu0 0.0
    %2843 = vmatpush1.xpose.msra.mxu0 0.0
    %2844 = vmatprep.subr.mxu0 0.0
    %2845 = vmatpush1.xpose.msra.mxu0 0.0
    %2846 = vmatprep.subr.mxu0 0.0
    %2847 = vmatpush1.xpose.msra.mxu0 0.0
    %2848 = vmatprep.subr.mxu0 0.0
    %2849 = vmatpush1.xpose.msra.mxu0 0.0
    %2850 = vmatprep.subr.mxu0 0.0
    %2851 = vmatpush1.xpose.msra.mxu0 0.0
    %2852 = vmatprep.subr.mxu0 0.0
    %2853 = vmatpush1.xpose.msra.mxu0 0.0
    %2854 = vmatprep.subr.mxu0 0.0
    %2855 = vmatpush1.xpose.msra.mxu0 0.0
    %2856 = vmatprep.subr.mxu0 0.0
    %2857 = vmatpush1.xpose.msra.mxu0 0.0
    %2858 = vmatprep.subr.mxu0 0.0
    %2859 = vmatpush1.xpose.msra.mxu0 0.0
    %2860 = vmatprep.subr.mxu0 0.0
    %2861 = vmatpush1.xpose.msra.mxu0 0.0
    %2862 = vmatprep.subr.mxu0 0.0
    %2863 = vmatpush1.xpose.msra.mxu0 0.0
    %2864 = vmatprep.subr.mxu0 0.0
    %2865 = vmatpush1.xpose.msra.mxu0 0.0
    %2866 = vmatprep.subr.mxu0 0.0
    %2867 = vmatpush1.xpose.msra.mxu0 0.0
    %2868 = vmatprep.subr.mxu0 0.0
    %2869 = vmatpush1.xpose.msra.mxu0 %v2838
    %2870 = vmatprep.subr.mxu0 0.0
    %2871 = vmatpush1.xpose.msra.mxu0 %v2835
    %2872 = vmatprep.subr.mxu0 0.0
    %2873 = vmatpush2.xpose.msra.mxu0 0.0
    %2874 = vmatprep.subr.mxu0 0.0
    %2875 = vmatpush2.xpose.msra.mxu0 0.0
    %2876 = vmatprep.subr.mxu0 0.0
    %2877 = vmatpush2.xpose.msra.mxu0 0.0
    %2878 = vmatprep.subr.mxu0 0.0
    %2879 = vmatpush2.xpose.msra.mxu0 0.0
    %2880 = vmatprep.subr.mxu0 0.0
    %2881 = vmatpush2.xpose.msra.mxu0 0.0
    %2882 = vmatprep.subr.mxu0 0.0
    %2883 = vmatpush2.xpose.msra.mxu0 0.0
    %2884 = vmatprep.subr.mxu0 0.0
    %2885 = vmatpush2.xpose.msra.mxu0 0.0
    %2886 = vmatprep.subr.mxu0 0.0
    %2887 = vmatpush2.xpose.msra.mxu0 0.0
    %2888 = vmatprep.subr.mxu0 0.0
    %2889 = vmatpush2.xpose.msra.mxu0 0.0
    %2890 = vmatprep.subr.mxu0 0.0
    %2891 = vmatpush2.xpose.msra.mxu0 0.0
    %2892 = vmatprep.subr.mxu0 0.0
    %2893 = vmatpush2.xpose.msra.mxu0 0.0
    %2894 = vmatprep.subr.mxu0 0.0
    %2895 = vmatpush2.xpose.msra.mxu0 0.0
    %2896 = vmatprep.subr.mxu0 0.0
    %2897 = vmatpush2.xpose.msra.mxu0 0.0
    %2898 = vmatprep.subr.mxu0 0.0
    %2899 = vmatpush2.xpose.msra.mxu0 0.0
    %2900 = vmatprep.subr.mxu0 0.0
    %2901 = vmatpush2.xpose.msra.mxu0 0.0
    %2902 = vmatprep.subr.mxu0 0.0
    %2903 = vmatpush2.xpose.msra.mxu0 0.0
    %2904 = vmatprep.mubr.f32.mxu0 0.0
    %2905 = vmatmul.mubr.f32.gmra.mxu0 %v2829
    %v2906 = vpop.f32.mrf.mxu0
    %v2907 = vadd.f32 %v44, %v2906
    %v2908 = vpop.f32.mrf.mxu0
    %2909 = vmatprep.mubr.f32.mxu0 0.0
    %2910 = vmatmul.mubr.f32.gmra.mxu0 %v2832
    %v2911 = vpop.f32.mrf.mxu0
    %v2912 = vadd.f32 %v45, %v2911
    %v2913 = vpop.f32.mrf.mxu0
    %2914 = vdwg.mxu0
    %v2915 = vsel %vm360, %v2907, -inf
    %2916 = vmax.xlane.f32.xlu0 %v2915
    %v2917 = vpop.xlane.xlu0 %2916
    %v2918 = vsel %vm360, %v2912, -inf
    %2919 = vmax.xlane.f32.xlu0 %v2918
    %v2920 = vpop.xlane.xlu0 %2919
    %v2921 = vsub.f32 %v2907, %v2917
    %v2922 = vsub.f32 %v2912, %v2920
    %v2923 = vmul.f32 %v2921, 1.442695
    %v2924 = vpow.pop %v2923
    %v2925 = vmul.f32 %v2922, 1.442695
    %v2926 = vpow.pop %v2925
    %v2927 = vsel %vm360, %v2924, 0.0
    %2928 = vadd.xlane.f32.xlu0 %v2927
    %v2929 = vpop.xlane.xlu0 %2928
    %v2930 = vsel %vm360, %v2926, 0.0
    %2931 = vadd.xlane.f32.xlu0 %v2930
    %v2932 = vpop.xlane.xlu0 %2931
    %v2933 = vrcp.pop %v2929
    %v2934 = vrcp.pop %v2932
    %v2935 = vmul.f32 %v2924, %v2933
    %v2936 = vmul.f32 %v2926, %v2934
    %v2938 = vsel %vm360, %v2935, 0
    %v2941 = vsel %vm360, %v2936, 0
    %2943 = vmatprep.subr.mxu0 0.0
    %2944 = vmatpush1.msra.mxu0 0.0
    %2945 = vmatprep.subr.mxu0 0.0
    %2946 = vmatpush1.msra.mxu0 0.0
    %2947 = vmatprep.subr.mxu0 0.0
    %2948 = vmatpush1.msra.mxu0 0.0
    %2949 = vmatprep.subr.mxu0 0.0
    %2950 = vmatpush1.msra.mxu0 0.0
    %2951 = vmatprep.subr.mxu0 0.0
    %2952 = vmatpush1.msra.mxu0 0.0
    %2953 = vmatprep.subr.mxu0 0.0
    %2954 = vmatpush1.msra.mxu0 0.0
    %2955 = vmatprep.subr.mxu0 0.0
    %2956 = vmatpush1.msra.mxu0 0.0
    %2957 = vmatprep.subr.mxu0 0.0
    %2958 = vmatpush1.msra.mxu0 0.0
    %2959 = vmatprep.subr.mxu0 0.0
    %2960 = vmatpush1.msra.mxu0 0.0
    %2961 = vmatprep.subr.mxu0 0.0
    %2962 = vmatpush1.msra.mxu0 0.0
    %2963 = vmatprep.subr.mxu0 0.0
    %2964 = vmatpush1.msra.mxu0 0.0
    %2965 = vmatprep.subr.mxu0 0.0
    %2966 = vmatpush1.msra.mxu0 0.0
    %2967 = vmatprep.subr.mxu0 0.0
    %2968 = vmatpush1.msra.mxu0 0.0
    %2969 = vmatprep.subr.mxu0 0.0
    %2970 = vmatpush1.msra.mxu0 0.0
    %2971 = vmatprep.subr.mxu0 0.0
    %2972 = vmatpush1.msra.mxu0 %v2825
    %2973 = vmatprep.subr.mxu0 0.0
    %2974 = vmatpush1.msra.mxu0 %v2820
    %2975 = vmatprep.subr.mxu0 0.0
    %2976 = vmatpush2.msra.mxu0 0.0
    %2977 = vmatprep.subr.mxu0 0.0
    %2978 = vmatpush2.msra.mxu0 0.0
    %2979 = vmatprep.subr.mxu0 0.0
    %2980 = vmatpush2.msra.mxu0 0.0
    %2981 = vmatprep.subr.mxu0 0.0
    %2982 = vmatpush2.msra.mxu0 0.0
    %2983 = vmatprep.subr.mxu0 0.0
    %2984 = vmatpush2.msra.mxu0 0.0
    %2985 = vmatprep.subr.mxu0 0.0
    %2986 = vmatpush2.msra.mxu0 0.0
    %2987 = vmatprep.subr.mxu0 0.0
    %2988 = vmatpush2.msra.mxu0 0.0
    %2989 = vmatprep.subr.mxu0 0.0
    %2990 = vmatpush2.msra.mxu0 0.0
    %2991 = vmatprep.subr.mxu0 0.0
    %2992 = vmatpush2.msra.mxu0 0.0
    %2993 = vmatprep.subr.mxu0 0.0
    %2994 = vmatpush2.msra.mxu0 0.0
    %2995 = vmatprep.subr.mxu0 0.0
    %2996 = vmatpush2.msra.mxu0 0.0
    %2997 = vmatprep.subr.mxu0 0.0
    %2998 = vmatpush2.msra.mxu0 0.0
    %2999 = vmatprep.subr.mxu0 0.0
    %3000 = vmatpush2.msra.mxu0 0.0
    %3001 = vmatprep.subr.mxu0 0.0
    %3002 = vmatpush2.msra.mxu0 0.0
    %3003 = vmatprep.subr.mxu0 0.0
    %3004 = vmatpush2.msra.mxu0 0.0
    %3005 = vmatprep.subr.mxu0 0.0
    %3006 = vmatpush2.msra.mxu0 0.0
    %3007 = vmatprep.mubr.f32.mxu0 0.0
    %3008 = vmatmul.mubr.f32.gmra.mxu0 %v2938
    %v3009 = vpop.f32.mrf.mxu0
    %v3010 = vadd.f32 0.0, %v3009
    %v3011 = vpop.f32.mrf.mxu0
    %3012 = vmatprep.mubr.f32.mxu0 0.0
    %3013 = vmatmul.mubr.f32.gmra.mxu0 %v2941
    %v3014 = vpop.f32.mrf.mxu0
    %v3015 = vadd.f32 0.0, %v3014
    %v3016 = vpop.f32.mrf.mxu0
    %3017 = vdwg.mxu0
    %s3018 = scalar_lea.vmem %s6, 64
    %v3019 = vld [vmem:[%s3018] sm:$0xff]
    %v3020 = vld [vmem:[%s3018 + $0x8] sm:$0xff]
    %s3021 = scalar_lea.vmem %s4, 416
    %v3022 = vld [vmem:[%s3021] sm:$0xff]
    %v3023 = vld [vmem:[%s3021 + $0x8] sm:$0xff]
    %v3024 = vld [vmem:[%s3021 + $0x10] sm:$0xff]
    %v3025 = vld [vmem:[%s3021 + $0x18] sm:$0xff]
    %s3026 = scalar_lea.vmem %s5, 13
    %v3027 = vld [vmem:[%s3026] sm:$0x1]
    %v3029 = vlaneseq
    %v3030 = vshrl.u32 %v3029, 7
    %v3031 = vsub.s32 0, %v3030
    %v3032 = vrot.slane %v3027, %v3031
    %3034 = vmatprep.subr.mxu0 0.0
    %3035 = vmatpush1.msra.mxu0 0.0
    %3036 = vmatprep.subr.mxu0 0.0
    %3037 = vmatpush1.msra.mxu0 0.0
    %3038 = vmatprep.subr.mxu0 0.0
    %3039 = vmatpush1.msra.mxu0 0.0
    %3040 = vmatprep.subr.mxu0 0.0
    %3041 = vmatpush1.msra.mxu0 0.0
    %3042 = vmatprep.subr.mxu0 0.0
    %3043 = vmatpush1.msra.mxu0 0.0
    %3044 = vmatprep.subr.mxu0 0.0
    %3045 = vmatpush1.msra.mxu0 0.0
    %3046 = vmatprep.subr.mxu0 0.0
    %3047 = vmatpush1.msra.mxu0 0.0
    %3048 = vmatprep.subr.mxu0 0.0
    %3049 = vmatpush1.msra.mxu0 0.0
    %3050 = vmatprep.subr.mxu0 0.0
    %3051 = vmatpush1.msra.mxu0 0.0
    %3052 = vmatprep.subr.mxu0 0.0
    %3053 = vmatpush1.msra.mxu0 0.0
    %3054 = vmatprep.subr.mxu0 0.0
    %3055 = vmatpush1.msra.mxu0 0.0
    %3056 = vmatprep.subr.mxu0 0.0
    %3057 = vmatpush1.msra.mxu0 0.0
    %3058 = vmatprep.subr.mxu0 0.0
    %3059 = vmatpush1.msra.mxu0 %v3025
    %3060 = vmatprep.subr.mxu0 0.0
    %3061 = vmatpush1.msra.mxu0 %v3024
    %3062 = vmatprep.subr.mxu0 0.0
    %3063 = vmatpush1.msra.mxu0 %v3023
    %3064 = vmatprep.subr.mxu0 0.0
    %3065 = vmatpush1.msra.mxu0 %v3022
    %3066 = vmatprep.subr.mxu0 0.0
    %3067 = vmatpush2.msra.mxu0 0.0
    %3068 = vmatprep.subr.mxu0 0.0
    %3069 = vmatpush2.msra.mxu0 0.0
    %3070 = vmatprep.subr.mxu0 0.0
    %3071 = vmatpush2.msra.mxu0 0.0
    %3072 = vmatprep.subr.mxu0 0.0
    %3073 = vmatpush2.msra.mxu0 0.0
    %3074 = vmatprep.subr.mxu0 0.0
    %3075 = vmatpush2.msra.mxu0 0.0
    %3076 = vmatprep.subr.mxu0 0.0
    %3077 = vmatpush2.msra.mxu0 0.0
    %3078 = vmatprep.subr.mxu0 0.0
    %3079 = vmatpush2.msra.mxu0 0.0
    %3080 = vmatprep.subr.mxu0 0.0
    %3081 = vmatpush2.msra.mxu0 0.0
    %3082 = vmatprep.subr.mxu0 0.0
    %3083 = vmatpush2.msra.mxu0 0.0
    %3084 = vmatprep.subr.mxu0 0.0
    %3085 = vmatpush2.msra.mxu0 0.0
    %3086 = vmatprep.subr.mxu0 0.0
    %3087 = vmatpush2.msra.mxu0 0.0
    %3088 = vmatprep.subr.mxu0 0.0
    %3089 = vmatpush2.msra.mxu0 0.0
    %3090 = vmatprep.subr.mxu0 0.0
    %3091 = vmatpush2.msra.mxu0 0.0
    %3092 = vmatprep.subr.mxu0 0.0
    %3093 = vmatpush2.msra.mxu0 0.0
    %3094 = vmatprep.subr.mxu0 0.0
    %3095 = vmatpush2.msra.mxu0 0.0
    %3096 = vmatprep.subr.mxu0 0.0
    %3097 = vmatpush2.msra.mxu0 0.0
    %3098 = vmatprep.mubr.f32.mxu0 0.0
    %3099 = vmatmul.mubr.f32.gmra.mxu0 %v2572
    %v3100 = vpop.f32.mrf.mxu0
    %v3101 = vadd.f32 %v3032, %v3100
    %v3102 = vpop.f32.mrf.mxu0
    %3103 = vmatprep.mubr.f32.mxu0 0.0
    %3104 = vmatmul.mubr.f32.gmra.mxu0 %v2575
    %v3105 = vpop.f32.mrf.mxu0
    %v3106 = vadd.f32 %v3032, %v3105
    %v3107 = vpop.f32.mrf.mxu0
    %3108 = vdwg.mxu0
    %s3109 = scalar_lea.vmem %s4, 544
    %v3110 = vld [vmem:[%s3109] sm:$0xff]
    %v3111 = vld [vmem:[%s3109 + $0x8] sm:$0xff]
    %v3112 = vld [vmem:[%s3109 + $0x10] sm:$0xff]
    %v3113 = vld [vmem:[%s3109 + $0x18] sm:$0xff]
    %s3114 = scalar_lea.vmem %s5, 17
    %v3115 = vld [vmem:[%s3114] sm:$0x1]
    %v3117 = vlaneseq
    %v3118 = vshrl.u32 %v3117, 7
    %v3119 = vsub.s32 0, %v3118
    %v3120 = vrot.slane %v3115, %v3119
    %3122 = vmatprep.subr.mxu0 0.0
    %3123 = vmatpush1.msra.mxu0 0.0
    %3124 = vmatprep.subr.mxu0 0.0
    %3125 = vmatpush1.msra.mxu0 0.0
    %3126 = vmatprep.subr.mxu0 0.0
    %3127 = vmatpush1.msra.mxu0 0.0
    %3128 = vmatprep.subr.mxu0 0.0
    %3129 = vmatpush1.msra.mxu0 0.0
    %3130 = vmatprep.subr.mxu0 0.0
    %3131 = vmatpush1.msra.mxu0 0.0
    %3132 = vmatprep.subr.mxu0 0.0
    %3133 = vmatpush1.msra.mxu0 0.0
    %3134 = vmatprep.subr.mxu0 0.0
    %3135 = vmatpush1.msra.mxu0 0.0
    %3136 = vmatprep.subr.mxu0 0.0
    %3137 = vmatpush1.msra.mxu0 0.0
    %3138 = vmatprep.subr.mxu0 0.0
    %3139 = vmatpush1.msra.mxu0 0.0
    %3140 = vmatprep.subr.mxu0 0.0
    %3141 = vmatpush1.msra.mxu0 0.0
    %3142 = vmatprep.subr.mxu0 0.0
    %3143 = vmatpush1.msra.mxu0 0.0
    %3144 = vmatprep.subr.mxu0 0.0
    %3145 = vmatpush1.msra.mxu0 0.0
    %3146 = vmatprep.subr.mxu0 0.0
    %3147 = vmatpush1.msra.mxu0 %v3113
    %3148 = vmatprep.subr.mxu0 0.0
    %3149 = vmatpush1.msra.mxu0 %v3112
    %3150 = vmatprep.subr.mxu0 0.0
    %3151 = vmatpush1.msra.mxu0 %v3111
    %3152 = vmatprep.subr.mxu0 0.0
    %3153 = vmatpush1.msra.mxu0 %v3110
    %3154 = vmatprep.subr.mxu0 0.0
    %3155 = vmatpush2.msra.mxu0 0.0
    %3156 = vmatprep.subr.mxu0 0.0
    %3157 = vmatpush2.msra.mxu0 0.0
    %3158 = vmatprep.subr.mxu0 0.0
    %3159 = vmatpush2.msra.mxu0 0.0
    %3160 = vmatprep.subr.mxu0 0.0
    %3161 = vmatpush2.msra.mxu0 0.0
    %3162 = vmatprep.subr.mxu0 0.0
    %3163 = vmatpush2.msra.mxu0 0.0
    %3164 = vmatprep.subr.mxu0 0.0
    %3165 = vmatpush2.msra.mxu0 0.0
    %3166 = vmatprep.subr.mxu0 0.0
    %3167 = vmatpush2.msra.mxu0 0.0
    %3168 = vmatprep.subr.mxu0 0.0
    %3169 = vmatpush2.msra.mxu0 0.0
    %3170 = vmatprep.subr.mxu0 0.0
    %3171 = vmatpush2.msra.mxu0 0.0
    %3172 = vmatprep.subr.mxu0 0.0
    %3173 = vmatpush2.msra.mxu0 0.0
    %3174 = vmatprep.subr.mxu0 0.0
    %3175 = vmatpush2.msra.mxu0 0.0
    %3176 = vmatprep.subr.mxu0 0.0
    %3177 = vmatpush2.msra.mxu0 0.0
    %3178 = vmatprep.subr.mxu0 0.0
    %3179 = vmatpush2.msra.mxu0 0.0
    %3180 = vmatprep.subr.mxu0 0.0
    %3181 = vmatpush2.msra.mxu0 0.0
    %3182 = vmatprep.subr.mxu0 0.0
    %3183 = vmatpush2.msra.mxu0 0.0
    %3184 = vmatprep.subr.mxu0 0.0
    %3185 = vmatpush2.msra.mxu0 0.0
    %3186 = vmatprep.mubr.f32.mxu0 0.0
    %3187 = vmatmul.mubr.f32.gmra.mxu0 %v2572
    %v3188 = vpop.f32.mrf.mxu0
    %v3189 = vadd.f32 %v3120, %v3188
    %v3190 = vpop.f32.mrf.mxu0
    %3191 = vmatprep.mubr.f32.mxu0 0.0
    %3192 = vmatmul.mubr.f32.gmra.mxu0 %v2575
    %v3193 = vpop.f32.mrf.mxu0
    %v3194 = vadd.f32 %v3120, %v3193
    %v3195 = vpop.f32.mrf.mxu0
    %3196 = vdwg.mxu0
    %s3197 = scalar_lea.vmem %s4, 672
    %v3198 = vld [vmem:[%s3197] sm:$0xff]
    %v3199 = vld [vmem:[%s3197 + $0x8] sm:$0xff]
    %v3200 = vld [vmem:[%s3197 + $0x10] sm:$0xff]
    %v3201 = vld [vmem:[%s3197 + $0x18] sm:$0xff]
    %s3202 = scalar_lea.vmem %s5, 21
    %v3203 = vld [vmem:[%s3202] sm:$0x1]
    %v3205 = vlaneseq
    %v3206 = vshrl.u32 %v3205, 7
    %v3207 = vsub.s32 0, %v3206
    %v3208 = vrot.slane %v3203, %v3207
    %3210 = vmatprep.subr.mxu0 0.0
    %3211 = vmatpush1.msra.mxu0 0.0
    %3212 = vmatprep.subr.mxu0 0.0
    %3213 = vmatpush1.msra.mxu0 0.0
    %3214 = vmatprep.subr.mxu0 0.0
    %3215 = vmatpush1.msra.mxu0 0.0
    %3216 = vmatprep.subr.mxu0 0.0
    %3217 = vmatpush1.msra.mxu0 0.0
    %3218 = vmatprep.subr.mxu0 0.0
    %3219 = vmatpush1.msra.mxu0 0.0
    %3220 = vmatprep.subr.mxu0 0.0
    %3221 = vmatpush1.msra.mxu0 0.0
    %3222 = vmatprep.subr.mxu0 0.0
    %3223 = vmatpush1.msra.mxu0 0.0
    %3224 = vmatprep.subr.mxu0 0.0
    %3225 = vmatpush1.msra.mxu0 0.0
    %3226 = vmatprep.subr.mxu0 0.0
    %3227 = vmatpush1.msra.mxu0 0.0
    %3228 = vmatprep.subr.mxu0 0.0
    %3229 = vmatpush1.msra.mxu0 0.0
    %3230 = vmatprep.subr.mxu0 0.0
    %3231 = vmatpush1.msra.mxu0 0.0
    %3232 = vmatprep.subr.mxu0 0.0
    %3233 = vmatpush1.msra.mxu0 0.0
    %3234 = vmatprep.subr.mxu0 0.0
    %3235 = vmatpush1.msra.mxu0 %v3201
    %3236 = vmatprep.subr.mxu0 0.0
    %3237 = vmatpush1.msra.mxu0 %v3200
    %3238 = vmatprep.subr.mxu0 0.0
    %3239 = vmatpush1.msra.mxu0 %v3199
    %3240 = vmatprep.subr.mxu0 0.0
    %3241 = vmatpush1.msra.mxu0 %v3198
    %3242 = vmatprep.subr.mxu0 0.0
    %3243 = vmatpush2.msra.mxu0 0.0
    %3244 = vmatprep.subr.mxu0 0.0
    %3245 = vmatpush2.msra.mxu0 0.0
    %3246 = vmatprep.subr.mxu0 0.0
    %3247 = vmatpush2.msra.mxu0 0.0
    %3248 = vmatprep.subr.mxu0 0.0
    %3249 = vmatpush2.msra.mxu0 0.0
    %3250 = vmatprep.subr.mxu0 0.0
    %3251 = vmatpush2.msra.mxu0 0.0
    %3252 = vmatprep.subr.mxu0 0.0
    %3253 = vmatpush2.msra.mxu0 0.0
    %3254 = vmatprep.subr.mxu0 0.0
    %3255 = vmatpush2.msra.mxu0 0.0
    %3256 = vmatprep.subr.mxu0 0.0
    %3257 = vmatpush2.msra.mxu0 0.0
    %3258 = vmatprep.subr.mxu0 0.0
    %3259 = vmatpush2.msra.mxu0 0.0
    %3260 = vmatprep.subr.mxu0 0.0
    %3261 = vmatpush2.msra.mxu0 0.0
    %3262 = vmatprep.subr.mxu0 0.0
    %3263 = vmatpush2.msra.mxu0 0.0
    %3264 = vmatprep.subr.mxu0 0.0
    %3265 = vmatpush2.msra.mxu0 0.0
    %3266 = vmatprep.subr.mxu0 0.0
    %3267 = vmatpush2.msra.mxu0 0.0
    %3268 = vmatprep.subr.mxu0 0.0
    %3269 = vmatpush2.msra.mxu0 0.0
    %3270 = vmatprep.subr.mxu0 0.0
    %3271 = vmatpush2.msra.mxu0 0.0
    %3272 = vmatprep.subr.mxu0 0.0
    %3273 = vmatpush2.msra.mxu0 0.0
    %3274 = vmatprep.mubr.f32.mxu0 0.0
    %3275 = vmatmul.mubr.f32.gmra.mxu0 %v2572
    %v3276 = vpop.f32.mrf.mxu0
    %v3277 = vadd.f32 %v3208, %v3276
    %v3278 = vpop.f32.mrf.mxu0
    %3279 = vmatprep.mubr.f32.mxu0 0.0
    %3280 = vmatmul.mubr.f32.gmra.mxu0 %v2575
    %v3281 = vpop.f32.mrf.mxu0
    %v3282 = vadd.f32 %v3208, %v3281
    %v3283 = vpop.f32.mrf.mxu0
    %3284 = vdwg.mxu0
    %v3286 = vsel %vm360, %v3101, 0
    %v3289 = vsel %vm360, %v3106, 0
    %v3292 = vsel %vm360, %v3189, 0
    %v3295 = vsel %vm360, %v3194, 0
    %3297 = vmatprep.subr.mxu0 0.0
    %3298 = vmatpush1.xpose.msra.mxu0 0.0
    %3299 = vmatprep.subr.mxu0 0.0
    %3300 = vmatpush1.xpose.msra.mxu0 0.0
    %3301 = vmatprep.subr.mxu0 0.0
    %3302 = vmatpush1.xpose.msra.mxu0 0.0
    %3303 = vmatprep.subr.mxu0 0.0
    %3304 = vmatpush1.xpose.msra.mxu0 0.0
    %3305 = vmatprep.subr.mxu0 0.0
    %3306 = vmatpush1.xpose.msra.mxu0 0.0
    %3307 = vmatprep.subr.mxu0 0.0
    %3308 = vmatpush1.xpose.msra.mxu0 0.0
    %3309 = vmatprep.subr.mxu0 0.0
    %3310 = vmatpush1.xpose.msra.mxu0 0.0
    %3311 = vmatprep.subr.mxu0 0.0
    %3312 = vmatpush1.xpose.msra.mxu0 0.0
    %3313 = vmatprep.subr.mxu0 0.0
    %3314 = vmatpush1.xpose.msra.mxu0 0.0
    %3315 = vmatprep.subr.mxu0 0.0
    %3316 = vmatpush1.xpose.msra.mxu0 0.0
    %3317 = vmatprep.subr.mxu0 0.0
    %3318 = vmatpush1.xpose.msra.mxu0 0.0
    %3319 = vmatprep.subr.mxu0 0.0
    %3320 = vmatpush1.xpose.msra.mxu0 0.0
    %3321 = vmatprep.subr.mxu0 0.0
    %3322 = vmatpush1.xpose.msra.mxu0 0.0
    %3323 = vmatprep.subr.mxu0 0.0
    %3324 = vmatpush1.xpose.msra.mxu0 0.0
    %3325 = vmatprep.subr.mxu0 0.0
    %3326 = vmatpush1.xpose.msra.mxu0 %v3295
    %3327 = vmatprep.subr.mxu0 0.0
    %3328 = vmatpush1.xpose.msra.mxu0 %v3292
    %3329 = vmatprep.subr.mxu0 0.0
    %3330 = vmatpush2.xpose.msra.mxu0 0.0
    %3331 = vmatprep.subr.mxu0 0.0
    %3332 = vmatpush2.xpose.msra.mxu0 0.0
    %3333 = vmatprep.subr.mxu0 0.0
    %3334 = vmatpush2.xpose.msra.mxu0 0.0
    %3335 = vmatprep.subr.mxu0 0.0
    %3336 = vmatpush2.xpose.msra.mxu0 0.0
    %3337 = vmatprep.subr.mxu0 0.0
    %3338 = vmatpush2.xpose.msra.mxu0 0.0
    %3339 = vmatprep.subr.mxu0 0.0
    %3340 = vmatpush2.xpose.msra.mxu0 0.0
    %3341 = vmatprep.subr.mxu0 0.0
    %3342 = vmatpush2.xpose.msra.mxu0 0.0
    %3343 = vmatprep.subr.mxu0 0.0
    %3344 = vmatpush2.xpose.msra.mxu0 0.0
    %3345 = vmatprep.subr.mxu0 0.0
    %3346 = vmatpush2.xpose.msra.mxu0 0.0
    %3347 = vmatprep.subr.mxu0 0.0
    %3348 = vmatpush2.xpose.msra.mxu0 0.0
    %3349 = vmatprep.subr.mxu0 0.0
    %3350 = vmatpush2.xpose.msra.mxu0 0.0
    %3351 = vmatprep.subr.mxu0 0.0
    %3352 = vmatpush2.xpose.msra.mxu0 0.0
    %3353 = vmatprep.subr.mxu0 0.0
    %3354 = vmatpush2.xpose.msra.mxu0 0.0
    %3355 = vmatprep.subr.mxu0 0.0
    %3356 = vmatpush2.xpose.msra.mxu0 0.0
    %3357 = vmatprep.subr.mxu0 0.0
    %3358 = vmatpush2.xpose.msra.mxu0 0.0
    %3359 = vmatprep.subr.mxu0 0.0
    %3360 = vmatpush2.xpose.msra.mxu0 0.0
    %3361 = vmatprep.mubr.f32.mxu0 0.0
    %3362 = vmatmul.mubr.f32.gmra.mxu0 %v3286
    %v3363 = vpop.f32.mrf.mxu0
    %v3364 = vadd.f32 %v44, %v3363
    %v3365 = vpop.f32.mrf.mxu0
    %3366 = vmatprep.mubr.f32.mxu0 0.0
    %3367 = vmatmul.mubr.f32.gmra.mxu0 %v3289
    %v3368 = vpop.f32.mrf.mxu0
    %v3369 = vadd.f32 %v45, %v3368
    %v3370 = vpop.f32.mrf.mxu0
    %3371 = vdwg.mxu0
    %v3372 = vsel %vm360, %v3364, -inf
    %3373 = vmax.xlane.f32.xlu0 %v3372
    %v3374 = vpop.xlane.xlu0 %3373
    %v3375 = vsel %vm360, %v3369, -inf
    %3376 = vmax.xlane.f32.xlu0 %v3375
    %v3377 = vpop.xlane.xlu0 %3376
    %v3378 = vsub.f32 %v3364, %v3374
    %v3379 = vsub.f32 %v3369, %v3377
    %v3380 = vmul.f32 %v3378, 1.442695
    %v3381 = vpow.pop %v3380
    %v3382 = vmul.f32 %v3379, 1.442695
    %v3383 = vpow.pop %v3382
    %v3384 = vsel %vm360, %v3381, 0.0
    %3385 = vadd.xlane.f32.xlu0 %v3384
    %v3386 = vpop.xlane.xlu0 %3385
    %v3387 = vsel %vm360, %v3383, 0.0
    %3388 = vadd.xlane.f32.xlu0 %v3387
    %v3389 = vpop.xlane.xlu0 %3388
    %v3390 = vrcp.pop %v3386
    %v3391 = vrcp.pop %v3389
    %v3392 = vmul.f32 %v3381, %v3390
    %v3393 = vmul.f32 %v3383, %v3391
    %v3395 = vsel %vm360, %v3392, 0
    %v3398 = vsel %vm360, %v3393, 0
    %3400 = vmatprep.subr.mxu0 0.0
    %3401 = vmatpush1.msra.mxu0 0.0
    %3402 = vmatprep.subr.mxu0 0.0
    %3403 = vmatpush1.msra.mxu0 0.0
    %3404 = vmatprep.subr.mxu0 0.0
    %3405 = vmatpush1.msra.mxu0 0.0
    %3406 = vmatprep.subr.mxu0 0.0
    %3407 = vmatpush1.msra.mxu0 0.0
    %3408 = vmatprep.subr.mxu0 0.0
    %3409 = vmatpush1.msra.mxu0 0.0
    %3410 = vmatprep.subr.mxu0 0.0
    %3411 = vmatpush1.msra.mxu0 0.0
    %3412 = vmatprep.subr.mxu0 0.0
    %3413 = vmatpush1.msra.mxu0 0.0
    %3414 = vmatprep.subr.mxu0 0.0
    %3415 = vmatpush1.msra.mxu0 0.0
    %3416 = vmatprep.subr.mxu0 0.0
    %3417 = vmatpush1.msra.mxu0 0.0
    %3418 = vmatprep.subr.mxu0 0.0
    %3419 = vmatpush1.msra.mxu0 0.0
    %3420 = vmatprep.subr.mxu0 0.0
    %3421 = vmatpush1.msra.mxu0 0.0
    %3422 = vmatprep.subr.mxu0 0.0
    %3423 = vmatpush1.msra.mxu0 0.0
    %3424 = vmatprep.subr.mxu0 0.0
    %3425 = vmatpush1.msra.mxu0 0.0
    %3426 = vmatprep.subr.mxu0 0.0
    %3427 = vmatpush1.msra.mxu0 0.0
    %3428 = vmatprep.subr.mxu0 0.0
    %3429 = vmatpush1.msra.mxu0 %v3282
    %3430 = vmatprep.subr.mxu0 0.0
    %3431 = vmatpush1.msra.mxu0 %v3277
    %3432 = vmatprep.subr.mxu0 0.0
    %3433 = vmatpush2.msra.mxu0 0.0
    %3434 = vmatprep.subr.mxu0 0.0
    %3435 = vmatpush2.msra.mxu0 0.0
    %3436 = vmatprep.subr.mxu0 0.0
    %3437 = vmatpush2.msra.mxu0 0.0
    %3438 = vmatprep.subr.mxu0 0.0
    %3439 = vmatpush2.msra.mxu0 0.0
    %3440 = vmatprep.subr.mxu0 0.0
    %3441 = vmatpush2.msra.mxu0 0.0
    %3442 = vmatprep.subr.mxu0 0.0
    %3443 = vmatpush2.msra.mxu0 0.0
    %3444 = vmatprep.subr.mxu0 0.0
    %3445 = vmatpush2.msra.mxu0 0.0
    %3446 = vmatprep.subr.mxu0 0.0
    %3447 = vmatpush2.msra.mxu0 0.0
    %3448 = vmatprep.subr.mxu0 0.0
    %3449 = vmatpush2.msra.mxu0 0.0
    %3450 = vmatprep.subr.mxu0 0.0
    %3451 = vmatpush2.msra.mxu0 0.0
    %3452 = vmatprep.subr.mxu0 0.0
    %3453 = vmatpush2.msra.mxu0 0.0
    %3454 = vmatprep.subr.mxu0 0.0
    %3455 = vmatpush2.msra.mxu0 0.0
    %3456 = vmatprep.subr.mxu0 0.0
    %3457 = vmatpush2.msra.mxu0 0.0
    %3458 = vmatprep.subr.mxu0 0.0
    %3459 = vmatpush2.msra.mxu0 0.0
    %3460 = vmatprep.subr.mxu0 0.0
    %3461 = vmatpush2.msra.mxu0 0.0
    %3462 = vmatprep.subr.mxu0 0.0
    %3463 = vmatpush2.msra.mxu0 0.0
    %3464 = vmatprep.mubr.f32.mxu0 0.0
    %3465 = vmatmul.mubr.f32.gmra.mxu0 %v3395
    %v3466 = vpop.f32.mrf.mxu0
    %v3467 = vadd.f32 0.0, %v3466
    %v3468 = vpop.f32.mrf.mxu0
    %3469 = vmatprep.mubr.f32.mxu0 0.0
    %3470 = vmatmul.mubr.f32.gmra.mxu0 %v3398
    %v3471 = vpop.f32.mrf.mxu0
    %v3472 = vadd.f32 0.0, %v3471
    %v3473 = vpop.f32.mrf.mxu0
    %3474 = vdwg.mxu0
    %s3475 = scalar_lea.vmem %s6, 80
    %v3476 = vld [vmem:[%s3475] sm:$0xff]
    %v3477 = vld [vmem:[%s3475 + $0x8] sm:$0xff]
    %v3479 = vsel %vm360, %v3467, 0
    %v3482 = vsel %vm360, %v3472, 0
    %3484 = vmatprep.subr.mxu0 0.0
    %3485 = vmatpush1.msra.mxu0 0.0
    %3486 = vmatprep.subr.mxu0 0.0
    %3487 = vmatpush1.msra.mxu0 0.0
    %3488 = vmatprep.subr.mxu0 0.0
    %3489 = vmatpush1.msra.mxu0 0.0
    %3490 = vmatprep.subr.mxu0 0.0
    %3491 = vmatpush1.msra.mxu0 0.0
    %3492 = vmatprep.subr.mxu0 0.0
    %3493 = vmatpush1.msra.mxu0 0.0
    %3494 = vmatprep.subr.mxu0 0.0
    %3495 = vmatpush1.msra.mxu0 0.0
    %3496 = vmatprep.subr.mxu0 0.0
    %3497 = vmatpush1.msra.mxu0 0.0
    %3498 = vmatprep.subr.mxu0 0.0
    %3499 = vmatpush1.msra.mxu0 0.0
    %3500 = vmatprep.subr.mxu0 0.0
    %3501 = vmatpush1.msra.mxu0 0.0
    %3502 = vmatprep.subr.mxu0 0.0
    %3503 = vmatpush1.msra.mxu0 0.0
    %3504 = vmatprep.subr.mxu0 0.0
    %3505 = vmatpush1.msra.mxu0 0.0
    %3506 = vmatprep.subr.mxu0 0.0
    %3507 = vmatpush1.msra.mxu0 0.0
    %3508 = vmatprep.subr.mxu0 0.0
    %3509 = vmatpush1.msra.mxu0 0.0
    %3510 = vmatprep.subr.mxu0 0.0
    %3511 = vmatpush1.msra.mxu0 0.0
    %3512 = vmatprep.subr.mxu0 0.0
    %3513 = vmatpush1.msra.mxu0 %v3477
    %3514 = vmatprep.subr.mxu0 0.0
    %3515 = vmatpush1.msra.mxu0 %v3476
    %3516 = vmatprep.subr.mxu0 0.0
    %3517 = vmatpush2.msra.mxu0 0.0
    %3518 = vmatprep.subr.mxu0 0.0
    %3519 = vmatpush2.msra.mxu0 0.0
    %3520 = vmatprep.subr.mxu0 0.0
    %3521 = vmatpush2.msra.mxu0 0.0
    %3522 = vmatprep.subr.mxu0 0.0
    %3523 = vmatpush2.msra.mxu0 0.0
    %3524 = vmatprep.subr.mxu0 0.0
    %3525 = vmatpush2.msra.mxu0 0.0
    %3526 = vmatprep.subr.mxu0 0.0
    %3527 = vmatpush2.msra.mxu0 0.0
    %3528 = vmatprep.subr.mxu0 0.0
    %3529 = vmatpush2.msra.mxu0 0.0
    %3530 = vmatprep.subr.mxu0 0.0
    %3531 = vmatpush2.msra.mxu0 0.0
    %3532 = vmatprep.subr.mxu0 0.0
    %3533 = vmatpush2.msra.mxu0 0.0
    %3534 = vmatprep.subr.mxu0 0.0
    %3535 = vmatpush2.msra.mxu0 0.0
    %3536 = vmatprep.subr.mxu0 0.0
    %3537 = vmatpush2.msra.mxu0 0.0
    %3538 = vmatprep.subr.mxu0 0.0
    %3539 = vmatpush2.msra.mxu0 0.0
    %3540 = vmatprep.subr.mxu0 0.0
    %3541 = vmatpush2.msra.mxu0 0.0
    %3542 = vmatprep.subr.mxu0 0.0
    %3543 = vmatpush2.msra.mxu0 0.0
    %3544 = vmatprep.subr.mxu0 0.0
    %3545 = vmatpush2.msra.mxu0 0.0
    %3546 = vmatprep.subr.mxu0 0.0
    %3547 = vmatpush2.msra.mxu0 0.0
    %3548 = vmatprep.mubr.f32.mxu0 0.0
    %3549 = vmatmul.mubr.f32.gmra.mxu0 %v3479
    %v3550 = vpop.f32.mrf.mxu0
    %v3551 = vadd.f32 0.0, %v3550
    %v3552 = vpop.f32.mrf.mxu0
    %3553 = vmatprep.mubr.f32.mxu0 0.0
    %3554 = vmatmul.mubr.f32.gmra.mxu0 %v3482
    %v3555 = vpop.f32.mrf.mxu0
    %v3556 = vadd.f32 0.0, %v3555
    %v3557 = vpop.f32.mrf.mxu0
    %3558 = vdwg.mxu0
    %v3560 = vsel %vm360, %v3010, 0
    %v3563 = vsel %vm360, %v3015, 0
    %3565 = vmatprep.subr.mxu0 0.0
    %3566 = vmatpush1.msra.mxu0 0.0
    %3567 = vmatprep.subr.mxu0 0.0
    %3568 = vmatpush1.msra.mxu0 0.0
    %3569 = vmatprep.subr.mxu0 0.0
    %3570 = vmatpush1.msra.mxu0 0.0
    %3571 = vmatprep.subr.mxu0 0.0
    %3572 = vmatpush1.msra.mxu0 0.0
    %3573 = vmatprep.subr.mxu0 0.0
    %3574 = vmatpush1.msra.mxu0 0.0
    %3575 = vmatprep.subr.mxu0 0.0
    %3576 = vmatpush1.msra.mxu0 0.0
    %3577 = vmatprep.subr.mxu0 0.0
    %3578 = vmatpush1.msra.mxu0 0.0
    %3579 = vmatprep.subr.mxu0 0.0
    %3580 = vmatpush1.msra.mxu0 0.0
    %3581 = vmatprep.subr.mxu0 0.0
    %3582 = vmatpush1.msra.mxu0 0.0
    %3583 = vmatprep.subr.mxu0 0.0
    %3584 = vmatpush1.msra.mxu0 0.0
    %3585 = vmatprep.subr.mxu0 0.0
    %3586 = vmatpush1.msra.mxu0 0.0
    %3587 = vmatprep.subr.mxu0 0.0
    %3588 = vmatpush1.msra.mxu0 0.0
    %3589 = vmatprep.subr.mxu0 0.0
    %3590 = vmatpush1.msra.mxu0 0.0
    %3591 = vmatprep.subr.mxu0 0.0
    %3592 = vmatpush1.msra.mxu0 0.0
    %3593 = vmatprep.subr.mxu0 0.0
    %3594 = vmatpush1.msra.mxu0 %v3020
    %3595 = vmatprep.subr.mxu0 0.0
    %3596 = vmatpush1.msra.mxu0 %v3019
    %3597 = vmatprep.subr.mxu0 0.0
    %3598 = vmatpush2.msra.mxu0 0.0
    %3599 = vmatprep.subr.mxu0 0.0
    %3600 = vmatpush2.msra.mxu0 0.0
    %3601 = vmatprep.subr.mxu0 0.0
    %3602 = vmatpush2.msra.mxu0 0.0
    %3603 = vmatprep.subr.mxu0 0.0
    %3604 = vmatpush2.msra.mxu0 0.0
    %3605 = vmatprep.subr.mxu0 0.0
    %3606 = vmatpush2.msra.mxu0 0.0
    %3607 = vmatprep.subr.mxu0 0.0
    %3608 = vmatpush2.msra.mxu0 0.0
    %3609 = vmatprep.subr.mxu0 0.0
    %3610 = vmatpush2.msra.mxu0 0.0
    %3611 = vmatprep.subr.mxu0 0.0
    %3612 = vmatpush2.msra.mxu0 0.0
    %3613 = vmatprep.subr.mxu0 0.0
    %3614 = vmatpush2.msra.mxu0 0.0
    %3615 = vmatprep.subr.mxu0 0.0
    %3616 = vmatpush2.msra.mxu0 0.0
    %3617 = vmatprep.subr.mxu0 0.0
    %3618 = vmatpush2.msra.mxu0 0.0
    %3619 = vmatprep.subr.mxu0 0.0
    %3620 = vmatpush2.msra.mxu0 0.0
    %3621 = vmatprep.subr.mxu0 0.0
    %3622 = vmatpush2.msra.mxu0 0.0
    %3623 = vmatprep.subr.mxu0 0.0
    %3624 = vmatpush2.msra.mxu0 0.0
    %3625 = vmatprep.subr.mxu0 0.0
    %3626 = vmatpush2.msra.mxu0 0.0
    %3627 = vmatprep.subr.mxu0 0.0
    %3628 = vmatpush2.msra.mxu0 0.0
    %3629 = vmatprep.mubr.f32.mxu0 0.0
    %3630 = vmatmul.mubr.f32.gmra.mxu0 %v3560
    %v3631 = vpop.f32.mrf.mxu0
    %v3632 = vadd.f32 %v3551, %v3631
    %v3633 = vpop.f32.mrf.mxu0
    %3634 = vmatprep.mubr.f32.mxu0 0.0
    %3635 = vmatmul.mubr.f32.gmra.mxu0 %v3563
    %v3636 = vpop.f32.mrf.mxu0
    %v3637 = vadd.f32 %v3556, %v3636
    %v3638 = vpop.f32.mrf.mxu0
    %3639 = vdwg.mxu0
    %s3640 = scalar_lea.vmem %s4, 448
    %v3641 = vld [vmem:[%s3640] sm:$0xff]
    %v3642 = vld [vmem:[%s3640 + $0x8] sm:$0xff]
    %v3643 = vld [vmem:[%s3640 + $0x10] sm:$0xff]
    %v3644 = vld [vmem:[%s3640 + $0x18] sm:$0xff]
    %s3645 = scalar_lea.vmem %s5, 14
    %v3646 = vld [vmem:[%s3645] sm:$0x1]
    %v3648 = vlaneseq
    %v3649 = vshrl.u32 %v3648, 7
    %v3650 = vsub.s32 0, %v3649
    %v3651 = vrot.slane %v3646, %v3650
    %3653 = vmatprep.subr.mxu0 0.0
    %3654 = vmatpush1.msra.mxu0 0.0
    %3655 = vmatprep.subr.mxu0 0.0
    %3656 = vmatpush1.msra.mxu0 0.0
    %3657 = vmatprep.subr.mxu0 0.0
    %3658 = vmatpush1.msra.mxu0 0.0
    %3659 = vmatprep.subr.mxu0 0.0
    %3660 = vmatpush1.msra.mxu0 0.0
    %3661 = vmatprep.subr.mxu0 0.0
    %3662 = vmatpush1.msra.mxu0 0.0
    %3663 = vmatprep.subr.mxu0 0.0
    %3664 = vmatpush1.msra.mxu0 0.0
    %3665 = vmatprep.subr.mxu0 0.0
    %3666 = vmatpush1.msra.mxu0 0.0
    %3667 = vmatprep.subr.mxu0 0.0
    %3668 = vmatpush1.msra.mxu0 0.0
    %3669 = vmatprep.subr.mxu0 0.0
    %3670 = vmatpush1.msra.mxu0 0.0
    %3671 = vmatprep.subr.mxu0 0.0
    %3672 = vmatpush1.msra.mxu0 0.0
    %3673 = vmatprep.subr.mxu0 0.0
    %3674 = vmatpush1.msra.mxu0 0.0
    %3675 = vmatprep.subr.mxu0 0.0
    %3676 = vmatpush1.msra.mxu0 0.0
    %3677 = vmatprep.subr.mxu0 0.0
    %3678 = vmatpush1.msra.mxu0 %v3644
    %3679 = vmatprep.subr.mxu0 0.0
    %3680 = vmatpush1.msra.mxu0 %v3643
    %3681 = vmatprep.subr.mxu0 0.0
    %3682 = vmatpush1.msra.mxu0 %v3642
    %3683 = vmatprep.subr.mxu0 0.0
    %3684 = vmatpush1.msra.mxu0 %v3641
    %3685 = vmatprep.subr.mxu0 0.0
    %3686 = vmatpush2.msra.mxu0 0.0
    %3687 = vmatprep.subr.mxu0 0.0
    %3688 = vmatpush2.msra.mxu0 0.0
    %3689 = vmatprep.subr.mxu0 0.0
    %3690 = vmatpush2.msra.mxu0 0.0
    %3691 = vmatprep.subr.mxu0 0.0
    %3692 = vmatpush2.msra.mxu0 0.0
    %3693 = vmatprep.subr.mxu0 0.0
    %3694 = vmatpush2.msra.mxu0 0.0
    %3695 = vmatprep.subr.mxu0 0.0
    %3696 = vmatpush2.msra.mxu0 0.0
    %3697 = vmatprep.subr.mxu0 0.0
    %3698 = vmatpush2.msra.mxu0 0.0
    %3699 = vmatprep.subr.mxu0 0.0
    %3700 = vmatpush2.msra.mxu0 0.0
    %3701 = vmatprep.subr.mxu0 0.0
    %3702 = vmatpush2.msra.mxu0 0.0
    %3703 = vmatprep.subr.mxu0 0.0
    %3704 = vmatpush2.msra.mxu0 0.0
    %3705 = vmatprep.subr.mxu0 0.0
    %3706 = vmatpush2.msra.mxu0 0.0
    %3707 = vmatprep.subr.mxu0 0.0
    %3708 = vmatpush2.msra.mxu0 0.0
    %3709 = vmatprep.subr.mxu0 0.0
    %3710 = vmatpush2.msra.mxu0 0.0
    %3711 = vmatprep.subr.mxu0 0.0
    %3712 = vmatpush2.msra.mxu0 0.0
    %3713 = vmatprep.subr.mxu0 0.0
    %3714 = vmatpush2.msra.mxu0 0.0
    %3715 = vmatprep.subr.mxu0 0.0
    %3716 = vmatpush2.msra.mxu0 0.0
    %3717 = vmatprep.mubr.f32.mxu0 0.0
    %3718 = vmatmul.mubr.f32.gmra.mxu0 %v2572
    %v3719 = vpop.f32.mrf.mxu0
    %v3720 = vadd.f32 %v3651, %v3719
    %v3721 = vpop.f32.mrf.mxu0
    %3722 = vmatprep.mubr.f32.mxu0 0.0
    %3723 = vmatmul.mubr.f32.gmra.mxu0 %v2575
    %v3724 = vpop.f32.mrf.mxu0
    %v3725 = vadd.f32 %v3651, %v3724
    %v3726 = vpop.f32.mrf.mxu0
    %3727 = vdwg.mxu0
    %s3728 = scalar_lea.vmem %s4, 576
    %v3729 = vld [vmem:[%s3728] sm:$0xff]
    %v3730 = vld [vmem:[%s3728 + $0x8] sm:$0xff]
    %v3731 = vld [vmem:[%s3728 + $0x10] sm:$0xff]
    %v3732 = vld [vmem:[%s3728 + $0x18] sm:$0xff]
    %s3733 = scalar_lea.vmem %s5, 18
    %v3734 = vld [vmem:[%s3733] sm:$0x1]
    %v3736 = vlaneseq
    %v3737 = vshrl.u32 %v3736, 7
    %v3738 = vsub.s32 0, %v3737
    %v3739 = vrot.slane %v3734, %v3738
    %3741 = vmatprep.subr.mxu0 0.0
    %3742 = vmatpush1.msra.mxu0 0.0
    %3743 = vmatprep.subr.mxu0 0.0
    %3744 = vmatpush1.msra.mxu0 0.0
    %3745 = vmatprep.subr.mxu0 0.0
    %3746 = vmatpush1.msra.mxu0 0.0
    %3747 = vmatprep.subr.mxu0 0.0
    %3748 = vmatpush1.msra.mxu0 0.0
    %3749 = vmatprep.subr.mxu0 0.0
    %3750 = vmatpush1.msra.mxu0 0.0
    %3751 = vmatprep.subr.mxu0 0.0
    %3752 = vmatpush1.msra.mxu0 0.0
    %3753 = vmatprep.subr.mxu0 0.0
    %3754 = vmatpush1.msra.mxu0 0.0
    %3755 = vmatprep.subr.mxu0 0.0
    %3756 = vmatpush1.msra.mxu0 0.0
    %3757 = vmatprep.subr.mxu0 0.0
    %3758 = vmatpush1.msra.mxu0 0.0
    %3759 = vmatprep.subr.mxu0 0.0
    %3760 = vmatpush1.msra.mxu0 0.0
    %3761 = vmatprep.subr.mxu0 0.0
    %3762 = vmatpush1.msra.mxu0 0.0
    %3763 = vmatprep.subr.mxu0 0.0
    %3764 = vmatpush1.msra.mxu0 0.0
    %3765 = vmatprep.subr.mxu0 0.0
    %3766 = vmatpush1.msra.mxu0 %v3732
    %3767 = vmatprep.subr.mxu0 0.0
    %3768 = vmatpush1.msra.mxu0 %v3731
    %3769 = vmatprep.subr.mxu0 0.0
    %3770 = vmatpush1.msra.mxu0 %v3730
    %3771 = vmatprep.subr.mxu0 0.0
    %3772 = vmatpush1.msra.mxu0 %v3729
    %3773 = vmatprep.subr.mxu0 0.0
    %3774 = vmatpush2.msra.mxu0 0.0
    %3775 = vmatprep.subr.mxu0 0.0
    %3776 = vmatpush2.msra.mxu0 0.0
    %3777 = vmatprep.subr.mxu0 0.0
    %3778 = vmatpush2.msra.mxu0 0.0
    %3779 = vmatprep.subr.mxu0 0.0
    %3780 = vmatpush2.msra.mxu0 0.0
    %3781 = vmatprep.subr.mxu0 0.0
    %3782 = vmatpush2.msra.mxu0 0.0
    %3783 = vmatprep.subr.mxu0 0.0
    %3784 = vmatpush2.msra.mxu0 0.0
    %3785 = vmatprep.subr.mxu0 0.0
    %3786 = vmatpush2.msra.mxu0 0.0
    %3787 = vmatprep.subr.mxu0 0.0
    %3788 = vmatpush2.msra.mxu0 0.0
    %3789 = vmatprep.subr.mxu0 0.0
    %3790 = vmatpush2.msra.mxu0 0.0
    %3791 = vmatprep.subr.mxu0 0.0
    %3792 = vmatpush2.msra.mxu0 0.0
    %3793 = vmatprep.subr.mxu0 0.0
    %3794 = vmatpush2.msra.mxu0 0.0
    %3795 = vmatprep.subr.mxu0 0.0
    %3796 = vmatpush2.msra.mxu0 0.0
    %3797 = vmatprep.subr.mxu0 0.0
    %3798 = vmatpush2.msra.mxu0 0.0
    %3799 = vmatprep.subr.mxu0 0.0
    %3800 = vmatpush2.msra.mxu0 0.0
    %3801 = vmatprep.subr.mxu0 0.0
    %3802 = vmatpush2.msra.mxu0 0.0
    %3803 = vmatprep.subr.mxu0 0.0
    %3804 = vmatpush2.msra.mxu0 0.0
    %3805 = vmatprep.mubr.f32.mxu0 0.0
    %3806 = vmatmul.mubr.f32.gmra.mxu0 %v2572
    %v3807 = vpop.f32.mrf.mxu0
    %v3808 = vadd.f32 %v3739, %v3807
    %v3809 = vpop.f32.mrf.mxu0
    %3810 = vmatprep.mubr.f32.mxu0 0.0
    %3811 = vmatmul.mubr.f32.gmra.mxu0 %v2575
    %v3812 = vpop.f32.mrf.mxu0
    %v3813 = vadd.f32 %v3739, %v3812
    %v3814 = vpop.f32.mrf.mxu0
    %3815 = vdwg.mxu0
    %s3816 = scalar_lea.vmem %s4, 704
    %v3817 = vld [vmem:[%s3816] sm:$0xff]
    %v3818 = vld [vmem:[%s3816 + $0x8] sm:$0xff]
    %v3819 = vld [vmem:[%s3816 + $0x10] sm:$0xff]
    %v3820 = vld [vmem:[%s3816 + $0x18] sm:$0xff]
    %s3821 = scalar_lea.vmem %s5, 22
    %v3822 = vld [vmem:[%s3821] sm:$0x1]
    %v3824 = vlaneseq
    %v3825 = vshrl.u32 %v3824, 7
    %v3826 = vsub.s32 0, %v3825
    %v3827 = vrot.slane %v3822, %v3826
    %3829 = vmatprep.subr.mxu0 0.0
    %3830 = vmatpush1.msra.mxu0 0.0
    %3831 = vmatprep.subr.mxu0 0.0
    %3832 = vmatpush1.msra.mxu0 0.0
    %3833 = vmatprep.subr.mxu0 0.0
    %3834 = vmatpush1.msra.mxu0 0.0
    %3835 = vmatprep.subr.mxu0 0.0
    %3836 = vmatpush1.msra.mxu0 0.0
    %3837 = vmatprep.subr.mxu0 0.0
    %3838 = vmatpush1.msra.mxu0 0.0
    %3839 = vmatprep.subr.mxu0 0.0
    %3840 = vmatpush1.msra.mxu0 0.0
    %3841 = vmatprep.subr.mxu0 0.0
    %3842 = vmatpush1.msra.mxu0 0.0
    %3843 = vmatprep.subr.mxu0 0.0
    %3844 = vmatpush1.msra.mxu0 0.0
    %3845 = vmatprep.subr.mxu0 0.0
    %3846 = vmatpush1.msra.mxu0 0.0
    %3847 = vmatprep.subr.mxu0 0.0
    %3848 = vmatpush1.msra.mxu0 0.0
    %3849 = vmatprep.subr.mxu0 0.0
    %3850 = vmatpush1.msra.mxu0 0.0
    %3851 = vmatprep.subr.mxu0 0.0
    %3852 = vmatpush1.msra.mxu0 0.0
    %3853 = vmatprep.subr.mxu0 0.0
    %3854 = vmatpush1.msra.mxu0 %v3820
    %3855 = vmatprep.subr.mxu0 0.0
    %3856 = vmatpush1.msra.mxu0 %v3819
    %3857 = vmatprep.subr.mxu0 0.0
    %3858 = vmatpush1.msra.mxu0 %v3818
    %3859 = vmatprep.subr.mxu0 0.0
    %3860 = vmatpush1.msra.mxu0 %v3817
    %3861 = vmatprep.subr.mxu0 0.0
    %3862 = vmatpush2.msra.mxu0 0.0
    %3863 = vmatprep.subr.mxu0 0.0
    %3864 = vmatpush2.msra.mxu0 0.0
    %3865 = vmatprep.subr.mxu0 0.0
    %3866 = vmatpush2.msra.mxu0 0.0
    %3867 = vmatprep.subr.mxu0 0.0
    %3868 = vmatpush2.msra.mxu0 0.0
    %3869 = vmatprep.subr.mxu0 0.0
    %3870 = vmatpush2.msra.mxu0 0.0
    %3871 = vmatprep.subr.mxu0 0.0
    %3872 = vmatpush2.msra.mxu0 0.0
    %3873 = vmatprep.subr.mxu0 0.0
    %3874 = vmatpush2.msra.mxu0 0.0
    %3875 = vmatprep.subr.mxu0 0.0
    %3876 = vmatpush2.msra.mxu0 0.0
    %3877 = vmatprep.subr.mxu0 0.0
    %3878 = vmatpush2.msra.mxu0 0.0
    %3879 = vmatprep.subr.mxu0 0.0
    %3880 = vmatpush2.msra.mxu0 0.0
    %3881 = vmatprep.subr.mxu0 0.0
    %3882 = vmatpush2.msra.mxu0 0.0
    %3883 = vmatprep.subr.mxu0 0.0
    %3884 = vmatpush2.msra.mxu0 0.0
    %3885 = vmatprep.subr.mxu0 0.0
    %3886 = vmatpush2.msra.mxu0 0.0
    %3887 = vmatprep.subr.mxu0 0.0
    %3888 = vmatpush2.msra.mxu0 0.0
    %3889 = vmatprep.subr.mxu0 0.0
    %3890 = vmatpush2.msra.mxu0 0.0
    %3891 = vmatprep.subr.mxu0 0.0
    %3892 = vmatpush2.msra.mxu0 0.0
    %3893 = vmatprep.mubr.f32.mxu0 0.0
    %3894 = vmatmul.mubr.f32.gmra.mxu0 %v2572
    %v3895 = vpop.f32.mrf.mxu0
    %v3896 = vadd.f32 %v3827, %v3895
    %v3897 = vpop.f32.mrf.mxu0
    %3898 = vmatprep.mubr.f32.mxu0 0.0
    %3899 = vmatmul.mubr.f32.gmra.mxu0 %v2575
    %v3900 = vpop.f32.mrf.mxu0
    %v3901 = vadd.f32 %v3827, %v3900
    %v3902 = vpop.f32.mrf.mxu0
    %3903 = vdwg.mxu0
    %v3905 = vsel %vm360, %v3720, 0
    %v3908 = vsel %vm360, %v3725, 0
    %v3911 = vsel %vm360, %v3808, 0
    %v3914 = vsel %vm360, %v3813, 0
    %3916 = vmatprep.subr.mxu0 0.0
    %3917 = vmatpush1.xpose.msra.mxu0 0.0
    %3918 = vmatprep.subr.mxu0 0.0
    %3919 = vmatpush1.xpose.msra.mxu0 0.0
    %3920 = vmatprep.subr.mxu0 0.0
    %3921 = vmatpush1.xpose.msra.mxu0 0.0
    %3922 = vmatprep.subr.mxu0 0.0
    %3923 = vmatpush1.xpose.msra.mxu0 0.0
    %3924 = vmatprep.subr.mxu0 0.0
    %3925 = vmatpush1.xpose.msra.mxu0 0.0
    %3926 = vmatprep.subr.mxu0 0.0
    %3927 = vmatpush1.xpose.msra.mxu0 0.0
    %3928 = vmatprep.subr.mxu0 0.0
    %3929 = vmatpush1.xpose.msra.mxu0 0.0
    %3930 = vmatprep.subr.mxu0 0.0
    %3931 = vmatpush1.xpose.msra.mxu0 0.0
    %3932 = vmatprep.subr.mxu0 0.0
    %3933 = vmatpush1.xpose.msra.mxu0 0.0
    %3934 = vmatprep.subr.mxu0 0.0
    %3935 = vmatpush1.xpose.msra.mxu0 0.0
    %3936 = vmatprep.subr.mxu0 0.0
    %3937 = vmatpush1.xpose.msra.mxu0 0.0
    %3938 = vmatprep.subr.mxu0 0.0
    %3939 = vmatpush1.xpose.msra.mxu0 0.0
    %3940 = vmatprep.subr.mxu0 0.0
    %3941 = vmatpush1.xpose.msra.mxu0 0.0
    %3942 = vmatprep.subr.mxu0 0.0
    %3943 = vmatpush1.xpose.msra.mxu0 0.0
    %3944 = vmatprep.subr.mxu0 0.0
    %3945 = vmatpush1.xpose.msra.mxu0 %v3914
    %3946 = vmatprep.subr.mxu0 0.0
    %3947 = vmatpush1.xpose.msra.mxu0 %v3911
    %3948 = vmatprep.subr.mxu0 0.0
    %3949 = vmatpush2.xpose.msra.mxu0 0.0
    %3950 = vmatprep.subr.mxu0 0.0
    %3951 = vmatpush2.xpose.msra.mxu0 0.0
    %3952 = vmatprep.subr.mxu0 0.0
    %3953 = vmatpush2.xpose.msra.mxu0 0.0
    %3954 = vmatprep.subr.mxu0 0.0
    %3955 = vmatpush2.xpose.msra.mxu0 0.0
    %3956 = vmatprep.subr.mxu0 0.0
    %3957 = vmatpush2.xpose.msra.mxu0 0.0
    %3958 = vmatprep.subr.mxu0 0.0
    %3959 = vmatpush2.xpose.msra.mxu0 0.0
    %3960 = vmatprep.subr.mxu0 0.0
    %3961 = vmatpush2.xpose.msra.mxu0 0.0
    %3962 = vmatprep.subr.mxu0 0.0
    %3963 = vmatpush2.xpose.msra.mxu0 0.0
    %3964 = vmatprep.subr.mxu0 0.0
    %3965 = vmatpush2.xpose.msra.mxu0 0.0
    %3966 = vmatprep.subr.mxu0 0.0
    %3967 = vmatpush2.xpose.msra.mxu0 0.0
    %3968 = vmatprep.subr.mxu0 0.0
    %3969 = vmatpush2.xpose.msra.mxu0 0.0
    %3970 = vmatprep.subr.mxu0 0.0
    %3971 = vmatpush2.xpose.msra.mxu0 0.0
    %3972 = vmatprep.subr.mxu0 0.0
    %3973 = vmatpush2.xpose.msra.mxu0 0.0
    %3974 = vmatprep.subr.mxu0 0.0
    %3975 = vmatpush2.xpose.msra.mxu0 0.0
    %3976 = vmatprep.subr.mxu0 0.0
    %3977 = vmatpush2.xpose.msra.mxu0 0.0
    %3978 = vmatprep.subr.mxu0 0.0
    %3979 = vmatpush2.xpose.msra.mxu0 0.0
    %3980 = vmatprep.mubr.f32.mxu0 0.0
    %3981 = vmatmul.mubr.f32.gmra.mxu0 %v3905
    %v3982 = vpop.f32.mrf.mxu0
    %v3983 = vadd.f32 %v44, %v3982
    %v3984 = vpop.f32.mrf.mxu0
    %3985 = vmatprep.mubr.f32.mxu0 0.0
    %3986 = vmatmul.mubr.f32.gmra.mxu0 %v3908
    %v3987 = vpop.f32.mrf.mxu0
    %v3988 = vadd.f32 %v45, %v3987
    %v3989 = vpop.f32.mrf.mxu0
    %3990 = vdwg.mxu0
    %v3991 = vsel %vm360, %v3983, -inf
    %3992 = vmax.xlane.f32.xlu0 %v3991
    %v3993 = vpop.xlane.xlu0 %3992
    %v3994 = vsel %vm360, %v3988, -inf
    %3995 = vmax.xlane.f32.xlu0 %v3994
    %v3996 = vpop.xlane.xlu0 %3995
    %v3997 = vsub.f32 %v3983, %v3993
    %v3998 = vsub.f32 %v3988, %v3996
    %v3999 = vmul.f32 %v3997, 1.442695
    %v4000 = vpow.pop %v3999
    %v4001 = vmul.f32 %v3998, 1.442695
    %v4002 = vpow.pop %v4001
    %v4003 = vsel %vm360, %v4000, 0.0
    %4004 = vadd.xlane.f32.xlu0 %v4003
    %v4005 = vpop.xlane.xlu0 %4004
    %v4006 = vsel %vm360, %v4002, 0.0
    %4007 = vadd.xlane.f32.xlu0 %v4006
    %v4008 = vpop.xlane.xlu0 %4007
    %v4009 = vrcp.pop %v4005
    %v4010 = vrcp.pop %v4008
    %v4011 = vmul.f32 %v4000, %v4009
    %v4012 = vmul.f32 %v4002, %v4010
    %v4014 = vsel %vm360, %v4011, 0
    %v4017 = vsel %vm360, %v4012, 0
    %4019 = vmatprep.subr.mxu0 0.0
    %4020 = vmatpush1.msra.mxu0 0.0
    %4021 = vmatprep.subr.mxu0 0.0
    %4022 = vmatpush1.msra.mxu0 0.0
    %4023 = vmatprep.subr.mxu0 0.0
    %4024 = vmatpush1.msra.mxu0 0.0
    %4025 = vmatprep.subr.mxu0 0.0
    %4026 = vmatpush1.msra.mxu0 0.0
    %4027 = vmatprep.subr.mxu0 0.0
    %4028 = vmatpush1.msra.mxu0 0.0
    %4029 = vmatprep.subr.mxu0 0.0
    %4030 = vmatpush1.msra.mxu0 0.0
    %4031 = vmatprep.subr.mxu0 0.0
    %4032 = vmatpush1.msra.mxu0 0.0
    %4033 = vmatprep.subr.mxu0 0.0
    %4034 = vmatpush1.msra.mxu0 0.0
    %4035 = vmatprep.subr.mxu0 0.0
    %4036 = vmatpush1.msra.mxu0 0.0
    %4037 = vmatprep.subr.mxu0 0.0
    %4038 = vmatpush1.msra.mxu0 0.0
    %4039 = vmatprep.subr.mxu0 0.0
    %4040 = vmatpush1.msra.mxu0 0.0
    %4041 = vmatprep.subr.mxu0 0.0
    %4042 = vmatpush1.msra.mxu0 0.0
    %4043 = vmatprep.subr.mxu0 0.0
    %4044 = vmatpush1.msra.mxu0 0.0
    %4045 = vmatprep.subr.mxu0 0.0
    %4046 = vmatpush1.msra.mxu0 0.0
    %4047 = vmatprep.subr.mxu0 0.0
    %4048 = vmatpush1.msra.mxu0 %v3901
    %4049 = vmatprep.subr.mxu0 0.0
    %4050 = vmatpush1.msra.mxu0 %v3896
    %4051 = vmatprep.subr.mxu0 0.0
    %4052 = vmatpush2.msra.mxu0 0.0
    %4053 = vmatprep.subr.mxu0 0.0
    %4054 = vmatpush2.msra.mxu0 0.0
    %4055 = vmatprep.subr.mxu0 0.0
    %4056 = vmatpush2.msra.mxu0 0.0
    %4057 = vmatprep.subr.mxu0 0.0
    %4058 = vmatpush2.msra.mxu0 0.0
    %4059 = vmatprep.subr.mxu0 0.0
    %4060 = vmatpush2.msra.mxu0 0.0
    %4061 = vmatprep.subr.mxu0 0.0
    %4062 = vmatpush2.msra.mxu0 0.0
    %4063 = vmatprep.subr.mxu0 0.0
    %4064 = vmatpush2.msra.mxu0 0.0
    %4065 = vmatprep.subr.mxu0 0.0
    %4066 = vmatpush2.msra.mxu0 0.0
    %4067 = vmatprep.subr.mxu0 0.0
    %4068 = vmatpush2.msra.mxu0 0.0
    %4069 = vmatprep.subr.mxu0 0.0
    %4070 = vmatpush2.msra.mxu0 0.0
    %4071 = vmatprep.subr.mxu0 0.0
    %4072 = vmatpush2.msra.mxu0 0.0
    %4073 = vmatprep.subr.mxu0 0.0
    %4074 = vmatpush2.msra.mxu0 0.0
    %4075 = vmatprep.subr.mxu0 0.0
    %4076 = vmatpush2.msra.mxu0 0.0
    %4077 = vmatprep.subr.mxu0 0.0
    %4078 = vmatpush2.msra.mxu0 0.0
    %4079 = vmatprep.subr.mxu0 0.0
    %4080 = vmatpush2.msra.mxu0 0.0
    %4081 = vmatprep.subr.mxu0 0.0
    %4082 = vmatpush2.msra.mxu0 0.0
    %4083 = vmatprep.mubr.f32.mxu0 0.0
    %4084 = vmatmul.mubr.f32.gmra.mxu0 %v4014
    %v4085 = vpop.f32.mrf.mxu0
    %v4086 = vadd.f32 0.0, %v4085
    %v4087 = vpop.f32.mrf.mxu0
    %4088 = vmatprep.mubr.f32.mxu0 0.0
    %4089 = vmatmul.mubr.f32.gmra.mxu0 %v4017
    %v4090 = vpop.f32.mrf.mxu0
    %v4091 = vadd.f32 0.0, %v4090
    %v4092 = vpop.f32.mrf.mxu0
    %4093 = vdwg.mxu0
    %s4094 = scalar_lea.vmem %s6, 96
    %v4095 = vld [vmem:[%s4094] sm:$0xff]
    %v4096 = vld [vmem:[%s4094 + $0x8] sm:$0xff]
    %v4098 = vsel %vm360, %v4086, 0
    %v4101 = vsel %vm360, %v4091, 0
    %4103 = vmatprep.subr.mxu0 0.0
    %4104 = vmatpush1.msra.mxu0 0.0
    %4105 = vmatprep.subr.mxu0 0.0
    %4106 = vmatpush1.msra.mxu0 0.0
    %4107 = vmatprep.subr.mxu0 0.0
    %4108 = vmatpush1.msra.mxu0 0.0
    %4109 = vmatprep.subr.mxu0 0.0
    %4110 = vmatpush1.msra.mxu0 0.0
    %4111 = vmatprep.subr.mxu0 0.0
    %4112 = vmatpush1.msra.mxu0 0.0
    %4113 = vmatprep.subr.mxu0 0.0
    %4114 = vmatpush1.msra.mxu0 0.0
    %4115 = vmatprep.subr.mxu0 0.0
    %4116 = vmatpush1.msra.mxu0 0.0
    %4117 = vmatprep.subr.mxu0 0.0
    %4118 = vmatpush1.msra.mxu0 0.0
    %4119 = vmatprep.subr.mxu0 0.0
    %4120 = vmatpush1.msra.mxu0 0.0
    %4121 = vmatprep.subr.mxu0 0.0
    %4122 = vmatpush1.msra.mxu0 0.0
    %4123 = vmatprep.subr.mxu0 0.0
    %4124 = vmatpush1.msra.mxu0 0.0
    %4125 = vmatprep.subr.mxu0 0.0
    %4126 = vmatpush1.msra.mxu0 0.0
    %4127 = vmatprep.subr.mxu0 0.0
    %4128 = vmatpush1.msra.mxu0 0.0
    %4129 = vmatprep.subr.mxu0 0.0
    %4130 = vmatpush1.msra.mxu0 0.0
    %4131 = vmatprep.subr.mxu0 0.0
    %4132 = vmatpush1.msra.mxu0 %v4096
    %4133 = vmatprep.subr.mxu0 0.0
    %4134 = vmatpush1.msra.mxu0 %v4095
    %4135 = vmatprep.subr.mxu0 0.0
    %4136 = vmatpush2.msra.mxu0 0.0
    %4137 = vmatprep.subr.mxu0 0.0
    %4138 = vmatpush2.msra.mxu0 0.0
    %4139 = vmatprep.subr.mxu0 0.0
    %4140 = vmatpush2.msra.mxu0 0.0
    %4141 = vmatprep.subr.mxu0 0.0
    %4142 = vmatpush2.msra.mxu0 0.0
    %4143 = vmatprep.subr.mxu0 0.0
    %4144 = vmatpush2.msra.mxu0 0.0
    %4145 = vmatprep.subr.mxu0 0.0
    %4146 = vmatpush2.msra.mxu0 0.0
    %4147 = vmatprep.subr.mxu0 0.0
    %4148 = vmatpush2.msra.mxu0 0.0
    %4149 = vmatprep.subr.mxu0 0.0
    %4150 = vmatpush2.msra.mxu0 0.0
    %4151 = vmatprep.subr.mxu0 0.0
    %4152 = vmatpush2.msra.mxu0 0.0
    %4153 = vmatprep.subr.mxu0 0.0
    %4154 = vmatpush2.msra.mxu0 0.0
    %4155 = vmatprep.subr.mxu0 0.0
    %4156 = vmatpush2.msra.mxu0 0.0
    %4157 = vmatprep.subr.mxu0 0.0
    %4158 = vmatpush2.msra.mxu0 0.0
    %4159 = vmatprep.subr.mxu0 0.0
    %4160 = vmatpush2.msra.mxu0 0.0
    %4161 = vmatprep.subr.mxu0 0.0
    %4162 = vmatpush2.msra.mxu0 0.0
    %4163 = vmatprep.subr.mxu0 0.0
    %4164 = vmatpush2.msra.mxu0 0.0
    %4165 = vmatprep.subr.mxu0 0.0
    %4166 = vmatpush2.msra.mxu0 0.0
    %4167 = vmatprep.mubr.f32.mxu0 0.0
    %4168 = vmatmul.mubr.f32.gmra.mxu0 %v4098
    %v4169 = vpop.f32.mrf.mxu0
    %v4170 = vadd.f32 0.0, %v4169
    %v4171 = vpop.f32.mrf.mxu0
    %4172 = vmatprep.mubr.f32.mxu0 0.0
    %4173 = vmatmul.mubr.f32.gmra.mxu0 %v4101
    %v4174 = vpop.f32.mrf.mxu0
    %v4175 = vadd.f32 0.0, %v4174
    %v4176 = vpop.f32.mrf.mxu0
    %4177 = vdwg.mxu0
    %v4178 = vadd.f32 %v3632, %v4170
    %v4179 = vadd.f32 %v3637, %v4175
    %s4180 = scalar_lea.vmem %s4, 480
    %v4181 = vld [vmem:[%s4180] sm:$0xff]
    %v4182 = vld [vmem:[%s4180 + $0x8] sm:$0xff]
    %v4183 = vld [vmem:[%s4180 + $0x10] sm:$0xff]
    %v4184 = vld [vmem:[%s4180 + $0x18] sm:$0xff]
    %s4185 = scalar_lea.vmem %s5, 15
    %v4186 = vld [vmem:[%s4185] sm:$0x1]
    %v4188 = vlaneseq
    %v4189 = vshrl.u32 %v4188, 7
    %v4190 = vsub.s32 0, %v4189
    %v4191 = vrot.slane %v4186, %v4190
    %4193 = vmatprep.subr.mxu0 0.0
    %4194 = vmatpush1.msra.mxu0 0.0
    %4195 = vmatprep.subr.mxu0 0.0
    %4196 = vmatpush1.msra.mxu0 0.0
    %4197 = vmatprep.subr.mxu0 0.0
    %4198 = vmatpush1.msra.mxu0 0.0
    %4199 = vmatprep.subr.mxu0 0.0
    %4200 = vmatpush1.msra.mxu0 0.0
    %4201 = vmatprep.subr.mxu0 0.0
    %4202 = vmatpush1.msra.mxu0 0.0
    %4203 = vmatprep.subr.mxu0 0.0
    %4204 = vmatpush1.msra.mxu0 0.0
    %4205 = vmatprep.subr.mxu0 0.0
    %4206 = vmatpush1.msra.mxu0 0.0
    %4207 = vmatprep.subr.mxu0 0.0
    %4208 = vmatpush1.msra.mxu0 0.0
    %4209 = vmatprep.subr.mxu0 0.0
    %4210 = vmatpush1.msra.mxu0 0.0
    %4211 = vmatprep.subr.mxu0 0.0
    %4212 = vmatpush1.msra.mxu0 0.0
    %4213 = vmatprep.subr.mxu0 0.0
    %4214 = vmatpush1.msra.mxu0 0.0
    %4215 = vmatprep.subr.mxu0 0.0
    %4216 = vmatpush1.msra.mxu0 0.0
    %4217 = vmatprep.subr.mxu0 0.0
    %4218 = vmatpush1.msra.mxu0 %v4184
    %4219 = vmatprep.subr.mxu0 0.0
    %4220 = vmatpush1.msra.mxu0 %v4183
    %4221 = vmatprep.subr.mxu0 0.0
    %4222 = vmatpush1.msra.mxu0 %v4182
    %4223 = vmatprep.subr.mxu0 0.0
    %4224 = vmatpush1.msra.mxu0 %v4181
    %4225 = vmatprep.subr.mxu0 0.0
    %4226 = vmatpush2.msra.mxu0 0.0
    %4227 = vmatprep.subr.mxu0 0.0
    %4228 = vmatpush2.msra.mxu0 0.0
    %4229 = vmatprep.subr.mxu0 0.0
    %4230 = vmatpush2.msra.mxu0 0.0
    %4231 = vmatprep.subr.mxu0 0.0
    %4232 = vmatpush2.msra.mxu0 0.0
    %4233 = vmatprep.subr.mxu0 0.0
    %4234 = vmatpush2.msra.mxu0 0.0
    %4235 = vmatprep.subr.mxu0 0.0
    %4236 = vmatpush2.msra.mxu0 0.0
    %4237 = vmatprep.subr.mxu0 0.0
    %4238 = vmatpush2.msra.mxu0 0.0
    %4239 = vmatprep.subr.mxu0 0.0
    %4240 = vmatpush2.msra.mxu0 0.0
    %4241 = vmatprep.subr.mxu0 0.0
    %4242 = vmatpush2.msra.mxu0 0.0
    %4243 = vmatprep.subr.mxu0 0.0
    %4244 = vmatpush2.msra.mxu0 0.0
    %4245 = vmatprep.subr.mxu0 0.0
    %4246 = vmatpush2.msra.mxu0 0.0
    %4247 = vmatprep.subr.mxu0 0.0
    %4248 = vmatpush2.msra.mxu0 0.0
    %4249 = vmatprep.subr.mxu0 0.0
    %4250 = vmatpush2.msra.mxu0 0.0
    %4251 = vmatprep.subr.mxu0 0.0
    %4252 = vmatpush2.msra.mxu0 0.0
    %4253 = vmatprep.subr.mxu0 0.0
    %4254 = vmatpush2.msra.mxu0 0.0
    %4255 = vmatprep.subr.mxu0 0.0
    %4256 = vmatpush2.msra.mxu0 0.0
    %4257 = vmatprep.mubr.f32.mxu0 0.0
    %4258 = vmatmul.mubr.f32.gmra.mxu0 %v2572
    %v4259 = vpop.f32.mrf.mxu0
    %v4260 = vadd.f32 %v4191, %v4259
    %v4261 = vpop.f32.mrf.mxu0
    %4262 = vmatprep.mubr.f32.mxu0 0.0
    %4263 = vmatmul.mubr.f32.gmra.mxu0 %v2575
    %v4264 = vpop.f32.mrf.mxu0
    %v4265 = vadd.f32 %v4191, %v4264
    %v4266 = vpop.f32.mrf.mxu0
    %4267 = vdwg.mxu0
    %s4268 = scalar_lea.vmem %s4, 608
    %v4269 = vld [vmem:[%s4268] sm:$0xff]
    %v4270 = vld [vmem:[%s4268 + $0x8] sm:$0xff]
    %v4271 = vld [vmem:[%s4268 + $0x10] sm:$0xff]
    %v4272 = vld [vmem:[%s4268 + $0x18] sm:$0xff]
    %s4273 = scalar_lea.vmem %s5, 19
    %v4274 = vld [vmem:[%s4273] sm:$0x1]
    %v4276 = vlaneseq
    %v4277 = vshrl.u32 %v4276, 7
    %v4278 = vsub.s32 0, %v4277
    %v4279 = vrot.slane %v4274, %v4278
    %4281 = vmatprep.subr.mxu0 0.0
    %4282 = vmatpush1.msra.mxu0 0.0
    %4283 = vmatprep.subr.mxu0 0.0
    %4284 = vmatpush1.msra.mxu0 0.0
    %4285 = vmatprep.subr.mxu0 0.0
    %4286 = vmatpush1.msra.mxu0 0.0
    %4287 = vmatprep.subr.mxu0 0.0
    %4288 = vmatpush1.msra.mxu0 0.0
    %4289 = vmatprep.subr.mxu0 0.0
    %4290 = vmatpush1.msra.mxu0 0.0
    %4291 = vmatprep.subr.mxu0 0.0
    %4292 = vmatpush1.msra.mxu0 0.0
    %4293 = vmatprep.subr.mxu0 0.0
    %4294 = vmatpush1.msra.mxu0 0.0
    %4295 = vmatprep.subr.mxu0 0.0
    %4296 = vmatpush1.msra.mxu0 0.0
    %4297 = vmatprep.subr.mxu0 0.0
    %4298 = vmatpush1.msra.mxu0 0.0
    %4299 = vmatprep.subr.mxu0 0.0
    %4300 = vmatpush1.msra.mxu0 0.0
    %4301 = vmatprep.subr.mxu0 0.0
    %4302 = vmatpush1.msra.mxu0 0.0
    %4303 = vmatprep.subr.mxu0 0.0
    %4304 = vmatpush1.msra.mxu0 0.0
    %4305 = vmatprep.subr.mxu0 0.0
    %4306 = vmatpush1.msra.mxu0 %v4272
    %4307 = vmatprep.subr.mxu0 0.0
    %4308 = vmatpush1.msra.mxu0 %v4271
    %4309 = vmatprep.subr.mxu0 0.0
    %4310 = vmatpush1.msra.mxu0 %v4270
    %4311 = vmatprep.subr.mxu0 0.0
    %4312 = vmatpush1.msra.mxu0 %v4269
    %4313 = vmatprep.subr.mxu0 0.0
    %4314 = vmatpush2.msra.mxu0 0.0
    %4315 = vmatprep.subr.mxu0 0.0
    %4316 = vmatpush2.msra.mxu0 0.0
    %4317 = vmatprep.subr.mxu0 0.0
    %4318 = vmatpush2.msra.mxu0 0.0
    %4319 = vmatprep.subr.mxu0 0.0
    %4320 = vmatpush2.msra.mxu0 0.0
    %4321 = vmatprep.subr.mxu0 0.0
    %4322 = vmatpush2.msra.mxu0 0.0
    %4323 = vmatprep.subr.mxu0 0.0
    %4324 = vmatpush2.msra.mxu0 0.0
    %4325 = vmatprep.subr.mxu0 0.0
    %4326 = vmatpush2.msra.mxu0 0.0
    %4327 = vmatprep.subr.mxu0 0.0
    %4328 = vmatpush2.msra.mxu0 0.0
    %4329 = vmatprep.subr.mxu0 0.0
    %4330 = vmatpush2.msra.mxu0 0.0
    %4331 = vmatprep.subr.mxu0 0.0
    %4332 = vmatpush2.msra.mxu0 0.0
    %4333 = vmatprep.subr.mxu0 0.0
    %4334 = vmatpush2.msra.mxu0 0.0
    %4335 = vmatprep.subr.mxu0 0.0
    %4336 = vmatpush2.msra.mxu0 0.0
    %4337 = vmatprep.subr.mxu0 0.0
    %4338 = vmatpush2.msra.mxu0 0.0
    %4339 = vmatprep.subr.mxu0 0.0
    %4340 = vmatpush2.msra.mxu0 0.0
    %4341 = vmatprep.subr.mxu0 0.0
    %4342 = vmatpush2.msra.mxu0 0.0
    %4343 = vmatprep.subr.mxu0 0.0
    %4344 = vmatpush2.msra.mxu0 0.0
    %4345 = vmatprep.mubr.f32.mxu0 0.0
    %4346 = vmatmul.mubr.f32.gmra.mxu0 %v2572
    %v4347 = vpop.f32.mrf.mxu0
    %v4348 = vadd.f32 %v4279, %v4347
    %v4349 = vpop.f32.mrf.mxu0
    %4350 = vmatprep.mubr.f32.mxu0 0.0
    %4351 = vmatmul.mubr.f32.gmra.mxu0 %v2575
    %v4352 = vpop.f32.mrf.mxu0
    %v4353 = vadd.f32 %v4279, %v4352
    %v4354 = vpop.f32.mrf.mxu0
    %4355 = vdwg.mxu0
    %s4356 = scalar_lea.vmem %s4, 736
    %v4357 = vld [vmem:[%s4356] sm:$0xff]
    %v4358 = vld [vmem:[%s4356 + $0x8] sm:$0xff]
    %v4359 = vld [vmem:[%s4356 + $0x10] sm:$0xff]
    %v4360 = vld [vmem:[%s4356 + $0x18] sm:$0xff]
    %s4361 = scalar_lea.vmem %s5, 23
    %v4362 = vld [vmem:[%s4361] sm:$0x1]
    %v4364 = vlaneseq
    %v4365 = vshrl.u32 %v4364, 7
    %v4366 = vsub.s32 0, %v4365
    %v4367 = vrot.slane %v4362, %v4366
    %4369 = vmatprep.subr.mxu0 0.0
    %4370 = vmatpush1.msra.mxu0 0.0
    %4371 = vmatprep.subr.mxu0 0.0
    %4372 = vmatpush1.msra.mxu0 0.0
    %4373 = vmatprep.subr.mxu0 0.0
    %4374 = vmatpush1.msra.mxu0 0.0
    %4375 = vmatprep.subr.mxu0 0.0
    %4376 = vmatpush1.msra.mxu0 0.0
    %4377 = vmatprep.subr.mxu0 0.0
    %4378 = vmatpush1.msra.mxu0 0.0
    %4379 = vmatprep.subr.mxu0 0.0
    %4380 = vmatpush1.msra.mxu0 0.0
    %4381 = vmatprep.subr.mxu0 0.0
    %4382 = vmatpush1.msra.mxu0 0.0
    %4383 = vmatprep.subr.mxu0 0.0
    %4384 = vmatpush1.msra.mxu0 0.0
    %4385 = vmatprep.subr.mxu0 0.0
    %4386 = vmatpush1.msra.mxu0 0.0
    %4387 = vmatprep.subr.mxu0 0.0
    %4388 = vmatpush1.msra.mxu0 0.0
    %4389 = vmatprep.subr.mxu0 0.0
    %4390 = vmatpush1.msra.mxu0 0.0
    %4391 = vmatprep.subr.mxu0 0.0
    %4392 = vmatpush1.msra.mxu0 0.0
    %4393 = vmatprep.subr.mxu0 0.0
    %4394 = vmatpush1.msra.mxu0 %v4360
    %4395 = vmatprep.subr.mxu0 0.0
    %4396 = vmatpush1.msra.mxu0 %v4359
    %4397 = vmatprep.subr.mxu0 0.0
    %4398 = vmatpush1.msra.mxu0 %v4358
    %4399 = vmatprep.subr.mxu0 0.0
    %4400 = vmatpush1.msra.mxu0 %v4357
    %4401 = vmatprep.subr.mxu0 0.0
    %4402 = vmatpush2.msra.mxu0 0.0
    %4403 = vmatprep.subr.mxu0 0.0
    %4404 = vmatpush2.msra.mxu0 0.0
    %4405 = vmatprep.subr.mxu0 0.0
    %4406 = vmatpush2.msra.mxu0 0.0
    %4407 = vmatprep.subr.mxu0 0.0
    %4408 = vmatpush2.msra.mxu0 0.0
    %4409 = vmatprep.subr.mxu0 0.0
    %4410 = vmatpush2.msra.mxu0 0.0
    %4411 = vmatprep.subr.mxu0 0.0
    %4412 = vmatpush2.msra.mxu0 0.0
    %4413 = vmatprep.subr.mxu0 0.0
    %4414 = vmatpush2.msra.mxu0 0.0
    %4415 = vmatprep.subr.mxu0 0.0
    %4416 = vmatpush2.msra.mxu0 0.0
    %4417 = vmatprep.subr.mxu0 0.0
    %4418 = vmatpush2.msra.mxu0 0.0
    %4419 = vmatprep.subr.mxu0 0.0
    %4420 = vmatpush2.msra.mxu0 0.0
    %4421 = vmatprep.subr.mxu0 0.0
    %4422 = vmatpush2.msra.mxu0 0.0
    %4423 = vmatprep.subr.mxu0 0.0
    %4424 = vmatpush2.msra.mxu0 0.0
    %4425 = vmatprep.subr.mxu0 0.0
    %4426 = vmatpush2.msra.mxu0 0.0
    %4427 = vmatprep.subr.mxu0 0.0
    %4428 = vmatpush2.msra.mxu0 0.0
    %4429 = vmatprep.subr.mxu0 0.0
    %4430 = vmatpush2.msra.mxu0 0.0
    %4431 = vmatprep.subr.mxu0 0.0
    %4432 = vmatpush2.msra.mxu0 0.0
    %4433 = vmatprep.mubr.f32.mxu0 0.0
    %4434 = vmatmul.mubr.f32.gmra.mxu0 %v2572
    %v4435 = vpop.f32.mrf.mxu0
    %v4436 = vadd.f32 %v4367, %v4435
    %v4437 = vpop.f32.mrf.mxu0
    %4438 = vmatprep.mubr.f32.mxu0 0.0
    %4439 = vmatmul.mubr.f32.gmra.mxu0 %v2575
    %v4440 = vpop.f32.mrf.mxu0
    %v4441 = vadd.f32 %v4367, %v4440
    %v4442 = vpop.f32.mrf.mxu0
    %4443 = vdwg.mxu0
    %v4445 = vsel %vm360, %v4260, 0
    %v4448 = vsel %vm360, %v4265, 0
    %v4451 = vsel %vm360, %v4348, 0
    %v4454 = vsel %vm360, %v4353, 0
    %4456 = vmatprep.subr.mxu0 0.0
    %4457 = vmatpush1.xpose.msra.mxu0 0.0
    %4458 = vmatprep.subr.mxu0 0.0
    %4459 = vmatpush1.xpose.msra.mxu0 0.0
    %4460 = vmatprep.subr.mxu0 0.0
    %4461 = vmatpush1.xpose.msra.mxu0 0.0
    %4462 = vmatprep.subr.mxu0 0.0
    %4463 = vmatpush1.xpose.msra.mxu0 0.0
    %4464 = vmatprep.subr.mxu0 0.0
    %4465 = vmatpush1.xpose.msra.mxu0 0.0
    %4466 = vmatprep.subr.mxu0 0.0
    %4467 = vmatpush1.xpose.msra.mxu0 0.0
    %4468 = vmatprep.subr.mxu0 0.0
    %4469 = vmatpush1.xpose.msra.mxu0 0.0
    %4470 = vmatprep.subr.mxu0 0.0
    %4471 = vmatpush1.xpose.msra.mxu0 0.0
    %4472 = vmatprep.subr.mxu0 0.0
    %4473 = vmatpush1.xpose.msra.mxu0 0.0
    %4474 = vmatprep.subr.mxu0 0.0
    %4475 = vmatpush1.xpose.msra.mxu0 0.0
    %4476 = vmatprep.subr.mxu0 0.0
    %4477 = vmatpush1.xpose.msra.mxu0 0.0
    %4478 = vmatprep.subr.mxu0 0.0
    %4479 = vmatpush1.xpose.msra.mxu0 0.0
    %4480 = vmatprep.subr.mxu0 0.0
    %4481 = vmatpush1.xpose.msra.mxu0 0.0
    %4482 = vmatprep.subr.mxu0 0.0
    %4483 = vmatpush1.xpose.msra.mxu0 0.0
    %4484 = vmatprep.subr.mxu0 0.0
    %4485 = vmatpush1.xpose.msra.mxu0 %v4454
    %4486 = vmatprep.subr.mxu0 0.0
    %4487 = vmatpush1.xpose.msra.mxu0 %v4451
    %4488 = vmatprep.subr.mxu0 0.0
    %4489 = vmatpush2.xpose.msra.mxu0 0.0
    %4490 = vmatprep.subr.mxu0 0.0
    %4491 = vmatpush2.xpose.msra.mxu0 0.0
    %4492 = vmatprep.subr.mxu0 0.0
    %4493 = vmatpush2.xpose.msra.mxu0 0.0
    %4494 = vmatprep.subr.mxu0 0.0
    %4495 = vmatpush2.xpose.msra.mxu0 0.0
    %4496 = vmatprep.subr.mxu0 0.0
    %4497 = vmatpush2.xpose.msra.mxu0 0.0
    %4498 = vmatprep.subr.mxu0 0.0
    %4499 = vmatpush2.xpose.msra.mxu0 0.0
    %4500 = vmatprep.subr.mxu0 0.0
    %4501 = vmatpush2.xpose.msra.mxu0 0.0
    %4502 = vmatprep.subr.mxu0 0.0
    %4503 = vmatpush2.xpose.msra.mxu0 0.0
    %4504 = vmatprep.subr.mxu0 0.0
    %4505 = vmatpush2.xpose.msra.mxu0 0.0
    %4506 = vmatprep.subr.mxu0 0.0
    %4507 = vmatpush2.xpose.msra.mxu0 0.0
    %4508 = vmatprep.subr.mxu0 0.0
    %4509 = vmatpush2.xpose.msra.mxu0 0.0
    %4510 = vmatprep.subr.mxu0 0.0
    %4511 = vmatpush2.xpose.msra.mxu0 0.0
    %4512 = vmatprep.subr.mxu0 0.0
    %4513 = vmatpush2.xpose.msra.mxu0 0.0
    %4514 = vmatprep.subr.mxu0 0.0
    %4515 = vmatpush2.xpose.msra.mxu0 0.0
    %4516 = vmatprep.subr.mxu0 0.0
    %4517 = vmatpush2.xpose.msra.mxu0 0.0
    %4518 = vmatprep.subr.mxu0 0.0
    %4519 = vmatpush2.xpose.msra.mxu0 0.0
    %4520 = vmatprep.mubr.f32.mxu0 0.0
    %4521 = vmatmul.mubr.f32.gmra.mxu0 %v4445
    %v4522 = vpop.f32.mrf.mxu0
    %v4523 = vadd.f32 %v44, %v4522
    %v4524 = vpop.f32.mrf.mxu0
    %4525 = vmatprep.mubr.f32.mxu0 0.0
    %4526 = vmatmul.mubr.f32.gmra.mxu0 %v4448
    %v4527 = vpop.f32.mrf.mxu0
    %v4528 = vadd.f32 %v45, %v4527
    %v4529 = vpop.f32.mrf.mxu0
    %4530 = vdwg.mxu0
    %v4531 = vsel %vm360, %v4523, -inf
    %4532 = vmax.xlane.f32.xlu0 %v4531
    %v4533 = vpop.xlane.xlu0 %4532
    %v4534 = vsel %vm360, %v4528, -inf
    %4535 = vmax.xlane.f32.xlu0 %v4534
    %v4536 = vpop.xlane.xlu0 %4535
    %v4537 = vsub.f32 %v4523, %v4533
    %v4538 = vsub.f32 %v4528, %v4536
    %v4539 = vmul.f32 %v4537, 1.442695
    %v4540 = vpow.pop %v4539
    %v4541 = vmul.f32 %v4538, 1.442695
    %v4542 = vpow.pop %v4541
    %v4543 = vsel %vm360, %v4540, 0.0
    %4544 = vadd.xlane.f32.xlu0 %v4543
    %v4545 = vpop.xlane.xlu0 %4544
    %v4546 = vsel %vm360, %v4542, 0.0
    %4547 = vadd.xlane.f32.xlu0 %v4546
    %v4548 = vpop.xlane.xlu0 %4547
    %v4549 = vrcp.pop %v4545
    %v4550 = vrcp.pop %v4548
    %v4551 = vmul.f32 %v4540, %v4549
    %v4552 = vmul.f32 %v4542, %v4550
    %v4554 = vsel %vm360, %v4551, 0
    %v4557 = vsel %vm360, %v4552, 0
    %4559 = vmatprep.subr.mxu0 0.0
    %4560 = vmatpush1.msra.mxu0 0.0
    %4561 = vmatprep.subr.mxu0 0.0
    %4562 = vmatpush1.msra.mxu0 0.0
    %4563 = vmatprep.subr.mxu0 0.0
    %4564 = vmatpush1.msra.mxu0 0.0
    %4565 = vmatprep.subr.mxu0 0.0
    %4566 = vmatpush1.msra.mxu0 0.0
    %4567 = vmatprep.subr.mxu0 0.0
    %4568 = vmatpush1.msra.mxu0 0.0
    %4569 = vmatprep.subr.mxu0 0.0
    %4570 = vmatpush1.msra.mxu0 0.0
    %4571 = vmatprep.subr.mxu0 0.0
    %4572 = vmatpush1.msra.mxu0 0.0
    %4573 = vmatprep.subr.mxu0 0.0
    %4574 = vmatpush1.msra.mxu0 0.0
    %4575 = vmatprep.subr.mxu0 0.0
    %4576 = vmatpush1.msra.mxu0 0.0
    %4577 = vmatprep.subr.mxu0 0.0
    %4578 = vmatpush1.msra.mxu0 0.0
    %4579 = vmatprep.subr.mxu0 0.0
    %4580 = vmatpush1.msra.mxu0 0.0
    %4581 = vmatprep.subr.mxu0 0.0
    %4582 = vmatpush1.msra.mxu0 0.0
    %4583 = vmatprep.subr.mxu0 0.0
    %4584 = vmatpush1.msra.mxu0 0.0
    %4585 = vmatprep.subr.mxu0 0.0
    %4586 = vmatpush1.msra.mxu0 0.0
    %4587 = vmatprep.subr.mxu0 0.0
    %4588 = vmatpush1.msra.mxu0 %v4441
    %4589 = vmatprep.subr.mxu0 0.0
    %4590 = vmatpush1.msra.mxu0 %v4436
    %4591 = vmatprep.subr.mxu0 0.0
    %4592 = vmatpush2.msra.mxu0 0.0
    %4593 = vmatprep.subr.mxu0 0.0
    %4594 = vmatpush2.msra.mxu0 0.0
    %4595 = vmatprep.subr.mxu0 0.0
    %4596 = vmatpush2.msra.mxu0 0.0
    %4597 = vmatprep.subr.mxu0 0.0
    %4598 = vmatpush2.msra.mxu0 0.0
    %4599 = vmatprep.subr.mxu0 0.0
    %4600 = vmatpush2.msra.mxu0 0.0
    %4601 = vmatprep.subr.mxu0 0.0
    %4602 = vmatpush2.msra.mxu0 0.0
    %4603 = vmatprep.subr.mxu0 0.0
    %4604 = vmatpush2.msra.mxu0 0.0
    %4605 = vmatprep.subr.mxu0 0.0
    %4606 = vmatpush2.msra.mxu0 0.0
    %4607 = vmatprep.subr.mxu0 0.0
    %4608 = vmatpush2.msra.mxu0 0.0
    %4609 = vmatprep.subr.mxu0 0.0
    %4610 = vmatpush2.msra.mxu0 0.0
    %4611 = vmatprep.subr.mxu0 0.0
    %4612 = vmatpush2.msra.mxu0 0.0
    %4613 = vmatprep.subr.mxu0 0.0
    %4614 = vmatpush2.msra.mxu0 0.0
    %4615 = vmatprep.subr.mxu0 0.0
    %4616 = vmatpush2.msra.mxu0 0.0
    %4617 = vmatprep.subr.mxu0 0.0
    %4618 = vmatpush2.msra.mxu0 0.0
    %4619 = vmatprep.subr.mxu0 0.0
    %4620 = vmatpush2.msra.mxu0 0.0
    %4621 = vmatprep.subr.mxu0 0.0
    %4622 = vmatpush2.msra.mxu0 0.0
    %4623 = vmatprep.mubr.f32.mxu0 0.0
    %4624 = vmatmul.mubr.f32.gmra.mxu0 %v4554
    %v4625 = vpop.f32.mrf.mxu0
    %v4626 = vadd.f32 0.0, %v4625
    %v4627 = vpop.f32.mrf.mxu0
    %4628 = vmatprep.mubr.f32.mxu0 0.0
    %4629 = vmatmul.mubr.f32.gmra.mxu0 %v4557
    %v4630 = vpop.f32.mrf.mxu0
    %v4631 = vadd.f32 0.0, %v4630
    %v4632 = vpop.f32.mrf.mxu0
    %4633 = vdwg.mxu0
    %s4634 = scalar_lea.vmem %s6, 112
    %v4635 = vld [vmem:[%s4634] sm:$0xff]
    %v4636 = vld [vmem:[%s4634 + $0x8] sm:$0xff]
    %v4638 = vsel %vm360, %v4626, 0
    %v4641 = vsel %vm360, %v4631, 0
    %4643 = vmatprep.subr.mxu0 0.0
    %4644 = vmatpush1.msra.mxu0 0.0
    %4645 = vmatprep.subr.mxu0 0.0
    %4646 = vmatpush1.msra.mxu0 0.0
    %4647 = vmatprep.subr.mxu0 0.0
    %4648 = vmatpush1.msra.mxu0 0.0
    %4649 = vmatprep.subr.mxu0 0.0
    %4650 = vmatpush1.msra.mxu0 0.0
    %4651 = vmatprep.subr.mxu0 0.0
    %4652 = vmatpush1.msra.mxu0 0.0
    %4653 = vmatprep.subr.mxu0 0.0
    %4654 = vmatpush1.msra.mxu0 0.0
    %4655 = vmatprep.subr.mxu0 0.0
    %4656 = vmatpush1.msra.mxu0 0.0
    %4657 = vmatprep.subr.mxu0 0.0
    %4658 = vmatpush1.msra.mxu0 0.0
    %4659 = vmatprep.subr.mxu0 0.0
    %4660 = vmatpush1.msra.mxu0 0.0
    %4661 = vmatprep.subr.mxu0 0.0
    %4662 = vmatpush1.msra.mxu0 0.0
    %4663 = vmatprep.subr.mxu0 0.0
    %4664 = vmatpush1.msra.mxu0 0.0
    %4665 = vmatprep.subr.mxu0 0.0
    %4666 = vmatpush1.msra.mxu0 0.0
    %4667 = vmatprep.subr.mxu0 0.0
    %4668 = vmatpush1.msra.mxu0 0.0
    %4669 = vmatprep.subr.mxu0 0.0
    %4670 = vmatpush1.msra.mxu0 0.0
    %4671 = vmatprep.subr.mxu0 0.0
    %4672 = vmatpush1.msra.mxu0 %v4636
    %4673 = vmatprep.subr.mxu0 0.0
    %4674 = vmatpush1.msra.mxu0 %v4635
    %4675 = vmatprep.subr.mxu0 0.0
    %4676 = vmatpush2.msra.mxu0 0.0
    %4677 = vmatprep.subr.mxu0 0.0
    %4678 = vmatpush2.msra.mxu0 0.0
    %4679 = vmatprep.subr.mxu0 0.0
    %4680 = vmatpush2.msra.mxu0 0.0
    %4681 = vmatprep.subr.mxu0 0.0
    %4682 = vmatpush2.msra.mxu0 0.0
    %4683 = vmatprep.subr.mxu0 0.0
    %4684 = vmatpush2.msra.mxu0 0.0
    %4685 = vmatprep.subr.mxu0 0.0
    %4686 = vmatpush2.msra.mxu0 0.0
    %4687 = vmatprep.subr.mxu0 0.0
    %4688 = vmatpush2.msra.mxu0 0.0
    %4689 = vmatprep.subr.mxu0 0.0
    %4690 = vmatpush2.msra.mxu0 0.0
    %4691 = vmatprep.subr.mxu0 0.0
    %4692 = vmatpush2.msra.mxu0 0.0
    %4693 = vmatprep.subr.mxu0 0.0
    %4694 = vmatpush2.msra.mxu0 0.0
    %4695 = vmatprep.subr.mxu0 0.0
    %4696 = vmatpush2.msra.mxu0 0.0
    %4697 = vmatprep.subr.mxu0 0.0
    %4698 = vmatpush2.msra.mxu0 0.0
    %4699 = vmatprep.subr.mxu0 0.0
    %4700 = vmatpush2.msra.mxu0 0.0
    %4701 = vmatprep.subr.mxu0 0.0
    %4702 = vmatpush2.msra.mxu0 0.0
    %4703 = vmatprep.subr.mxu0 0.0
    %4704 = vmatpush2.msra.mxu0 0.0
    %4705 = vmatprep.subr.mxu0 0.0
    %4706 = vmatpush2.msra.mxu0 0.0
    %4707 = vmatprep.mubr.f32.mxu0 0.0
    %4708 = vmatmul.mubr.f32.gmra.mxu0 %v4638
    %v4709 = vpop.f32.mrf.mxu0
    %v4710 = vadd.f32 0.0, %v4709
    %v4711 = vpop.f32.mrf.mxu0
    %4712 = vmatprep.mubr.f32.mxu0 0.0
    %4713 = vmatmul.mubr.f32.gmra.mxu0 %v4641
    %v4714 = vpop.f32.mrf.mxu0
    %v4715 = vadd.f32 0.0, %v4714
    %v4716 = vpop.f32.mrf.mxu0
    %4717 = vdwg.mxu0
    %v4718 = vadd.f32 %v4178, %v4710
    %v4719 = vadd.f32 %v4179, %v4715
    %v4720 = vadd.f32 %v2510, %v4718
    %v4721 = vadd.f32 %v2511, %v4719
    %s4722 = scalar_lea.vmem %s7, 1
    %v4723 = vld [vmem:[%s4722] sm:$0x1]
    %v4725 = vlaneseq
    %v4726 = vshrl.u32 %v4725, 7
    %v4727 = vsub.s32 0, %v4726
    %v4728 = vrot.slane %v4723, %v4727
    %v4730 = vadd.f32 %v4720, %v4728
    %v4731 = vadd.f32 %v4721, %v4728
    %s4732 = scalar_lea.vmem %s2, 3
    %v4733 = vld [vmem:[%s4732] sm:$0x1]
    %s4734 = scalar_lea.vmem %s3, 3
    %v4735 = vld [vmem:[%s4734] sm:$0x1]
    %v4736 = vsel %vm48, %v4730, 0.0
    %4737 = vadd.xlane.f32.xlu0 %v4736
    %v4738 = vpop.xlane.xlu0 %4737
    %v4739 = vsel %vm48, %v4731, 0.0
    %4740 = vadd.xlane.f32.xlu0 %v4739
    %v4741 = vpop.xlane.xlu0 %4740
    %v4742 = vmul.f32 %v4738, %v55
    %v4743 = vmul.f32 %v4741, %v55
    %v4744 = vsub.f32 %v4730, %v4742
    %v4745 = vsub.f32 %v4731, %v4743
    %v4746 = vmul.f32 %v4744, %v4744
    %v4747 = vmul.f32 %v4745, %v4745
    %v4748 = vsel %vm48, %v4746, 0.0
    %4749 = vadd.xlane.f32.xlu0 %v4748
    %v4750 = vpop.xlane.xlu0 %4749
    %v4751 = vsel %vm48, %v4747, 0.0
    %4752 = vadd.xlane.f32.xlu0 %v4751
    %v4753 = vpop.xlane.xlu0 %4752
    %v4754 = vmul.f32 %v4750, %v55
    %v4755 = vmul.f32 %v4753, %v55
    %v4756 = vadd.f32 %v4754, 1e-05
    %v4757 = vadd.f32 %v4755, 1e-05
    %v4758 = vrsqrt.pop %v4756
    %v4759 = vrsqrt.pop %v4757
    %v4760 = vmul.f32 %v4744, %v4758
    %v4761 = vmul.f32 %v4745, %v4759
    %v4763 = vlaneseq
    %v4764 = vshrl.u32 %v4763, 7
    %v4765 = vsub.s32 0, %v4764
    %v4766 = vrot.slane %v4733, %v4765
    %v4768 = vmul.f32 %v4760, %v4766
    %v4769 = vmul.f32 %v4761, %v4766
    %v4771 = vlaneseq
    %v4772 = vshrl.u32 %v4771, 7
    %v4773 = vsub.s32 0, %v4772
    %v4774 = vrot.slane %v4735, %v4773
    %v4776 = vadd.f32 %v4768, %v4774
    %v4777 = vadd.f32 %v4769, %v4774
    %s4778 = scalar_lea.vmem %s8, 32
    %v4779 = vld [vmem:[%s4778] sm:$0xff]
    %v4780 = vld [vmem:[%s4778 + $0x8] sm:$0xff]
    %v4781 = vld [vmem:[%s4778 + $0x10] sm:$0xff]
    %v4782 = vld [vmem:[%s4778 + $0x18] sm:$0xff]
    %s4783 = scalar_lea.vmem %s9, 1
    %v4784 = vld [vmem:[%s4783] sm:$0x1]
    %v4786 = vlaneseq
    %v4787 = vshrl.u32 %v4786, 7
    %v4788 = vsub.s32 0, %v4787
    %v4789 = vrot.slane %v4784, %v4788
    %v4792 = vsel %vm48, %v4776, 0
    %v4795 = vsel %vm48, %v4777, 0
    %4797 = vmatprep.subr.mxu0 0.0
    %4798 = vmatpush1.msra.mxu0 0.0
    %4799 = vmatprep.subr.mxu0 0.0
    %4800 = vmatpush1.msra.mxu0 0.0
    %4801 = vmatprep.subr.mxu0 0.0
    %4802 = vmatpush1.msra.mxu0 0.0
    %4803 = vmatprep.subr.mxu0 0.0
    %4804 = vmatpush1.msra.mxu0 0.0
    %4805 = vmatprep.subr.mxu0 0.0
    %4806 = vmatpush1.msra.mxu0 0.0
    %4807 = vmatprep.subr.mxu0 0.0
    %4808 = vmatpush1.msra.mxu0 0.0
    %4809 = vmatprep.subr.mxu0 0.0
    %4810 = vmatpush1.msra.mxu0 0.0
    %4811 = vmatprep.subr.mxu0 0.0
    %4812 = vmatpush1.msra.mxu0 0.0
    %4813 = vmatprep.subr.mxu0 0.0
    %4814 = vmatpush1.msra.mxu0 0.0
    %4815 = vmatprep.subr.mxu0 0.0
    %4816 = vmatpush1.msra.mxu0 0.0
    %4817 = vmatprep.subr.mxu0 0.0
    %4818 = vmatpush1.msra.mxu0 0.0
    %4819 = vmatprep.subr.mxu0 0.0
    %4820 = vmatpush1.msra.mxu0 0.0
    %4821 = vmatprep.subr.mxu0 0.0
    %4822 = vmatpush1.msra.mxu0 %v4782
    %4823 = vmatprep.subr.mxu0 0.0
    %4824 = vmatpush1.msra.mxu0 %v4781
    %4825 = vmatprep.subr.mxu0 0.0
    %4826 = vmatpush1.msra.mxu0 %v4780
    %4827 = vmatprep.subr.mxu0 0.0
    %4828 = vmatpush1.msra.mxu0 %v4779
    %4829 = vmatprep.subr.mxu0 0.0
    %4830 = vmatpush2.msra.mxu0 0.0
    %4831 = vmatprep.subr.mxu0 0.0
    %4832 = vmatpush2.msra.mxu0 0.0
    %4833 = vmatprep.subr.mxu0 0.0
    %4834 = vmatpush2.msra.mxu0 0.0
    %4835 = vmatprep.subr.mxu0 0.0
    %4836 = vmatpush2.msra.mxu0 0.0
    %4837 = vmatprep.subr.mxu0 0.0
    %4838 = vmatpush2.msra.mxu0 0.0
    %4839 = vmatprep.subr.mxu0 0.0
    %4840 = vmatpush2.msra.mxu0 0.0
    %4841 = vmatprep.subr.mxu0 0.0
    %4842 = vmatpush2.msra.mxu0 0.0
    %4843 = vmatprep.subr.mxu0 0.0
    %4844 = vmatpush2.msra.mxu0 0.0
    %4845 = vmatprep.subr.mxu0 0.0
    %4846 = vmatpush2.msra.mxu0 0.0
    %4847 = vmatprep.subr.mxu0 0.0
    %4848 = vmatpush2.msra.mxu0 0.0
    %4849 = vmatprep.subr.mxu0 0.0
    %4850 = vmatpush2.msra.mxu0 0.0
    %4851 = vmatprep.subr.mxu0 0.0
    %4852 = vmatpush2.msra.mxu0 0.0
    %4853 = vmatprep.subr.mxu0 0.0
    %4854 = vmatpush2.msra.mxu0 0.0
    %4855 = vmatprep.subr.mxu0 0.0
    %4856 = vmatpush2.msra.mxu0 0.0
    %4857 = vmatprep.subr.mxu0 0.0
    %4858 = vmatpush2.msra.mxu0 0.0
    %4859 = vmatprep.subr.mxu0 0.0
    %4860 = vmatpush2.msra.mxu0 0.0
    %4861 = vmatprep.mubr.f32.mxu0 0.0
    %4862 = vmatmul.mubr.f32.gmra.mxu0 %v4792
    %v4863 = vpop.f32.mrf.mxu0
    %v4864 = vadd.f32 %v4789, %v4863
    %v4865 = vpop.f32.mrf.mxu0
    %4866 = vmatprep.mubr.f32.mxu0 0.0
    %4867 = vmatmul.mubr.f32.gmra.mxu0 %v4795
    %v4868 = vpop.f32.mrf.mxu0
    %v4869 = vadd.f32 %v4789, %v4868
    %v4870 = vpop.f32.mrf.mxu0
    %4871 = vdwg.mxu0
    %v4872 = vmul.f32 %v4864, 0.5
    %v4873 = vmul.f32 %v4869, 0.5
    %v4874 = vmul.f32 %v4864, 0.70710677
    %v4875 = vmul.f32 %v4869, 0.70710677
    %v4876 = verf.f32.pop %v4874
    %v4877 = verf.f32.pop %v4875
    %v4878 = vadd.f32 %v4876, 1.0
    %v4879 = vadd.f32 %v4877, 1.0
    %v4880 = vmul.f32 %v4872, %v4878
    %v4881 = vmul.f32 %v4873, %v4879
    %s4882 = scalar_lea.vmem %s10, 64
    %v4883 = vld [vmem:[%s4882] sm:$0xff]
    %v4884 = vld [vmem:[%s4882 + $0x8] sm:$0xff]
    %v4885 = vld [vmem:[%s4882 + $0x10] sm:$0xff]
    %v4886 = vld [vmem:[%s4882 + $0x18] sm:$0xff]
    %v4887 = vld [vmem:[%s4882 + $0x20] sm:$0xff]
    %v4888 = vld [vmem:[%s4882 + $0x28] sm:$0xff]
    %v4889 = vld [vmem:[%s4882 + $0x30] sm:$0xff]
    %v4890 = vld [vmem:[%s4882 + $0x38] sm:$0xff]
    %v4892 = vsel %vm2419, %v4880, 0
    %v4895 = vsel %vm2419, %v4881, 0
    %4897 = vmatprep.subr.mxu0 0.0
    %4898 = vmatpush1.msra.mxu0 0.0
    %4899 = vmatprep.subr.mxu0 0.0
    %4900 = vmatpush1.msra.mxu0 0.0
    %4901 = vmatprep.subr.mxu0 0.0
    %4902 = vmatpush1.msra.mxu0 0.0
    %4903 = vmatprep.subr.mxu0 0.0
    %4904 = vmatpush1.msra.mxu0 0.0
    %4905 = vmatprep.subr.mxu0 0.0
    %4906 = vmatpush1.msra.mxu0 0.0
    %4907 = vmatprep.subr.mxu0 0.0
    %4908 = vmatpush1.msra.mxu0 0.0
    %4909 = vmatprep.subr.mxu0 0.0
    %4910 = vmatpush1.msra.mxu0 0.0
    %4911 = vmatprep.subr.mxu0 0.0
    %4912 = vmatpush1.msra.mxu0 0.0
    %4913 = vmatprep.subr.mxu0 0.0
    %4914 = vmatpush1.msra.mxu0 %v4890
    %4915 = vmatprep.subr.mxu0 0.0
    %4916 = vmatpush1.msra.mxu0 %v4889
    %4917 = vmatprep.subr.mxu0 0.0
    %4918 = vmatpush1.msra.mxu0 %v4888
    %4919 = vmatprep.subr.mxu0 0.0
    %4920 = vmatpush1.msra.mxu0 %v4887
    %4921 = vmatprep.subr.mxu0 0.0
    %4922 = vmatpush1.msra.mxu0 %v4886
    %4923 = vmatprep.subr.mxu0 0.0
    %4924 = vmatpush1.msra.mxu0 %v4885
    %4925 = vmatprep.subr.mxu0 0.0
    %4926 = vmatpush1.msra.mxu0 %v4884
    %4927 = vmatprep.subr.mxu0 0.0
    %4928 = vmatpush1.msra.mxu0 %v4883
    %4929 = vmatprep.subr.mxu0 0.0
    %4930 = vmatpush2.msra.mxu0 0.0
    %4931 = vmatprep.subr.mxu0 0.0
    %4932 = vmatpush2.msra.mxu0 0.0
    %4933 = vmatprep.subr.mxu0 0.0
    %4934 = vmatpush2.msra.mxu0 0.0
    %4935 = vmatprep.subr.mxu0 0.0
    %4936 = vmatpush2.msra.mxu0 0.0
    %4937 = vmatprep.subr.mxu0 0.0
    %4938 = vmatpush2.msra.mxu0 0.0
    %4939 = vmatprep.subr.mxu0 0.0
    %4940 = vmatpush2.msra.mxu0 0.0
    %4941 = vmatprep.subr.mxu0 0.0
    %4942 = vmatpush2.msra.mxu0 0.0
    %4943 = vmatprep.subr.mxu0 0.0
    %4944 = vmatpush2.msra.mxu0 0.0
    %4945 = vmatprep.subr.mxu0 0.0
    %4946 = vmatpush2.msra.mxu0 0.0
    %4947 = vmatprep.subr.mxu0 0.0
    %4948 = vmatpush2.msra.mxu0 0.0
    %4949 = vmatprep.subr.mxu0 0.0
    %4950 = vmatpush2.msra.mxu0 0.0
    %4951 = vmatprep.subr.mxu0 0.0
    %4952 = vmatpush2.msra.mxu0 0.0
    %4953 = vmatprep.subr.mxu0 0.0
    %4954 = vmatpush2.msra.mxu0 0.0
    %4955 = vmatprep.subr.mxu0 0.0
    %4956 = vmatpush2.msra.mxu0 0.0
    %4957 = vmatprep.subr.mxu0 0.0
    %4958 = vmatpush2.msra.mxu0 0.0
    %4959 = vmatprep.subr.mxu0 0.0
    %4960 = vmatpush2.msra.mxu0 0.0
    %4961 = vmatprep.mubr.f32.mxu0 0.0
    %4962 = vmatmul.mubr.f32.gmra.mxu0 %v4892
    %v4963 = vpop.f32.mrf.mxu0
    %v4964 = vadd.f32 0.0, %v4963
    %v4965 = vpop.f32.mrf.mxu0
    %4966 = vmatprep.mubr.f32.mxu0 0.0
    %4967 = vmatmul.mubr.f32.gmra.mxu0 %v4895
    %v4968 = vpop.f32.mrf.mxu0
    %v4969 = vadd.f32 0.0, %v4968
    %v4970 = vpop.f32.mrf.mxu0
    %4971 = vdwg.mxu0
    %v4972 = vadd.f32 %v4730, %v4964
    %v4973 = vadd.f32 %v4731, %v4969
    %s4974 = scalar_lea.vmem %s11, 1
    %v4975 = vld [vmem:[%s4974] sm:$0x1]
    %v4977 = vlaneseq
    %v4978 = vshrl.u32 %v4977, 7
    %v4979 = vsub.s32 0, %v4978
    %v4980 = vrot.slane %v4975, %v4979
    %v4982 = vadd.f32 %v4972, %v4980
    %v4983 = vadd.f32 %v4973, %v4980
    %4984 = vst.msk [vmem:[#allocation2] sm:$0xff] %vm48, %v4982
    %4985 = vst.msk [vmem:[#allocation2 + $0x8] sm:$0xff] %vm48, %v4983
    // Predicated region
    $region50: #{tpu_custom_call.1} parent=1 // pred_check
      _
    $region51: #{tpu_custom_call.1} parent=1 // pred_check_branch
      %4987 = sbr.rel (0) target = $region53
    $region52: #{tpu_custom_call.1} parent=1 // pred_region
      %s4989 = ssub.s32 256, 256
      %4990 = vsyncadd [#allocation3], %s4989
      %s4991 = sshll.u32 [#allocation2], 4
      %s4992 = int_to_ptr.vmem [resolvable:$true] %s4991
      %4997 = dma.vmem_to_hbm [thread:$0]  %s4992, 256, %s12, [#allocation3], 128, 128, 8
    $region53: #{tpu_custom_call.1} parent=1 // pred_fallthru
      _
    // Predicated region
    $region54: #{tpu_custom_call.1} parent=1 // pred_check
      _
    $region55: #{tpu_custom_call.1} parent=1 // pred_check_branch
      %4999 = sbr.rel (0) target = $region57
    $region56: #{tpu_custom_call.1} parent=1 // pred_region
      %5000 = dma.done [#allocation3], 256
    $region57: #{tpu_custom_call.1} parent=1 // pred_fallthru
      _
    %5001 = vsyncpa [#allocation3], 1

</llo_original>
